<compile_context>
chip_gen: v6e
topology: v6e:2x2x1
jax: 0.10.0
libtpu: 0.0.40
codegen_flags: <defaults>
</compile_context>

<pallas_src>
import math

import jax
import jax.numpy as jnp
from jax.experimental import pallas as pl
from jax.experimental.pallas import tpu as pltpu


def _round_up(x, m):
    return (x + m - 1) // m * m


def _head_pair_kernel(x_ref, w_ref, b_ref, o_ref):
    # x_ref: (tm, K)    bf16 im2col patch tile (rows = flattened N*H*W)
    # w_ref: (K, 128)   bf16 fused conf+loc weight tile
    # b_ref: (1, 128)   f32 fused bias tile
    # o_ref: (tm, 128)  f32 output tile (lane-dense, unmasked stores)
    acc = jnp.dot(x_ref[...], w_ref[...], preferred_element_type=jnp.float32)
    o_ref[...] = (acc + b_ref[...]).astype(o_ref.dtype)


def _to_mat(w_oihw):
    """(Cout, Cin, 3, 3) PyTorch conv weight -> (9*Cin, Cout) im2col matrix."""
    cout, cin = w_oihw.shape[0], w_oihw.shape[1]
    return jnp.transpose(w_oihw, (2, 3, 1, 0)).reshape(9 * cin, cout)


@jax.jit
def fused_head_level(x_nchw, conf_w, conf_b, loc_w, loc_b):
    """Both 3x3 stride-1 pad-1 convs for one feature-pyramid level.

    Returns (conf_out, loc_out) in NCHW.  The hot path (fat matmul + bias add
    + cast) runs inside a single Pallas kernel per level.
    """
    N, Cin, H, W = x_nchw.shape
    cc = conf_w.shape[0]
    lc = loc_w.shape[0]
    cout = cc + lc
    cout_pad = _round_up(cout, 128)
    n_blocks = cout_pad // 128

    M = N * H * W
    K = 9 * Cin
    # Row tile: multiple of 8 sublanes, capped so patch + weight double-buffers
    # stay well inside the default scoped-VMEM budget at real SSD resolutions.
    tm = min(_round_up(M, 8), 256)
    grid_m = pl.cdiv(M, tm)
    M_pad = grid_m * tm

    # ---- glue: NCHW->NHWC, spatial pad, im2col, weight fusion (plain JAX) ----
    x_nhwc = jnp.transpose(x_nchw, (0, 2, 3, 1))                  # (N, H, W, Cin)
    x_sp = jnp.pad(x_nhwc, ((0, 0), (1, 1), (1, 1), (0, 0)))      # (N, H+2, W+2, Cin)
    patches = jnp.concatenate(
        [x_sp[:, dy:dy + H, dx:dx + W, :]
         for dy in range(3) for dx in range(3)],
        axis=-1).reshape(M, K)                                    # (M, 9*Cin)
    patches = jnp.pad(patches, ((0, M_pad - M), (0, 0))).astype(jnp.bfloat16)

    w_fused = jnp.concatenate([_to_mat(conf_w), _to_mat(loc_w)], axis=1)
    w_fused = jnp.pad(w_fused, ((0, 0), (0, cout_pad - cout)))
    w_fused = w_fused.astype(jnp.bfloat16)                        # (K, cout_pad)

    b_fused = jnp.concatenate([conf_b, loc_b]).astype(jnp.float32)
    b_fused = jnp.pad(b_fused, (0, cout_pad - cout)).reshape(1, cout_pad)

    flops = 2 * M_pad * K * cout_pad
    bytes_accessed = (M_pad * K * 2 + K * cout_pad * 2
                      + 4 * cout_pad + M_pad * cout_pad * 4)

    out = pl.pallas_call(
        _head_pair_kernel,
        out_shape=jax.ShapeDtypeStruct((M_pad, cout_pad), jnp.float32),
        grid=(grid_m, n_blocks),
        in_specs=[
            pl.BlockSpec((tm, K), lambda i, j: (i, 0)),    # patches (resident over j)
            pl.BlockSpec((K, 128), lambda i, j: (0, j)),   # weight tile
            pl.BlockSpec((1, 128), lambda i, j: (0, j)),   # bias tile
        ],
        out_specs=pl.BlockSpec((tm, 128), lambda i, j: (i, j)),
        compiler_params=pltpu.CompilerParams(
            dimension_semantics=("parallel", "parallel")),
        cost_estimate=pl.CostEstimate(flops=flops, transcendentals=0,
                                      bytes_accessed=bytes_accessed),
    )(patches, w_fused, b_fused)

    out = out[:M].reshape(N, H, W, cout_pad)
    conf = jnp.transpose(out[..., :cc], (0, 3, 1, 2)).astype(x_nchw.dtype)
    loc = jnp.transpose(out[..., cc:cout], (0, 3, 1, 2)).astype(x_nchw.dtype)
    return conf, loc


def ssd_head_forward(xs, conf_params, loc_params):
    """Pallas equivalent of SSDHead.forward on a list of feature maps."""
    conf_out, loc_out = [], []
    for x, (cw, cb), (lw, lb) in zip(xs, conf_params, loc_params):
        c, l = fused_head_level(x, cw, cb, lw, lb)
        conf_out.append(c)
        loc_out.append(l)
    return {"conf_head_output": conf_out, "loc_head_output": loc_out}


def xavier_uniform_conv(key, cout, cin, k=3):
    """Deterministic xavier_uniform init matching nn.init.xavier_uniform_."""
    fan_in = cin * k * k
    fan_out = cout * k * k
    bound = math.sqrt(6.0 / (fan_in + fan_out))
    return jax.random.uniform(key, (cout, cin, k, k), jnp.float32, -bound, bound)


def reference_conv(x_nchw, w_oihw, b):
    y = jax.lax.conv_general_dilated(
        x_nchw, w_oihw, window_strides=(1, 1), padding="SAME",
        dimension_numbers=("NCHW", "OIHW", "NCHW"),
        precision=jax.lax.Precision.HIGHEST)
    return y + b.reshape(1, -1, 1, 1)


if __name__ == "__main__":
    num_classes = 21
    in_channels = [512, 1024, 512, 256, 256, 256]
    anchor_mults = [4, 6, 6, 6, 4, 4]          # per-level anchors (from __init__)
    spatial = [(8, 8), (4, 4), (4, 4), (2, 2), (2, 2), (1, 1)]  # small pyramid
    N = 2

    key = jax.random.PRNGKey(0)
    params_key, data_key = jax.random.split(key)
    wkeys = jax.random.split(params_key, 2 * len(in_channels))

    conf_params, loc_params = [], []
    for i, cin in enumerate(in_channels):
        c_out = num_classes * anchor_mults[i]
        l_out = 4 * anchor_mults[i]
        conf_params.append((xavier_uniform_conv(wkeys[2 * i], c_out, cin),
                            jnp.zeros((c_out,), jnp.float32)))
        loc_params.append((xavier_uniform_conv(wkeys[2 * i + 1], l_out, cin),
                           jnp.zeros((l_out,), jnp.float32)))

    xkeys = jax.random.split(data_key, len(in_channels))
    xs = [jax.random.normal(xkeys[i], (N, in_channels[i], *spatial[i]),
                            jnp.float32)
          for i in range(len(in_channels))]

    out = ssd_head_forward(xs, conf_params, loc_params)
    jax.block_until_ready(out)

    # Verify against XLA's conv for every level / head (bf16 matmul -> loose tol).
    ok = True
    for i in range(len(in_channels)):
        ref_c = reference_conv(xs[i], *conf_params[i])
        ref_l = reference_conv(xs[i], *loc_params[i])
        ok &= bool(jnp.allclose(out["conf_head_output"][i], ref_c,
                                rtol=2e-2, atol=2e-2))
        ok &= bool(jnp.allclose(out["loc_head_output"][i], ref_l,
                                rtol=2e-2, atol=2e-2))
    if not ok:
        raise AssertionError("Pallas conv output mismatch vs reference")

    print("KERNEL_OK")
</pallas_src>

<mosaic_0001>
module attributes {stable_mosaic.version = 11 : i64} {
  func.func @_head_pair_kernel(%arg0: i32, %arg1: i32, %arg2: memref<128x4608xbf16, #tpu.memory_space<vmem>>, %arg3: memref<4608x128xbf16, #tpu.memory_space<vmem>>, %arg4: memref<1x128xf32, #tpu.memory_space<vmem>>, %arg5: memref<128x128xf32, #tpu.memory_space<vmem>>) attributes {dimension_semantics = [#tpu.dimension_semantics<parallel>, #tpu.dimension_semantics<parallel>], iteration_bounds = array<i64: 1, 1>, scalar_prefetch = 0 : i64, scratch_operands = 0 : i64, tpu.core_type = #tpu.core_type<tc>, window_params = [{transform_indices = @transform_0, window_bounds = array<i64: 128, 4608>}, {transform_indices = @transform_1, window_bounds = array<i64: 4608, 128>}, {transform_indices = @transform_2, window_bounds = array<i64: 1, 128>}, {transform_indices = @transform_3, window_bounds = array<i64: 128, 128>}]} {
    %c0 = arith.constant 0 : index
    %c0_0 = arith.constant 0 : index
    %0 = vector.load %arg2[%c0, %c0_0] : memref<128x4608xbf16, #tpu.memory_space<vmem>>, vector<128x4608xbf16>
    %c0_1 = arith.constant 0 : index
    %c0_2 = arith.constant 0 : index
    %1 = vector.load %arg3[%c0_1, %c0_2] : memref<4608x128xbf16, #tpu.memory_space<vmem>>, vector<4608x128xbf16>
    %cst = arith.constant dense<0.000000e+00> : vector<128x128xf32>
    %2 = tpu.matmul %0, %1, %cst {dimension_numbers = #tpu.dot_dimension_numbers<[1], [0], [0], [1], [0, 0, 1, 1], [], []>} : vector<128x4608xbf16>, vector<4608x128xbf16>, vector<128x128xf32> -> vector<128x128xf32>
    %c0_3 = arith.constant 0 : index
    %c0_4 = arith.constant 0 : index
    %3 = vector.load %arg4[%c0_3, %c0_4] : memref<1x128xf32, #tpu.memory_space<vmem>>, vector<1x128xf32>
    %4 = vector.broadcast %3 : vector<1x128xf32> to vector<128x128xf32>
    %5 = arith.addf %2, %4 : vector<128x128xf32>
    %c0_5 = arith.constant 0 : index
    %c0_6 = arith.constant 0 : index
    %6 = vector.load %arg5[%c0_5, %c0_6] : memref<128x128xf32, #tpu.memory_space<vmem>>, vector<128x128xf32>
    tpu.vector_store %arg5[%c0_5, %c0_6], %5 {strides = array<i32>} : memref<128x128xf32, #tpu.memory_space<vmem>>, vector<128x128xf32>,
    return
  }
  func.func @transform_0(%arg0: i32, %arg1: i32) -> (i32, i32) {
    %c0_i32 = arith.constant 0 : i32
    %c0_i32_0 = arith.constant 0 : i32
    return %arg0, %c0_i32 : i32, i32
  }
  func.func @transform_1(%arg0: i32, %arg1: i32) -> (i32, i32) {
    %c0_i32 = arith.constant 0 : i32
    %c0_i32_0 = arith.constant 0 : i32
    return %c0_i32, %arg1 : i32, i32
  }
  func.func @transform_2(%arg0: i32, %arg1: i32) -> (i32, i32) {
    %c0_i32 = arith.constant 0 : i32
    %c0_i32_0 = arith.constant 0 : i32
    return %c0_i32, %arg1 : i32, i32
  }
  func.func @transform_3(%arg0: i32, %arg1: i32) -> (i32, i32) {
    %c0_i32 = arith.constant 0 : i32
    return %arg0, %arg1 : i32, i32
  }
}

</mosaic_0001>

<llo_original>
// kernel: fused_head_level.1
$region0: #{fused_head_level.1}
  #allocation0 [shape = 'u32[]', space=smem, size = 0x4, offset = 0x4, fixed_abs, tag = 'smem constant byte address 0x4 - core index']
  #allocation1 [shape = 'u32[144,128]{1,0:T(1,128)}', space=vmem, size = 0x12000, scoped, tag = 'internal scratch']
  %s0 = inlined_call_operand.vmem [shape: bf16[128,4608], index: 0, kind: input, shape index: {}]
  %s1 = inlined_call_operand.vmem [shape: bf16[4608,128], index: 1, kind: input, shape index: {}]
  %s2 = inlined_call_operand.vmem [shape: f32[1,128], index: 2, kind: input, shape index: {}]
  %s3 = inlined_call_operand.vmem [shape: f32[128,128], index: 3, kind: output, shape index: {}]
  %s4 = sld [smem:[#allocation0]]
  $region22: #{fused_head_level.1} parent=0
    _
  %s6 = ssub.s32 1, %s4
  %s7 = scalar_select 0, %s6, %s4
  // Predicated region
  $region2: #{fused_head_level.1} parent=0 // pred_check
    _
  $region3: #{fused_head_level.1} parent=0 // pred_check_branch
    %9 = sbr.rel (0) target = $region5
  $region4: #{fused_head_level.1} parent=0 // pred_region
    _
  $region5: #{fused_head_level.1} parent=0 // pred_fallthru
    _
  // Predicated region
  $region6: #{fused_head_level.1} parent=0 // pred_check
    _
  $region7: #{fused_head_level.1} parent=0 // pred_check_branch
    %11 = sbr.rel (0) target = $region9
  $region8: #{fused_head_level.1} parent=0 // pred_region
    _
  $region9: #{fused_head_level.1} parent=0 // pred_fallthru
    _
  // Predicated region
  $region10: #{fused_head_level.1} parent=0 // pred_check
    _
  $region11: #{fused_head_level.1} parent=0 // pred_check_branch
    %13 = sbr.rel (0) target = $region13
  $region12: #{fused_head_level.1} parent=0 // pred_region
    _
  $region13: #{fused_head_level.1} parent=0 // pred_fallthru
    _
  %v15 = vld [vmem:[%s0] sm:$0xff]
  %v16 = vld [vmem:[%s0 + $0x8] sm:$0xff]
  %v17 = vld [vmem:[%s0 + $0x10] sm:$0xff]
  %v18 = vld [vmem:[%s0 + $0x18] sm:$0xff]
  %v19 = vld [vmem:[%s0 + $0x20] sm:$0xff]
  %v20 = vld [vmem:[%s0 + $0x28] sm:$0xff]
  %v21 = vld [vmem:[%s0 + $0x30] sm:$0xff]
  %v22 = vld [vmem:[%s0 + $0x38] sm:$0xff]
  %v23 = vld [vmem:[%s0 + $0x40] sm:$0xff]
  %v24 = vld [vmem:[%s0 + $0x48] sm:$0xff]
  %v25 = vld [vmem:[%s0 + $0x50] sm:$0xff]
  %v26 = vld [vmem:[%s0 + $0x58] sm:$0xff]
  %v27 = vld [vmem:[%s0 + $0x60] sm:$0xff]
  %v28 = vld [vmem:[%s0 + $0x68] sm:$0xff]
  %v29 = vld [vmem:[%s0 + $0x70] sm:$0xff]
  %v30 = vld [vmem:[%s0 + $0x78] sm:$0xff]
  %v31 = vld [vmem:[%s0 + $0x80] sm:$0xff]
  %v32 = vld [vmem:[%s0 + $0x88] sm:$0xff]
  %v33 = vld [vmem:[%s0 + $0x90] sm:$0xff]
  %v34 = vld [vmem:[%s0 + $0x98] sm:$0xff]
  %v35 = vld [vmem:[%s0 + $0xa0] sm:$0xff]
  %v36 = vld [vmem:[%s0 + $0xa8] sm:$0xff]
  %v37 = vld [vmem:[%s0 + $0xb0] sm:$0xff]
  %v38 = vld [vmem:[%s0 + $0xb8] sm:$0xff]
  %v39 = vld [vmem:[%s0 + $0xc0] sm:$0xff]
  %v40 = vld [vmem:[%s0 + $0xc8] sm:$0xff]
  %v41 = vld [vmem:[%s0 + $0xd0] sm:$0xff]
  %v42 = vld [vmem:[%s0 + $0xd8] sm:$0xff]
  %v43 = vld [vmem:[%s0 + $0xe0] sm:$0xff]
  %v44 = vld [vmem:[%s0 + $0xe8] sm:$0xff]
  %v45 = vld [vmem:[%s0 + $0xf0] sm:$0xff]
  %v46 = vld [vmem:[%s0 + $0xf8] sm:$0xff]
  %v47 = vld [vmem:[%s0 + $0x100] sm:$0xff]
  %v48 = vld [vmem:[%s0 + $0x108] sm:$0xff]
  %v49 = vld [vmem:[%s0 + $0x110] sm:$0xff]
  %v50 = vld [vmem:[%s0 + $0x118] sm:$0xff]
  %v51 = vld [vmem:[%s0 + $0x120] sm:$0xff]
  %v52 = vld [vmem:[%s0 + $0x128] sm:$0xff]
  %v53 = vld [vmem:[%s0 + $0x130] sm:$0xff]
  %v54 = vld [vmem:[%s0 + $0x138] sm:$0xff]
  %v55 = vld [vmem:[%s0 + $0x140] sm:$0xff]
  %v56 = vld [vmem:[%s0 + $0x148] sm:$0xff]
  %v57 = vld [vmem:[%s0 + $0x150] sm:$0xff]
  %v58 = vld [vmem:[%s0 + $0x158] sm:$0xff]
  %v59 = vld [vmem:[%s0 + $0x160] sm:$0xff]
  %v60 = vld [vmem:[%s0 + $0x168] sm:$0xff]
  %v61 = vld [vmem:[%s0 + $0x170] sm:$0xff]
  %v62 = vld [vmem:[%s0 + $0x178] sm:$0xff]
  %v63 = vld [vmem:[%s0 + $0x180] sm:$0xff]
  %v64 = vld [vmem:[%s0 + $0x188] sm:$0xff]
  %v65 = vld [vmem:[%s0 + $0x190] sm:$0xff]
  %v66 = vld [vmem:[%s0 + $0x198] sm:$0xff]
  %v67 = vld [vmem:[%s0 + $0x1a0] sm:$0xff]
  %v68 = vld [vmem:[%s0 + $0x1a8] sm:$0xff]
  %v69 = vld [vmem:[%s0 + $0x1b0] sm:$0xff]
  %v70 = vld [vmem:[%s0 + $0x1b8] sm:$0xff]
  %v71 = vld [vmem:[%s0 + $0x1c0] sm:$0xff]
  %v72 = vld [vmem:[%s0 + $0x1c8] sm:$0xff]
  %v73 = vld [vmem:[%s0 + $0x1d0] sm:$0xff]
  %v74 = vld [vmem:[%s0 + $0x1d8] sm:$0xff]
  %v75 = vld [vmem:[%s0 + $0x1e0] sm:$0xff]
  %v76 = vld [vmem:[%s0 + $0x1e8] sm:$0xff]
  %v77 = vld [vmem:[%s0 + $0x1f0] sm:$0xff]
  %v78 = vld [vmem:[%s0 + $0x1f8] sm:$0xff]
  %v79 = vld [vmem:[%s0 + $0x200] sm:$0xff]
  %v80 = vld [vmem:[%s0 + $0x208] sm:$0xff]
  %v81 = vld [vmem:[%s0 + $0x210] sm:$0xff]
  %v82 = vld [vmem:[%s0 + $0x218] sm:$0xff]
  %v83 = vld [vmem:[%s0 + $0x220] sm:$0xff]
  %v84 = vld [vmem:[%s0 + $0x228] sm:$0xff]
  %v85 = vld [vmem:[%s0 + $0x230] sm:$0xff]
  %v86 = vld [vmem:[%s0 + $0x238] sm:$0xff]
  %v87 = vld [vmem:[%s0 + $0x240] sm:$0xff]
  %v88 = vld [vmem:[%s0 + $0x248] sm:$0xff]
  %v89 = vld [vmem:[%s0 + $0x250] sm:$0xff]
  %v90 = vld [vmem:[%s0 + $0x258] sm:$0xff]
  %v91 = vld [vmem:[%s0 + $0x260] sm:$0xff]
  %v92 = vld [vmem:[%s0 + $0x268] sm:$0xff]
  %v93 = vld [vmem:[%s0 + $0x270] sm:$0xff]
  %v94 = vld [vmem:[%s0 + $0x278] sm:$0xff]
  %v95 = vld [vmem:[%s0 + $0x280] sm:$0xff]
  %v96 = vld [vmem:[%s0 + $0x288] sm:$0xff]
  %v97 = vld [vmem:[%s0 + $0x290] sm:$0xff]
  %v98 = vld [vmem:[%s0 + $0x298] sm:$0xff]
  %v99 = vld [vmem:[%s0 + $0x2a0] sm:$0xff]
  %v100 = vld [vmem:[%s0 + $0x2a8] sm:$0xff]
  %v101 = vld [vmem:[%s0 + $0x2b0] sm:$0xff]
  %v102 = vld [vmem:[%s0 + $0x2b8] sm:$0xff]
  %v103 = vld [vmem:[%s0 + $0x2c0] sm:$0xff]
  %v104 = vld [vmem:[%s0 + $0x2c8] sm:$0xff]
  %v105 = vld [vmem:[%s0 + $0x2d0] sm:$0xff]
  %v106 = vld [vmem:[%s0 + $0x2d8] sm:$0xff]
  %v107 = vld [vmem:[%s0 + $0x2e0] sm:$0xff]
  %v108 = vld [vmem:[%s0 + $0x2e8] sm:$0xff]
  %v109 = vld [vmem:[%s0 + $0x2f0] sm:$0xff]
  %v110 = vld [vmem:[%s0 + $0x2f8] sm:$0xff]
  %v111 = vld [vmem:[%s0 + $0x300] sm:$0xff]
  %v112 = vld [vmem:[%s0 + $0x308] sm:$0xff]
  %v113 = vld [vmem:[%s0 + $0x310] sm:$0xff]
  %v114 = vld [vmem:[%s0 + $0x318] sm:$0xff]
  %v115 = vld [vmem:[%s0 + $0x320] sm:$0xff]
  %v116 = vld [vmem:[%s0 + $0x328] sm:$0xff]
  %v117 = vld [vmem:[%s0 + $0x330] sm:$0xff]
  %v118 = vld [vmem:[%s0 + $0x338] sm:$0xff]
  %v119 = vld [vmem:[%s0 + $0x340] sm:$0xff]
  %v120 = vld [vmem:[%s0 + $0x348] sm:$0xff]
  %v121 = vld [vmem:[%s0 + $0x350] sm:$0xff]
  %v122 = vld [vmem:[%s0 + $0x358] sm:$0xff]
  %v123 = vld [vmem:[%s0 + $0x360] sm:$0xff]
  %v124 = vld [vmem:[%s0 + $0x368] sm:$0xff]
  %v125 = vld [vmem:[%s0 + $0x370] sm:$0xff]
  %v126 = vld [vmem:[%s0 + $0x378] sm:$0xff]
  %v127 = vld [vmem:[%s0 + $0x380] sm:$0xff]
  %v128 = vld [vmem:[%s0 + $0x388] sm:$0xff]
  %v129 = vld [vmem:[%s0 + $0x390] sm:$0xff]
  %v130 = vld [vmem:[%s0 + $0x398] sm:$0xff]
  %v131 = vld [vmem:[%s0 + $0x3a0] sm:$0xff]
  %v132 = vld [vmem:[%s0 + $0x3a8] sm:$0xff]
  %v133 = vld [vmem:[%s0 + $0x3b0] sm:$0xff]
  %v134 = vld [vmem:[%s0 + $0x3b8] sm:$0xff]
  %v135 = vld [vmem:[%s0 + $0x3c0] sm:$0xff]
  %v136 = vld [vmem:[%s0 + $0x3c8] sm:$0xff]
  %v137 = vld [vmem:[%s0 + $0x3d0] sm:$0xff]
  %v138 = vld [vmem:[%s0 + $0x3d8] sm:$0xff]
  %v139 = vld [vmem:[%s0 + $0x3e0] sm:$0xff]
  %v140 = vld [vmem:[%s0 + $0x3e8] sm:$0xff]
  %v141 = vld [vmem:[%s0 + $0x3f0] sm:$0xff]
  %v142 = vld [vmem:[%s0 + $0x3f8] sm:$0xff]
  %v143 = vld [vmem:[%s0 + $0x400] sm:$0xff]
  %v144 = vld [vmem:[%s0 + $0x408] sm:$0xff]
  %v145 = vld [vmem:[%s0 + $0x410] sm:$0xff]
  %v146 = vld [vmem:[%s0 + $0x418] sm:$0xff]
  %v147 = vld [vmem:[%s0 + $0x420] sm:$0xff]
  %v148 = vld [vmem:[%s0 + $0x428] sm:$0xff]
  %v149 = vld [vmem:[%s0 + $0x430] sm:$0xff]
  %v150 = vld [vmem:[%s0 + $0x438] sm:$0xff]
  %v151 = vld [vmem:[%s0 + $0x440] sm:$0xff]
  %v152 = vld [vmem:[%s0 + $0x448] sm:$0xff]
  %v153 = vld [vmem:[%s0 + $0x450] sm:$0xff]
  %v154 = vld [vmem:[%s0 + $0x458] sm:$0xff]
  %v155 = vld [vmem:[%s0 + $0x460] sm:$0xff]
  %v156 = vld [vmem:[%s0 + $0x468] sm:$0xff]
  %v157 = vld [vmem:[%s0 + $0x470] sm:$0xff]
  %v158 = vld [vmem:[%s0 + $0x478] sm:$0xff]
  %v159 = vld [vmem:[%s0 + $0x480] sm:$0xff]
  %v160 = vld [vmem:[%s0 + $0x488] sm:$0xff]
  %v161 = vld [vmem:[%s0 + $0x490] sm:$0xff]
  %v162 = vld [vmem:[%s0 + $0x498] sm:$0xff]
  %v163 = vld [vmem:[%s0 + $0x4a0] sm:$0xff]
  %v164 = vld [vmem:[%s0 + $0x4a8] sm:$0xff]
  %v165 = vld [vmem:[%s0 + $0x4b0] sm:$0xff]
  %v166 = vld [vmem:[%s0 + $0x4b8] sm:$0xff]
  %v167 = vld [vmem:[%s0 + $0x4c0] sm:$0xff]
  %v168 = vld [vmem:[%s0 + $0x4c8] sm:$0xff]
  %v169 = vld [vmem:[%s0 + $0x4d0] sm:$0xff]
  %v170 = vld [vmem:[%s0 + $0x4d8] sm:$0xff]
  %v171 = vld [vmem:[%s0 + $0x4e0] sm:$0xff]
  %v172 = vld [vmem:[%s0 + $0x4e8] sm:$0xff]
  %v173 = vld [vmem:[%s0 + $0x4f0] sm:$0xff]
  %v174 = vld [vmem:[%s0 + $0x4f8] sm:$0xff]
  %v175 = vld [vmem:[%s0 + $0x500] sm:$0xff]
  %v176 = vld [vmem:[%s0 + $0x508] sm:$0xff]
  %v177 = vld [vmem:[%s0 + $0x510] sm:$0xff]
  %v178 = vld [vmem:[%s0 + $0x518] sm:$0xff]
  %v179 = vld [vmem:[%s0 + $0x520] sm:$0xff]
  %v180 = vld [vmem:[%s0 + $0x528] sm:$0xff]
  %v181 = vld [vmem:[%s0 + $0x530] sm:$0xff]
  %v182 = vld [vmem:[%s0 + $0x538] sm:$0xff]
  %v183 = vld [vmem:[%s0 + $0x540] sm:$0xff]
  %v184 = vld [vmem:[%s0 + $0x548] sm:$0xff]
  %v185 = vld [vmem:[%s0 + $0x550] sm:$0xff]
  %v186 = vld [vmem:[%s0 + $0x558] sm:$0xff]
  %v187 = vld [vmem:[%s0 + $0x560] sm:$0xff]
  %v188 = vld [vmem:[%s0 + $0x568] sm:$0xff]
  %v189 = vld [vmem:[%s0 + $0x570] sm:$0xff]
  %v190 = vld [vmem:[%s0 + $0x578] sm:$0xff]
  %v191 = vld [vmem:[%s0 + $0x580] sm:$0xff]
  %v192 = vld [vmem:[%s0 + $0x588] sm:$0xff]
  %v193 = vld [vmem:[%s0 + $0x590] sm:$0xff]
  %v194 = vld [vmem:[%s0 + $0x598] sm:$0xff]
  %v195 = vld [vmem:[%s0 + $0x5a0] sm:$0xff]
  %v196 = vld [vmem:[%s0 + $0x5a8] sm:$0xff]
  %v197 = vld [vmem:[%s0 + $0x5b0] sm:$0xff]
  %v198 = vld [vmem:[%s0 + $0x5b8] sm:$0xff]
  %v199 = vld [vmem:[%s0 + $0x5c0] sm:$0xff]
  %v200 = vld [vmem:[%s0 + $0x5c8] sm:$0xff]
  %v201 = vld [vmem:[%s0 + $0x5d0] sm:$0xff]
  %v202 = vld [vmem:[%s0 + $0x5d8] sm:$0xff]
  %v203 = vld [vmem:[%s0 + $0x5e0] sm:$0xff]
  %v204 = vld [vmem:[%s0 + $0x5e8] sm:$0xff]
  %v205 = vld [vmem:[%s0 + $0x5f0] sm:$0xff]
  %v206 = vld [vmem:[%s0 + $0x5f8] sm:$0xff]
  %v207 = vld [vmem:[%s0 + $0x600] sm:$0xff]
  %v208 = vld [vmem:[%s0 + $0x608] sm:$0xff]
  %v209 = vld [vmem:[%s0 + $0x610] sm:$0xff]
  %v210 = vld [vmem:[%s0 + $0x618] sm:$0xff]
  %v211 = vld [vmem:[%s0 + $0x620] sm:$0xff]
  %v212 = vld [vmem:[%s0 + $0x628] sm:$0xff]
  %v213 = vld [vmem:[%s0 + $0x630] sm:$0xff]
  %v214 = vld [vmem:[%s0 + $0x638] sm:$0xff]
  %v215 = vld [vmem:[%s0 + $0x640] sm:$0xff]
  %v216 = vld [vmem:[%s0 + $0x648] sm:$0xff]
  %v217 = vld [vmem:[%s0 + $0x650] sm:$0xff]
  %v218 = vld [vmem:[%s0 + $0x658] sm:$0xff]
  %v219 = vld [vmem:[%s0 + $0x660] sm:$0xff]
  %v220 = vld [vmem:[%s0 + $0x668] sm:$0xff]
  %v221 = vld [vmem:[%s0 + $0x670] sm:$0xff]
  %v222 = vld [vmem:[%s0 + $0x678] sm:$0xff]
  %v223 = vld [vmem:[%s0 + $0x680] sm:$0xff]
  %v224 = vld [vmem:[%s0 + $0x688] sm:$0xff]
  %v225 = vld [vmem:[%s0 + $0x690] sm:$0xff]
  %v226 = vld [vmem:[%s0 + $0x698] sm:$0xff]
  %v227 = vld [vmem:[%s0 + $0x6a0] sm:$0xff]
  %v228 = vld [vmem:[%s0 + $0x6a8] sm:$0xff]
  %v229 = vld [vmem:[%s0 + $0x6b0] sm:$0xff]
  %v230 = vld [vmem:[%s0 + $0x6b8] sm:$0xff]
  %v231 = vld [vmem:[%s0 + $0x6c0] sm:$0xff]
  %v232 = vld [vmem:[%s0 + $0x6c8] sm:$0xff]
  %v233 = vld [vmem:[%s0 + $0x6d0] sm:$0xff]
  %v234 = vld [vmem:[%s0 + $0x6d8] sm:$0xff]
  %v235 = vld [vmem:[%s0 + $0x6e0] sm:$0xff]
  %v236 = vld [vmem:[%s0 + $0x6e8] sm:$0xff]
  %v237 = vld [vmem:[%s0 + $0x6f0] sm:$0xff]
  %v238 = vld [vmem:[%s0 + $0x6f8] sm:$0xff]
  %v239 = vld [vmem:[%s0 + $0x700] sm:$0xff]
  %v240 = vld [vmem:[%s0 + $0x708] sm:$0xff]
  %v241 = vld [vmem:[%s0 + $0x710] sm:$0xff]
  %v242 = vld [vmem:[%s0 + $0x718] sm:$0xff]
  %v243 = vld [vmem:[%s0 + $0x720] sm:$0xff]
  %v244 = vld [vmem:[%s0 + $0x728] sm:$0xff]
  %v245 = vld [vmem:[%s0 + $0x730] sm:$0xff]
  %v246 = vld [vmem:[%s0 + $0x738] sm:$0xff]
  %v247 = vld [vmem:[%s0 + $0x740] sm:$0xff]
  %v248 = vld [vmem:[%s0 + $0x748] sm:$0xff]
  %v249 = vld [vmem:[%s0 + $0x750] sm:$0xff]
  %v250 = vld [vmem:[%s0 + $0x758] sm:$0xff]
  %v251 = vld [vmem:[%s0 + $0x760] sm:$0xff]
  %v252 = vld [vmem:[%s0 + $0x768] sm:$0xff]
  %v253 = vld [vmem:[%s0 + $0x770] sm:$0xff]
  %v254 = vld [vmem:[%s0 + $0x778] sm:$0xff]
  %v255 = vld [vmem:[%s0 + $0x780] sm:$0xff]
  %v256 = vld [vmem:[%s0 + $0x788] sm:$0xff]
  %v257 = vld [vmem:[%s0 + $0x790] sm:$0xff]
  %v258 = vld [vmem:[%s0 + $0x798] sm:$0xff]
  %v259 = vld [vmem:[%s0 + $0x7a0] sm:$0xff]
  %v260 = vld [vmem:[%s0 + $0x7a8] sm:$0xff]
  %v261 = vld [vmem:[%s0 + $0x7b0] sm:$0xff]
  %v262 = vld [vmem:[%s0 + $0x7b8] sm:$0xff]
  %v263 = vld [vmem:[%s0 + $0x7c0] sm:$0xff]
  %v264 = vld [vmem:[%s0 + $0x7c8] sm:$0xff]
  %v265 = vld [vmem:[%s0 + $0x7d0] sm:$0xff]
  %v266 = vld [vmem:[%s0 + $0x7d8] sm:$0xff]
  %v267 = vld [vmem:[%s0 + $0x7e0] sm:$0xff]
  %v268 = vld [vmem:[%s0 + $0x7e8] sm:$0xff]
  %v269 = vld [vmem:[%s0 + $0x7f0] sm:$0xff]
  %v270 = vld [vmem:[%s0 + $0x7f8] sm:$0xff]
  %v271 = vld [vmem:[%s0 + $0x800] sm:$0xff]
  %v272 = vld [vmem:[%s0 + $0x808] sm:$0xff]
  %v273 = vld [vmem:[%s0 + $0x810] sm:$0xff]
  %v274 = vld [vmem:[%s0 + $0x818] sm:$0xff]
  %v275 = vld [vmem:[%s0 + $0x820] sm:$0xff]
  %v276 = vld [vmem:[%s0 + $0x828] sm:$0xff]
  %v277 = vld [vmem:[%s0 + $0x830] sm:$0xff]
  %v278 = vld [vmem:[%s0 + $0x838] sm:$0xff]
  %v279 = vld [vmem:[%s0 + $0x840] sm:$0xff]
  %v280 = vld [vmem:[%s0 + $0x848] sm:$0xff]
  %v281 = vld [vmem:[%s0 + $0x850] sm:$0xff]
  %v282 = vld [vmem:[%s0 + $0x858] sm:$0xff]
  %v283 = vld [vmem:[%s0 + $0x860] sm:$0xff]
  %v284 = vld [vmem:[%s0 + $0x868] sm:$0xff]
  %v285 = vld [vmem:[%s0 + $0x870] sm:$0xff]
  %v286 = vld [vmem:[%s0 + $0x878] sm:$0xff]
  %v287 = vld [vmem:[%s0 + $0x880] sm:$0xff]
  %v288 = vld [vmem:[%s0 + $0x888] sm:$0xff]
  %v289 = vld [vmem:[%s0 + $0x890] sm:$0xff]
  %v290 = vld [vmem:[%s0 + $0x898] sm:$0xff]
  %v291 = vld [vmem:[%s0 + $0x8a0] sm:$0xff]
  %v292 = vld [vmem:[%s0 + $0x8a8] sm:$0xff]
  %v293 = vld [vmem:[%s0 + $0x8b0] sm:$0xff]
  %v294 = vld [vmem:[%s0 + $0x8b8] sm:$0xff]
  %v295 = vld [vmem:[%s0 + $0x8c0] sm:$0xff]
  %v296 = vld [vmem:[%s0 + $0x8c8] sm:$0xff]
  %v297 = vld [vmem:[%s0 + $0x8d0] sm:$0xff]
  %v298 = vld [vmem:[%s0 + $0x8d8] sm:$0xff]
  %v299 = vld [vmem:[%s0 + $0x8e0] sm:$0xff]
  %v300 = vld [vmem:[%s0 + $0x8e8] sm:$0xff]
  %v301 = vld [vmem:[%s0 + $0x8f0] sm:$0xff]
  %v302 = vld [vmem:[%s0 + $0x8f8] sm:$0xff]
  %v303 = vld [vmem:[%s1] sm:$0xf]
  %v304 = vld [vmem:[%s1 + $0x4] sm:$0xf]
  %v305 = vld [vmem:[%s1 + $0x8] sm:$0xf]
  %v306 = vld [vmem:[%s1 + $0xc] sm:$0xf]
  %v307 = vld [vmem:[%s1 + $0x10] sm:$0xf]
  %v308 = vld [vmem:[%s1 + $0x14] sm:$0xf]
  %v309 = vld [vmem:[%s1 + $0x18] sm:$0xf]
  %v310 = vld [vmem:[%s1 + $0x1c] sm:$0xf]
  %v311 = vld [vmem:[%s1 + $0x20] sm:$0xf]
  %v312 = vld [vmem:[%s1 + $0x24] sm:$0xf]
  %v313 = vld [vmem:[%s1 + $0x28] sm:$0xf]
  %v314 = vld [vmem:[%s1 + $0x2c] sm:$0xf]
  %v315 = vld [vmem:[%s1 + $0x30] sm:$0xf]
  %v316 = vld [vmem:[%s1 + $0x34] sm:$0xf]
  %v317 = vld [vmem:[%s1 + $0x38] sm:$0xf]
  %v318 = vld [vmem:[%s1 + $0x3c] sm:$0xf]
  %v319 = vld [vmem:[%s1 + $0x40] sm:$0xf]
  %v320 = vld [vmem:[%s1 + $0x44] sm:$0xf]
  %v321 = vld [vmem:[%s1 + $0x48] sm:$0xf]
  %v322 = vld [vmem:[%s1 + $0x4c] sm:$0xf]
  %v323 = vld [vmem:[%s1 + $0x50] sm:$0xf]
  %v324 = vld [vmem:[%s1 + $0x54] sm:$0xf]
  %v325 = vld [vmem:[%s1 + $0x58] sm:$0xf]
  %v326 = vld [vmem:[%s1 + $0x5c] sm:$0xf]
  %v327 = vld [vmem:[%s1 + $0x60] sm:$0xf]
  %v328 = vld [vmem:[%s1 + $0x64] sm:$0xf]
  %v329 = vld [vmem:[%s1 + $0x68] sm:$0xf]
  %v330 = vld [vmem:[%s1 + $0x6c] sm:$0xf]
  %v331 = vld [vmem:[%s1 + $0x70] sm:$0xf]
  %v332 = vld [vmem:[%s1 + $0x74] sm:$0xf]
  %v333 = vld [vmem:[%s1 + $0x78] sm:$0xf]
  %v334 = vld [vmem:[%s1 + $0x7c] sm:$0xf]
  %v335 = vld [vmem:[%s1 + $0x80] sm:$0xf]
  %v336 = vld [vmem:[%s1 + $0x84] sm:$0xf]
  %v337 = vld [vmem:[%s1 + $0x88] sm:$0xf]
  %v338 = vld [vmem:[%s1 + $0x8c] sm:$0xf]
  %v339 = vld [vmem:[%s1 + $0x90] sm:$0xf]
  %v340 = vld [vmem:[%s1 + $0x94] sm:$0xf]
  %v341 = vld [vmem:[%s1 + $0x98] sm:$0xf]
  %v342 = vld [vmem:[%s1 + $0x9c] sm:$0xf]
  %v343 = vld [vmem:[%s1 + $0xa0] sm:$0xf]
  %v344 = vld [vmem:[%s1 + $0xa4] sm:$0xf]
  %v345 = vld [vmem:[%s1 + $0xa8] sm:$0xf]
  %v346 = vld [vmem:[%s1 + $0xac] sm:$0xf]
  %v347 = vld [vmem:[%s1 + $0xb0] sm:$0xf]
  %v348 = vld [vmem:[%s1 + $0xb4] sm:$0xf]
  %v349 = vld [vmem:[%s1 + $0xb8] sm:$0xf]
  %v350 = vld [vmem:[%s1 + $0xbc] sm:$0xf]
  %v351 = vld [vmem:[%s1 + $0xc0] sm:$0xf]
  %v352 = vld [vmem:[%s1 + $0xc4] sm:$0xf]
  %v353 = vld [vmem:[%s1 + $0xc8] sm:$0xf]
  %v354 = vld [vmem:[%s1 + $0xcc] sm:$0xf]
  %v355 = vld [vmem:[%s1 + $0xd0] sm:$0xf]
  %v356 = vld [vmem:[%s1 + $0xd4] sm:$0xf]
  %v357 = vld [vmem:[%s1 + $0xd8] sm:$0xf]
  %v358 = vld [vmem:[%s1 + $0xdc] sm:$0xf]
  %v359 = vld [vmem:[%s1 + $0xe0] sm:$0xf]
  %v360 = vld [vmem:[%s1 + $0xe4] sm:$0xf]
  %v361 = vld [vmem:[%s1 + $0xe8] sm:$0xf]
  %v362 = vld [vmem:[%s1 + $0xec] sm:$0xf]
  %v363 = vld [vmem:[%s1 + $0xf0] sm:$0xf]
  %v364 = vld [vmem:[%s1 + $0xf4] sm:$0xf]
  %v365 = vld [vmem:[%s1 + $0xf8] sm:$0xf]
  %v366 = vld [vmem:[%s1 + $0xfc] sm:$0xf]
  %v367 = vld [vmem:[%s1 + $0x100] sm:$0xf]
  %v368 = vld [vmem:[%s1 + $0x104] sm:$0xf]
  %v369 = vld [vmem:[%s1 + $0x108] sm:$0xf]
  %v370 = vld [vmem:[%s1 + $0x10c] sm:$0xf]
  %v371 = vld [vmem:[%s1 + $0x110] sm:$0xf]
  %v372 = vld [vmem:[%s1 + $0x114] sm:$0xf]
  %v373 = vld [vmem:[%s1 + $0x118] sm:$0xf]
  %v374 = vld [vmem:[%s1 + $0x11c] sm:$0xf]
  %v375 = vld [vmem:[%s1 + $0x120] sm:$0xf]
  %v376 = vld [vmem:[%s1 + $0x124] sm:$0xf]
  %v377 = vld [vmem:[%s1 + $0x128] sm:$0xf]
  %v378 = vld [vmem:[%s1 + $0x12c] sm:$0xf]
  %v379 = vld [vmem:[%s1 + $0x130] sm:$0xf]
  %v380 = vld [vmem:[%s1 + $0x134] sm:$0xf]
  %v381 = vld [vmem:[%s1 + $0x138] sm:$0xf]
  %v382 = vld [vmem:[%s1 + $0x13c] sm:$0xf]
  %v383 = vld [vmem:[%s1 + $0x140] sm:$0xf]
  %v384 = vld [vmem:[%s1 + $0x144] sm:$0xf]
  %v385 = vld [vmem:[%s1 + $0x148] sm:$0xf]
  %v386 = vld [vmem:[%s1 + $0x14c] sm:$0xf]
  %v387 = vld [vmem:[%s1 + $0x150] sm:$0xf]
  %v388 = vld [vmem:[%s1 + $0x154] sm:$0xf]
  %v389 = vld [vmem:[%s1 + $0x158] sm:$0xf]
  %v390 = vld [vmem:[%s1 + $0x15c] sm:$0xf]
  %v391 = vld [vmem:[%s1 + $0x160] sm:$0xf]
  %v392 = vld [vmem:[%s1 + $0x164] sm:$0xf]
  %v393 = vld [vmem:[%s1 + $0x168] sm:$0xf]
  %v394 = vld [vmem:[%s1 + $0x16c] sm:$0xf]
  %v395 = vld [vmem:[%s1 + $0x170] sm:$0xf]
  %v396 = vld [vmem:[%s1 + $0x174] sm:$0xf]
  %v397 = vld [vmem:[%s1 + $0x178] sm:$0xf]
  %v398 = vld [vmem:[%s1 + $0x17c] sm:$0xf]
  %v399 = vld [vmem:[%s1 + $0x180] sm:$0xf]
  %v400 = vld [vmem:[%s1 + $0x184] sm:$0xf]
  %v401 = vld [vmem:[%s1 + $0x188] sm:$0xf]
  %v402 = vld [vmem:[%s1 + $0x18c] sm:$0xf]
  %v403 = vld [vmem:[%s1 + $0x190] sm:$0xf]
  %v404 = vld [vmem:[%s1 + $0x194] sm:$0xf]
  %v405 = vld [vmem:[%s1 + $0x198] sm:$0xf]
  %v406 = vld [vmem:[%s1 + $0x19c] sm:$0xf]
  %v407 = vld [vmem:[%s1 + $0x1a0] sm:$0xf]
  %v408 = vld [vmem:[%s1 + $0x1a4] sm:$0xf]
  %v409 = vld [vmem:[%s1 + $0x1a8] sm:$0xf]
  %v410 = vld [vmem:[%s1 + $0x1ac] sm:$0xf]
  %v411 = vld [vmem:[%s1 + $0x1b0] sm:$0xf]
  %v412 = vld [vmem:[%s1 + $0x1b4] sm:$0xf]
  %v413 = vld [vmem:[%s1 + $0x1b8] sm:$0xf]
  %v414 = vld [vmem:[%s1 + $0x1bc] sm:$0xf]
  %v415 = vld [vmem:[%s1 + $0x1c0] sm:$0xf]
  %v416 = vld [vmem:[%s1 + $0x1c4] sm:$0xf]
  %v417 = vld [vmem:[%s1 + $0x1c8] sm:$0xf]
  %v418 = vld [vmem:[%s1 + $0x1cc] sm:$0xf]
  %v419 = vld [vmem:[%s1 + $0x1d0] sm:$0xf]
  %v420 = vld [vmem:[%s1 + $0x1d4] sm:$0xf]
  %v421 = vld [vmem:[%s1 + $0x1d8] sm:$0xf]
  %v422 = vld [vmem:[%s1 + $0x1dc] sm:$0xf]
  %v423 = vld [vmem:[%s1 + $0x1e0] sm:$0xf]
  %v424 = vld [vmem:[%s1 + $0x1e4] sm:$0xf]
  %v425 = vld [vmem:[%s1 + $0x1e8] sm:$0xf]
  %v426 = vld [vmem:[%s1 + $0x1ec] sm:$0xf]
  %v427 = vld [vmem:[%s1 + $0x1f0] sm:$0xf]
  %v428 = vld [vmem:[%s1 + $0x1f4] sm:$0xf]
  %v429 = vld [vmem:[%s1 + $0x1f8] sm:$0xf]
  %v430 = vld [vmem:[%s1 + $0x1fc] sm:$0xf]
  %v431 = vld [vmem:[%s1 + $0x200] sm:$0xf]
  %v432 = vld [vmem:[%s1 + $0x204] sm:$0xf]
  %v433 = vld [vmem:[%s1 + $0x208] sm:$0xf]
  %v434 = vld [vmem:[%s1 + $0x20c] sm:$0xf]
  %v435 = vld [vmem:[%s1 + $0x210] sm:$0xf]
  %v436 = vld [vmem:[%s1 + $0x214] sm:$0xf]
  %v437 = vld [vmem:[%s1 + $0x218] sm:$0xf]
  %v438 = vld [vmem:[%s1 + $0x21c] sm:$0xf]
  %v439 = vld [vmem:[%s1 + $0x220] sm:$0xf]
  %v440 = vld [vmem:[%s1 + $0x224] sm:$0xf]
  %v441 = vld [vmem:[%s1 + $0x228] sm:$0xf]
  %v442 = vld [vmem:[%s1 + $0x22c] sm:$0xf]
  %v443 = vld [vmem:[%s1 + $0x230] sm:$0xf]
  %v444 = vld [vmem:[%s1 + $0x234] sm:$0xf]
  %v445 = vld [vmem:[%s1 + $0x238] sm:$0xf]
  %v446 = vld [vmem:[%s1 + $0x23c] sm:$0xf]
  %v447 = vld [vmem:[%s1 + $0x240] sm:$0xf]
  %v448 = vld [vmem:[%s1 + $0x244] sm:$0xf]
  %v449 = vld [vmem:[%s1 + $0x248] sm:$0xf]
  %v450 = vld [vmem:[%s1 + $0x24c] sm:$0xf]
  %v451 = vld [vmem:[%s1 + $0x250] sm:$0xf]
  %v452 = vld [vmem:[%s1 + $0x254] sm:$0xf]
  %v453 = vld [vmem:[%s1 + $0x258] sm:$0xf]
  %v454 = vld [vmem:[%s1 + $0x25c] sm:$0xf]
  %v455 = vld [vmem:[%s1 + $0x260] sm:$0xf]
  %v456 = vld [vmem:[%s1 + $0x264] sm:$0xf]
  %v457 = vld [vmem:[%s1 + $0x268] sm:$0xf]
  %v458 = vld [vmem:[%s1 + $0x26c] sm:$0xf]
  %v459 = vld [vmem:[%s1 + $0x270] sm:$0xf]
  %v460 = vld [vmem:[%s1 + $0x274] sm:$0xf]
  %v461 = vld [vmem:[%s1 + $0x278] sm:$0xf]
  %v462 = vld [vmem:[%s1 + $0x27c] sm:$0xf]
  %v463 = vld [vmem:[%s1 + $0x280] sm:$0xf]
  %v464 = vld [vmem:[%s1 + $0x284] sm:$0xf]
  %v465 = vld [vmem:[%s1 + $0x288] sm:$0xf]
  %v466 = vld [vmem:[%s1 + $0x28c] sm:$0xf]
  %v467 = vld [vmem:[%s1 + $0x290] sm:$0xf]
  %v468 = vld [vmem:[%s1 + $0x294] sm:$0xf]
  %v469 = vld [vmem:[%s1 + $0x298] sm:$0xf]
  %v470 = vld [vmem:[%s1 + $0x29c] sm:$0xf]
  %v471 = vld [vmem:[%s1 + $0x2a0] sm:$0xf]
  %v472 = vld [vmem:[%s1 + $0x2a4] sm:$0xf]
  %v473 = vld [vmem:[%s1 + $0x2a8] sm:$0xf]
  %v474 = vld [vmem:[%s1 + $0x2ac] sm:$0xf]
  %v475 = vld [vmem:[%s1 + $0x2b0] sm:$0xf]
  %v476 = vld [vmem:[%s1 + $0x2b4] sm:$0xf]
  %v477 = vld [vmem:[%s1 + $0x2b8] sm:$0xf]
  %v478 = vld [vmem:[%s1 + $0x2bc] sm:$0xf]
  %v479 = vld [vmem:[%s1 + $0x2c0] sm:$0xf]
  %v480 = vld [vmem:[%s1 + $0x2c4] sm:$0xf]
  %v481 = vld [vmem:[%s1 + $0x2c8] sm:$0xf]
  %v482 = vld [vmem:[%s1 + $0x2cc] sm:$0xf]
  %v483 = vld [vmem:[%s1 + $0x2d0] sm:$0xf]
  %v484 = vld [vmem:[%s1 + $0x2d4] sm:$0xf]
  %v485 = vld [vmem:[%s1 + $0x2d8] sm:$0xf]
  %v486 = vld [vmem:[%s1 + $0x2dc] sm:$0xf]
  %v487 = vld [vmem:[%s1 + $0x2e0] sm:$0xf]
  %v488 = vld [vmem:[%s1 + $0x2e4] sm:$0xf]
  %v489 = vld [vmem:[%s1 + $0x2e8] sm:$0xf]
  %v490 = vld [vmem:[%s1 + $0x2ec] sm:$0xf]
  %v491 = vld [vmem:[%s1 + $0x2f0] sm:$0xf]
  %v492 = vld [vmem:[%s1 + $0x2f4] sm:$0xf]
  %v493 = vld [vmem:[%s1 + $0x2f8] sm:$0xf]
  %v494 = vld [vmem:[%s1 + $0x2fc] sm:$0xf]
  %v495 = vld [vmem:[%s1 + $0x300] sm:$0xf]
  %v496 = vld [vmem:[%s1 + $0x304] sm:$0xf]
  %v497 = vld [vmem:[%s1 + $0x308] sm:$0xf]
  %v498 = vld [vmem:[%s1 + $0x30c] sm:$0xf]
  %v499 = vld [vmem:[%s1 + $0x310] sm:$0xf]
  %v500 = vld [vmem:[%s1 + $0x314] sm:$0xf]
  %v501 = vld [vmem:[%s1 + $0x318] sm:$0xf]
  %v502 = vld [vmem:[%s1 + $0x31c] sm:$0xf]
  %v503 = vld [vmem:[%s1 + $0x320] sm:$0xf]
  %v504 = vld [vmem:[%s1 + $0x324] sm:$0xf]
  %v505 = vld [vmem:[%s1 + $0x328] sm:$0xf]
  %v506 = vld [vmem:[%s1 + $0x32c] sm:$0xf]
  %v507 = vld [vmem:[%s1 + $0x330] sm:$0xf]
  %v508 = vld [vmem:[%s1 + $0x334] sm:$0xf]
  %v509 = vld [vmem:[%s1 + $0x338] sm:$0xf]
  %v510 = vld [vmem:[%s1 + $0x33c] sm:$0xf]
  %v511 = vld [vmem:[%s1 + $0x340] sm:$0xf]
  %v512 = vld [vmem:[%s1 + $0x344] sm:$0xf]
  %v513 = vld [vmem:[%s1 + $0x348] sm:$0xf]
  %v514 = vld [vmem:[%s1 + $0x34c] sm:$0xf]
  %v515 = vld [vmem:[%s1 + $0x350] sm:$0xf]
  %v516 = vld [vmem:[%s1 + $0x354] sm:$0xf]
  %v517 = vld [vmem:[%s1 + $0x358] sm:$0xf]
  %v518 = vld [vmem:[%s1 + $0x35c] sm:$0xf]
  %v519 = vld [vmem:[%s1 + $0x360] sm:$0xf]
  %v520 = vld [vmem:[%s1 + $0x364] sm:$0xf]
  %v521 = vld [vmem:[%s1 + $0x368] sm:$0xf]
  %v522 = vld [vmem:[%s1 + $0x36c] sm:$0xf]
  %v523 = vld [vmem:[%s1 + $0x370] sm:$0xf]
  %v524 = vld [vmem:[%s1 + $0x374] sm:$0xf]
  %v525 = vld [vmem:[%s1 + $0x378] sm:$0xf]
  %v526 = vld [vmem:[%s1 + $0x37c] sm:$0xf]
  %v527 = vld [vmem:[%s1 + $0x380] sm:$0xf]
  %v528 = vld [vmem:[%s1 + $0x384] sm:$0xf]
  %v529 = vld [vmem:[%s1 + $0x388] sm:$0xf]
  %v530 = vld [vmem:[%s1 + $0x38c] sm:$0xf]
  %v531 = vld [vmem:[%s1 + $0x390] sm:$0xf]
  %v532 = vld [vmem:[%s1 + $0x394] sm:$0xf]
  %v533 = vld [vmem:[%s1 + $0x398] sm:$0xf]
  %v534 = vld [vmem:[%s1 + $0x39c] sm:$0xf]
  %v535 = vld [vmem:[%s1 + $0x3a0] sm:$0xf]
  %v536 = vld [vmem:[%s1 + $0x3a4] sm:$0xf]
  %v537 = vld [vmem:[%s1 + $0x3a8] sm:$0xf]
  %v538 = vld [vmem:[%s1 + $0x3ac] sm:$0xf]
  %v539 = vld [vmem:[%s1 + $0x3b0] sm:$0xf]
  %v540 = vld [vmem:[%s1 + $0x3b4] sm:$0xf]
  %v541 = vld [vmem:[%s1 + $0x3b8] sm:$0xf]
  %v542 = vld [vmem:[%s1 + $0x3bc] sm:$0xf]
  %v543 = vld [vmem:[%s1 + $0x3c0] sm:$0xf]
  %v544 = vld [vmem:[%s1 + $0x3c4] sm:$0xf]
  %v545 = vld [vmem:[%s1 + $0x3c8] sm:$0xf]
  %v546 = vld [vmem:[%s1 + $0x3cc] sm:$0xf]
  %v547 = vld [vmem:[%s1 + $0x3d0] sm:$0xf]
  %v548 = vld [vmem:[%s1 + $0x3d4] sm:$0xf]
  %v549 = vld [vmem:[%s1 + $0x3d8] sm:$0xf]
  %v550 = vld [vmem:[%s1 + $0x3dc] sm:$0xf]
  %v551 = vld [vmem:[%s1 + $0x3e0] sm:$0xf]
  %v552 = vld [vmem:[%s1 + $0x3e4] sm:$0xf]
  %v553 = vld [vmem:[%s1 + $0x3e8] sm:$0xf]
  %v554 = vld [vmem:[%s1 + $0x3ec] sm:$0xf]
  %v555 = vld [vmem:[%s1 + $0x3f0] sm:$0xf]
  %v556 = vld [vmem:[%s1 + $0x3f4] sm:$0xf]
  %v557 = vld [vmem:[%s1 + $0x3f8] sm:$0xf]
  %v558 = vld [vmem:[%s1 + $0x3fc] sm:$0xf]
  %v559 = vld [vmem:[%s1 + $0x400] sm:$0xf]
  %v560 = vld [vmem:[%s1 + $0x404] sm:$0xf]
  %v561 = vld [vmem:[%s1 + $0x408] sm:$0xf]
  %v562 = vld [vmem:[%s1 + $0x40c] sm:$0xf]
  %v563 = vld [vmem:[%s1 + $0x410] sm:$0xf]
  %v564 = vld [vmem:[%s1 + $0x414] sm:$0xf]
  %v565 = vld [vmem:[%s1 + $0x418] sm:$0xf]
  %v566 = vld [vmem:[%s1 + $0x41c] sm:$0xf]
  %v567 = vld [vmem:[%s1 + $0x420] sm:$0xf]
  %v568 = vld [vmem:[%s1 + $0x424] sm:$0xf]
  %v569 = vld [vmem:[%s1 + $0x428] sm:$0xf]
  %v570 = vld [vmem:[%s1 + $0x42c] sm:$0xf]
  %v571 = vld [vmem:[%s1 + $0x430] sm:$0xf]
  %v572 = vld [vmem:[%s1 + $0x434] sm:$0xf]
  %v573 = vld [vmem:[%s1 + $0x438] sm:$0xf]
  %v574 = vld [vmem:[%s1 + $0x43c] sm:$0xf]
  %v575 = vld [vmem:[%s1 + $0x440] sm:$0xf]
  %v576 = vld [vmem:[%s1 + $0x444] sm:$0xf]
  %v577 = vld [vmem:[%s1 + $0x448] sm:$0xf]
  %v578 = vld [vmem:[%s1 + $0x44c] sm:$0xf]
  %v579 = vld [vmem:[%s1 + $0x450] sm:$0xf]
  %v580 = vld [vmem:[%s1 + $0x454] sm:$0xf]
  %v581 = vld [vmem:[%s1 + $0x458] sm:$0xf]
  %v582 = vld [vmem:[%s1 + $0x45c] sm:$0xf]
  %v583 = vld [vmem:[%s1 + $0x460] sm:$0xf]
  %v584 = vld [vmem:[%s1 + $0x464] sm:$0xf]
  %v585 = vld [vmem:[%s1 + $0x468] sm:$0xf]
  %v586 = vld [vmem:[%s1 + $0x46c] sm:$0xf]
  %v587 = vld [vmem:[%s1 + $0x470] sm:$0xf]
  %v588 = vld [vmem:[%s1 + $0x474] sm:$0xf]
  %v589 = vld [vmem:[%s1 + $0x478] sm:$0xf]
  %v590 = vld [vmem:[%s1 + $0x47c] sm:$0xf]
  %v591 = vld [vmem:[%s1 + $0x480] sm:$0xf]
  %v592 = vld [vmem:[%s1 + $0x484] sm:$0xf]
  %v593 = vld [vmem:[%s1 + $0x488] sm:$0xf]
  %v594 = vld [vmem:[%s1 + $0x48c] sm:$0xf]
  %v595 = vld [vmem:[%s1 + $0x490] sm:$0xf]
  %v596 = vld [vmem:[%s1 + $0x494] sm:$0xf]
  %v597 = vld [vmem:[%s1 + $0x498] sm:$0xf]
  %v598 = vld [vmem:[%s1 + $0x49c] sm:$0xf]
  %v599 = vld [vmem:[%s1 + $0x4a0] sm:$0xf]
  %v600 = vld [vmem:[%s1 + $0x4a4] sm:$0xf]
  %v601 = vld [vmem:[%s1 + $0x4a8] sm:$0xf]
  %v602 = vld [vmem:[%s1 + $0x4ac] sm:$0xf]
  %v603 = vld [vmem:[%s1 + $0x4b0] sm:$0xf]
  %v604 = vld [vmem:[%s1 + $0x4b4] sm:$0xf]
  %v605 = vld [vmem:[%s1 + $0x4b8] sm:$0xf]
  %v606 = vld [vmem:[%s1 + $0x4bc] sm:$0xf]
  %v607 = vld [vmem:[%s1 + $0x4c0] sm:$0xf]
  %v608 = vld [vmem:[%s1 + $0x4c4] sm:$0xf]
  %v609 = vld [vmem:[%s1 + $0x4c8] sm:$0xf]
  %v610 = vld [vmem:[%s1 + $0x4cc] sm:$0xf]
  %v611 = vld [vmem:[%s1 + $0x4d0] sm:$0xf]
  %v612 = vld [vmem:[%s1 + $0x4d4] sm:$0xf]
  %v613 = vld [vmem:[%s1 + $0x4d8] sm:$0xf]
  %v614 = vld [vmem:[%s1 + $0x4dc] sm:$0xf]
  %v615 = vld [vmem:[%s1 + $0x4e0] sm:$0xf]
  %v616 = vld [vmem:[%s1 + $0x4e4] sm:$0xf]
  %v617 = vld [vmem:[%s1 + $0x4e8] sm:$0xf]
  %v618 = vld [vmem:[%s1 + $0x4ec] sm:$0xf]
  %v619 = vld [vmem:[%s1 + $0x4f0] sm:$0xf]
  %v620 = vld [vmem:[%s1 + $0x4f4] sm:$0xf]
  %v621 = vld [vmem:[%s1 + $0x4f8] sm:$0xf]
  %v622 = vld [vmem:[%s1 + $0x4fc] sm:$0xf]
  %v623 = vld [vmem:[%s1 + $0x500] sm:$0xf]
  %v624 = vld [vmem:[%s1 + $0x504] sm:$0xf]
  %v625 = vld [vmem:[%s1 + $0x508] sm:$0xf]
  %v626 = vld [vmem:[%s1 + $0x50c] sm:$0xf]
  %v627 = vld [vmem:[%s1 + $0x510] sm:$0xf]
  %v628 = vld [vmem:[%s1 + $0x514] sm:$0xf]
  %v629 = vld [vmem:[%s1 + $0x518] sm:$0xf]
  %v630 = vld [vmem:[%s1 + $0x51c] sm:$0xf]
  %v631 = vld [vmem:[%s1 + $0x520] sm:$0xf]
  %v632 = vld [vmem:[%s1 + $0x524] sm:$0xf]
  %v633 = vld [vmem:[%s1 + $0x528] sm:$0xf]
  %v634 = vld [vmem:[%s1 + $0x52c] sm:$0xf]
  %v635 = vld [vmem:[%s1 + $0x530] sm:$0xf]
  %v636 = vld [vmem:[%s1 + $0x534] sm:$0xf]
  %v637 = vld [vmem:[%s1 + $0x538] sm:$0xf]
  %v638 = vld [vmem:[%s1 + $0x53c] sm:$0xf]
  %v639 = vld [vmem:[%s1 + $0x540] sm:$0xf]
  %v640 = vld [vmem:[%s1 + $0x544] sm:$0xf]
  %v641 = vld [vmem:[%s1 + $0x548] sm:$0xf]
  %v642 = vld [vmem:[%s1 + $0x54c] sm:$0xf]
  %v643 = vld [vmem:[%s1 + $0x550] sm:$0xf]
  %v644 = vld [vmem:[%s1 + $0x554] sm:$0xf]
  %v645 = vld [vmem:[%s1 + $0x558] sm:$0xf]
  %v646 = vld [vmem:[%s1 + $0x55c] sm:$0xf]
  %v647 = vld [vmem:[%s1 + $0x560] sm:$0xf]
  %v648 = vld [vmem:[%s1 + $0x564] sm:$0xf]
  %v649 = vld [vmem:[%s1 + $0x568] sm:$0xf]
  %v650 = vld [vmem:[%s1 + $0x56c] sm:$0xf]
  %v651 = vld [vmem:[%s1 + $0x570] sm:$0xf]
  %v652 = vld [vmem:[%s1 + $0x574] sm:$0xf]
  %v653 = vld [vmem:[%s1 + $0x578] sm:$0xf]
  %v654 = vld [vmem:[%s1 + $0x57c] sm:$0xf]
  %v655 = vld [vmem:[%s1 + $0x580] sm:$0xf]
  %v656 = vld [vmem:[%s1 + $0x584] sm:$0xf]
  %v657 = vld [vmem:[%s1 + $0x588] sm:$0xf]
  %v658 = vld [vmem:[%s1 + $0x58c] sm:$0xf]
  %v659 = vld [vmem:[%s1 + $0x590] sm:$0xf]
  %v660 = vld [vmem:[%s1 + $0x594] sm:$0xf]
  %v661 = vld [vmem:[%s1 + $0x598] sm:$0xf]
  %v662 = vld [vmem:[%s1 + $0x59c] sm:$0xf]
  %v663 = vld [vmem:[%s1 + $0x5a0] sm:$0xf]
  %v664 = vld [vmem:[%s1 + $0x5a4] sm:$0xf]
  %v665 = vld [vmem:[%s1 + $0x5a8] sm:$0xf]
  %v666 = vld [vmem:[%s1 + $0x5ac] sm:$0xf]
  %v667 = vld [vmem:[%s1 + $0x5b0] sm:$0xf]
  %v668 = vld [vmem:[%s1 + $0x5b4] sm:$0xf]
  %v669 = vld [vmem:[%s1 + $0x5b8] sm:$0xf]
  %v670 = vld [vmem:[%s1 + $0x5bc] sm:$0xf]
  %v671 = vld [vmem:[%s1 + $0x5c0] sm:$0xf]
  %v672 = vld [vmem:[%s1 + $0x5c4] sm:$0xf]
  %v673 = vld [vmem:[%s1 + $0x5c8] sm:$0xf]
  %v674 = vld [vmem:[%s1 + $0x5cc] sm:$0xf]
  %v675 = vld [vmem:[%s1 + $0x5d0] sm:$0xf]
  %v676 = vld [vmem:[%s1 + $0x5d4] sm:$0xf]
  %v677 = vld [vmem:[%s1 + $0x5d8] sm:$0xf]
  %v678 = vld [vmem:[%s1 + $0x5dc] sm:$0xf]
  %v679 = vld [vmem:[%s1 + $0x5e0] sm:$0xf]
  %v680 = vld [vmem:[%s1 + $0x5e4] sm:$0xf]
  %v681 = vld [vmem:[%s1 + $0x5e8] sm:$0xf]
  %v682 = vld [vmem:[%s1 + $0x5ec] sm:$0xf]
  %v683 = vld [vmem:[%s1 + $0x5f0] sm:$0xf]
  %v684 = vld [vmem:[%s1 + $0x5f4] sm:$0xf]
  %v685 = vld [vmem:[%s1 + $0x5f8] sm:$0xf]
  %v686 = vld [vmem:[%s1 + $0x5fc] sm:$0xf]
  %v687 = vld [vmem:[%s1 + $0x600] sm:$0xf]
  %v688 = vld [vmem:[%s1 + $0x604] sm:$0xf]
  %v689 = vld [vmem:[%s1 + $0x608] sm:$0xf]
  %v690 = vld [vmem:[%s1 + $0x60c] sm:$0xf]
  %v691 = vld [vmem:[%s1 + $0x610] sm:$0xf]
  %v692 = vld [vmem:[%s1 + $0x614] sm:$0xf]
  %v693 = vld [vmem:[%s1 + $0x618] sm:$0xf]
  %v694 = vld [vmem:[%s1 + $0x61c] sm:$0xf]
  %v695 = vld [vmem:[%s1 + $0x620] sm:$0xf]
  %v696 = vld [vmem:[%s1 + $0x624] sm:$0xf]
  %v697 = vld [vmem:[%s1 + $0x628] sm:$0xf]
  %v698 = vld [vmem:[%s1 + $0x62c] sm:$0xf]
  %v699 = vld [vmem:[%s1 + $0x630] sm:$0xf]
  %v700 = vld [vmem:[%s1 + $0x634] sm:$0xf]
  %v701 = vld [vmem:[%s1 + $0x638] sm:$0xf]
  %v702 = vld [vmem:[%s1 + $0x63c] sm:$0xf]
  %v703 = vld [vmem:[%s1 + $0x640] sm:$0xf]
  %v704 = vld [vmem:[%s1 + $0x644] sm:$0xf]
  %v705 = vld [vmem:[%s1 + $0x648] sm:$0xf]
  %v706 = vld [vmem:[%s1 + $0x64c] sm:$0xf]
  %v707 = vld [vmem:[%s1 + $0x650] sm:$0xf]
  %v708 = vld [vmem:[%s1 + $0x654] sm:$0xf]
  %v709 = vld [vmem:[%s1 + $0x658] sm:$0xf]
  %v710 = vld [vmem:[%s1 + $0x65c] sm:$0xf]
  %v711 = vld [vmem:[%s1 + $0x660] sm:$0xf]
  %v712 = vld [vmem:[%s1 + $0x664] sm:$0xf]
  %v713 = vld [vmem:[%s1 + $0x668] sm:$0xf]
  %v714 = vld [vmem:[%s1 + $0x66c] sm:$0xf]
  %v715 = vld [vmem:[%s1 + $0x670] sm:$0xf]
  %v716 = vld [vmem:[%s1 + $0x674] sm:$0xf]
  %v717 = vld [vmem:[%s1 + $0x678] sm:$0xf]
  %v718 = vld [vmem:[%s1 + $0x67c] sm:$0xf]
  %v719 = vld [vmem:[%s1 + $0x680] sm:$0xf]
  %v720 = vld [vmem:[%s1 + $0x684] sm:$0xf]
  %v721 = vld [vmem:[%s1 + $0x688] sm:$0xf]
  %v722 = vld [vmem:[%s1 + $0x68c] sm:$0xf]
  %v723 = vld [vmem:[%s1 + $0x690] sm:$0xf]
  %v724 = vld [vmem:[%s1 + $0x694] sm:$0xf]
  %v725 = vld [vmem:[%s1 + $0x698] sm:$0xf]
  %v726 = vld [vmem:[%s1 + $0x69c] sm:$0xf]
  %v727 = vld [vmem:[%s1 + $0x6a0] sm:$0xf]
  %v728 = vld [vmem:[%s1 + $0x6a4] sm:$0xf]
  %v729 = vld [vmem:[%s1 + $0x6a8] sm:$0xf]
  %v730 = vld [vmem:[%s1 + $0x6ac] sm:$0xf]
  %v731 = vld [vmem:[%s1 + $0x6b0] sm:$0xf]
  %v732 = vld [vmem:[%s1 + $0x6b4] sm:$0xf]
  %v733 = vld [vmem:[%s1 + $0x6b8] sm:$0xf]
  %v734 = vld [vmem:[%s1 + $0x6bc] sm:$0xf]
  %v735 = vld [vmem:[%s1 + $0x6c0] sm:$0xf]
  %v736 = vld [vmem:[%s1 + $0x6c4] sm:$0xf]
  %v737 = vld [vmem:[%s1 + $0x6c8] sm:$0xf]
  %v738 = vld [vmem:[%s1 + $0x6cc] sm:$0xf]
  %v739 = vld [vmem:[%s1 + $0x6d0] sm:$0xf]
  %v740 = vld [vmem:[%s1 + $0x6d4] sm:$0xf]
  %v741 = vld [vmem:[%s1 + $0x6d8] sm:$0xf]
  %v742 = vld [vmem:[%s1 + $0x6dc] sm:$0xf]
  %v743 = vld [vmem:[%s1 + $0x6e0] sm:$0xf]
  %v744 = vld [vmem:[%s1 + $0x6e4] sm:$0xf]
  %v745 = vld [vmem:[%s1 + $0x6e8] sm:$0xf]
  %v746 = vld [vmem:[%s1 + $0x6ec] sm:$0xf]
  %v747 = vld [vmem:[%s1 + $0x6f0] sm:$0xf]
  %v748 = vld [vmem:[%s1 + $0x6f4] sm:$0xf]
  %v749 = vld [vmem:[%s1 + $0x6f8] sm:$0xf]
  %v750 = vld [vmem:[%s1 + $0x6fc] sm:$0xf]
  %v751 = vld [vmem:[%s1 + $0x700] sm:$0xf]
  %v752 = vld [vmem:[%s1 + $0x704] sm:$0xf]
  %v753 = vld [vmem:[%s1 + $0x708] sm:$0xf]
  %v754 = vld [vmem:[%s1 + $0x70c] sm:$0xf]
  %v755 = vld [vmem:[%s1 + $0x710] sm:$0xf]
  %v756 = vld [vmem:[%s1 + $0x714] sm:$0xf]
  %v757 = vld [vmem:[%s1 + $0x718] sm:$0xf]
  %v758 = vld [vmem:[%s1 + $0x71c] sm:$0xf]
  %v759 = vld [vmem:[%s1 + $0x720] sm:$0xf]
  %v760 = vld [vmem:[%s1 + $0x724] sm:$0xf]
  %v761 = vld [vmem:[%s1 + $0x728] sm:$0xf]
  %v762 = vld [vmem:[%s1 + $0x72c] sm:$0xf]
  %v763 = vld [vmem:[%s1 + $0x730] sm:$0xf]
  %v764 = vld [vmem:[%s1 + $0x734] sm:$0xf]
  %v765 = vld [vmem:[%s1 + $0x738] sm:$0xf]
  %v766 = vld [vmem:[%s1 + $0x73c] sm:$0xf]
  %v767 = vld [vmem:[%s1 + $0x740] sm:$0xf]
  %v768 = vld [vmem:[%s1 + $0x744] sm:$0xf]
  %v769 = vld [vmem:[%s1 + $0x748] sm:$0xf]
  %v770 = vld [vmem:[%s1 + $0x74c] sm:$0xf]
  %v771 = vld [vmem:[%s1 + $0x750] sm:$0xf]
  %v772 = vld [vmem:[%s1 + $0x754] sm:$0xf]
  %v773 = vld [vmem:[%s1 + $0x758] sm:$0xf]
  %v774 = vld [vmem:[%s1 + $0x75c] sm:$0xf]
  %v775 = vld [vmem:[%s1 + $0x760] sm:$0xf]
  %v776 = vld [vmem:[%s1 + $0x764] sm:$0xf]
  %v777 = vld [vmem:[%s1 + $0x768] sm:$0xf]
  %v778 = vld [vmem:[%s1 + $0x76c] sm:$0xf]
  %v779 = vld [vmem:[%s1 + $0x770] sm:$0xf]
  %v780 = vld [vmem:[%s1 + $0x774] sm:$0xf]
  %v781 = vld [vmem:[%s1 + $0x778] sm:$0xf]
  %v782 = vld [vmem:[%s1 + $0x77c] sm:$0xf]
  %v783 = vld [vmem:[%s1 + $0x780] sm:$0xf]
  %v784 = vld [vmem:[%s1 + $0x784] sm:$0xf]
  %v785 = vld [vmem:[%s1 + $0x788] sm:$0xf]
  %v786 = vld [vmem:[%s1 + $0x78c] sm:$0xf]
  %v787 = vld [vmem:[%s1 + $0x790] sm:$0xf]
  %v788 = vld [vmem:[%s1 + $0x794] sm:$0xf]
  %v789 = vld [vmem:[%s1 + $0x798] sm:$0xf]
  %v790 = vld [vmem:[%s1 + $0x79c] sm:$0xf]
  %v791 = vld [vmem:[%s1 + $0x7a0] sm:$0xf]
  %v792 = vld [vmem:[%s1 + $0x7a4] sm:$0xf]
  %v793 = vld [vmem:[%s1 + $0x7a8] sm:$0xf]
  %v794 = vld [vmem:[%s1 + $0x7ac] sm:$0xf]
  %v795 = vld [vmem:[%s1 + $0x7b0] sm:$0xf]
  %v796 = vld [vmem:[%s1 + $0x7b4] sm:$0xf]
  %v797 = vld [vmem:[%s1 + $0x7b8] sm:$0xf]
  %v798 = vld [vmem:[%s1 + $0x7bc] sm:$0xf]
  %v799 = vld [vmem:[%s1 + $0x7c0] sm:$0xf]
  %v800 = vld [vmem:[%s1 + $0x7c4] sm:$0xf]
  %v801 = vld [vmem:[%s1 + $0x7c8] sm:$0xf]
  %v802 = vld [vmem:[%s1 + $0x7cc] sm:$0xf]
  %v803 = vld [vmem:[%s1 + $0x7d0] sm:$0xf]
  %v804 = vld [vmem:[%s1 + $0x7d4] sm:$0xf]
  %v805 = vld [vmem:[%s1 + $0x7d8] sm:$0xf]
  %v806 = vld [vmem:[%s1 + $0x7dc] sm:$0xf]
  %v807 = vld [vmem:[%s1 + $0x7e0] sm:$0xf]
  %v808 = vld [vmem:[%s1 + $0x7e4] sm:$0xf]
  %v809 = vld [vmem:[%s1 + $0x7e8] sm:$0xf]
  %v810 = vld [vmem:[%s1 + $0x7ec] sm:$0xf]
  %v811 = vld [vmem:[%s1 + $0x7f0] sm:$0xf]
  %v812 = vld [vmem:[%s1 + $0x7f4] sm:$0xf]
  %v813 = vld [vmem:[%s1 + $0x7f8] sm:$0xf]
  %v814 = vld [vmem:[%s1 + $0x7fc] sm:$0xf]
  %v815 = vld [vmem:[%s1 + $0x800] sm:$0xf]
  %v816 = vld [vmem:[%s1 + $0x804] sm:$0xf]
  %v817 = vld [vmem:[%s1 + $0x808] sm:$0xf]
  %v818 = vld [vmem:[%s1 + $0x80c] sm:$0xf]
  %v819 = vld [vmem:[%s1 + $0x810] sm:$0xf]
  %v820 = vld [vmem:[%s1 + $0x814] sm:$0xf]
  %v821 = vld [vmem:[%s1 + $0x818] sm:$0xf]
  %v822 = vld [vmem:[%s1 + $0x81c] sm:$0xf]
  %v823 = vld [vmem:[%s1 + $0x820] sm:$0xf]
  %v824 = vld [vmem:[%s1 + $0x824] sm:$0xf]
  %v825 = vld [vmem:[%s1 + $0x828] sm:$0xf]
  %v826 = vld [vmem:[%s1 + $0x82c] sm:$0xf]
  %v827 = vld [vmem:[%s1 + $0x830] sm:$0xf]
  %v828 = vld [vmem:[%s1 + $0x834] sm:$0xf]
  %v829 = vld [vmem:[%s1 + $0x838] sm:$0xf]
  %v830 = vld [vmem:[%s1 + $0x83c] sm:$0xf]
  %v831 = vld [vmem:[%s1 + $0x840] sm:$0xf]
  %v832 = vld [vmem:[%s1 + $0x844] sm:$0xf]
  %v833 = vld [vmem:[%s1 + $0x848] sm:$0xf]
  %v834 = vld [vmem:[%s1 + $0x84c] sm:$0xf]
  %v835 = vld [vmem:[%s1 + $0x850] sm:$0xf]
  %v836 = vld [vmem:[%s1 + $0x854] sm:$0xf]
  %v837 = vld [vmem:[%s1 + $0x858] sm:$0xf]
  %v838 = vld [vmem:[%s1 + $0x85c] sm:$0xf]
  %v839 = vld [vmem:[%s1 + $0x860] sm:$0xf]
  %v840 = vld [vmem:[%s1 + $0x864] sm:$0xf]
  %v841 = vld [vmem:[%s1 + $0x868] sm:$0xf]
  %v842 = vld [vmem:[%s1 + $0x86c] sm:$0xf]
  %v843 = vld [vmem:[%s1 + $0x870] sm:$0xf]
  %v844 = vld [vmem:[%s1 + $0x874] sm:$0xf]
  %v845 = vld [vmem:[%s1 + $0x878] sm:$0xf]
  %v846 = vld [vmem:[%s1 + $0x87c] sm:$0xf]
  %v847 = vld [vmem:[%s1 + $0x880] sm:$0xf]
  %v848 = vld [vmem:[%s1 + $0x884] sm:$0xf]
  %v849 = vld [vmem:[%s1 + $0x888] sm:$0xf]
  %v850 = vld [vmem:[%s1 + $0x88c] sm:$0xf]
  %v851 = vld [vmem:[%s1 + $0x890] sm:$0xf]
  %v852 = vld [vmem:[%s1 + $0x894] sm:$0xf]
  %v853 = vld [vmem:[%s1 + $0x898] sm:$0xf]
  %v854 = vld [vmem:[%s1 + $0x89c] sm:$0xf]
  %v855 = vld [vmem:[%s1 + $0x8a0] sm:$0xf]
  %v856 = vld [vmem:[%s1 + $0x8a4] sm:$0xf]
  %v857 = vld [vmem:[%s1 + $0x8a8] sm:$0xf]
  %v858 = vld [vmem:[%s1 + $0x8ac] sm:$0xf]
  %v859 = vld [vmem:[%s1 + $0x8b0] sm:$0xf]
  %v860 = vld [vmem:[%s1 + $0x8b4] sm:$0xf]
  %v861 = vld [vmem:[%s1 + $0x8b8] sm:$0xf]
  %v862 = vld [vmem:[%s1 + $0x8bc] sm:$0xf]
  %v863 = vld [vmem:[%s1 + $0x8c0] sm:$0xf]
  %v864 = vld [vmem:[%s1 + $0x8c4] sm:$0xf]
  %v865 = vld [vmem:[%s1 + $0x8c8] sm:$0xf]
  %v866 = vld [vmem:[%s1 + $0x8cc] sm:$0xf]
  %v867 = vld [vmem:[%s1 + $0x8d0] sm:$0xf]
  %v868 = vld [vmem:[%s1 + $0x8d4] sm:$0xf]
  %v869 = vld [vmem:[%s1 + $0x8d8] sm:$0xf]
  %v870 = vld [vmem:[%s1 + $0x8dc] sm:$0xf]
  %v871 = vld [vmem:[%s1 + $0x8e0] sm:$0xf]
  %v872 = vld [vmem:[%s1 + $0x8e4] sm:$0xf]
  %v873 = vld [vmem:[%s1 + $0x8e8] sm:$0xf]
  %v874 = vld [vmem:[%s1 + $0x8ec] sm:$0xf]
  %v875 = vld [vmem:[%s1 + $0x8f0] sm:$0xf]
  %v876 = vld [vmem:[%s1 + $0x8f4] sm:$0xf]
  %v877 = vld [vmem:[%s1 + $0x8f8] sm:$0xf]
  %v878 = vld [vmem:[%s1 + $0x8fc] sm:$0xf]
  %v879 = vld [vmem:[%s2] sm:$0x1]
  %v881 = vlaneseq
  %v882 = vshrl.u32 %v881, 7
  %v883 = vsub.s32 0, %v882
  %v884 = vrot.slane %v879, %v883
  %v1174 = vunpack.c.l.b16 %v15
  %v1175 = vunpack.c.h.b16 %v15
  %v1176 = vunpack.c.l.b16 %v16
  %v1177 = vunpack.c.h.b16 %v16
  %v1178 = vunpack.c.l.b16 %v17
  %v1179 = vunpack.c.h.b16 %v17
  %v1180 = vunpack.c.l.b16 %v18
  %v1181 = vunpack.c.h.b16 %v18
  %v1182 = vunpack.c.l.b16 %v19
  %v1183 = vunpack.c.h.b16 %v19
  %v1184 = vunpack.c.l.b16 %v20
  %v1185 = vunpack.c.h.b16 %v20
  %v1186 = vunpack.c.l.b16 %v21
  %v1187 = vunpack.c.h.b16 %v21
  %v1188 = vunpack.c.l.b16 %v22
  %v1189 = vunpack.c.h.b16 %v22
  %v1190 = vunpack.c.l.b16 %v23
  %v1191 = vunpack.c.h.b16 %v23
  %v1192 = vunpack.c.l.b16 %v24
  %v1193 = vunpack.c.h.b16 %v24
  %v1194 = vunpack.c.l.b16 %v25
  %v1195 = vunpack.c.h.b16 %v25
  %v1196 = vunpack.c.l.b16 %v26
  %v1197 = vunpack.c.h.b16 %v26
  %v1198 = vunpack.c.l.b16 %v27
  %v1199 = vunpack.c.h.b16 %v27
  %v1200 = vunpack.c.l.b16 %v28
  %v1201 = vunpack.c.h.b16 %v28
  %v1202 = vunpack.c.l.b16 %v29
  %v1203 = vunpack.c.h.b16 %v29
  %v1204 = vunpack.c.l.b16 %v30
  %v1205 = vunpack.c.h.b16 %v30
  %v1206 = vunpack.c.l.b16 %v31
  %v1207 = vunpack.c.h.b16 %v31
  %v1208 = vunpack.c.l.b16 %v32
  %v1209 = vunpack.c.h.b16 %v32
  %v1210 = vunpack.c.l.b16 %v33
  %v1211 = vunpack.c.h.b16 %v33
  %v1212 = vunpack.c.l.b16 %v34
  %v1213 = vunpack.c.h.b16 %v34
  %v1214 = vunpack.c.l.b16 %v35
  %v1215 = vunpack.c.h.b16 %v35
  %v1216 = vunpack.c.l.b16 %v36
  %v1217 = vunpack.c.h.b16 %v36
  %v1218 = vunpack.c.l.b16 %v37
  %v1219 = vunpack.c.h.b16 %v37
  %v1220 = vunpack.c.l.b16 %v38
  %v1221 = vunpack.c.h.b16 %v38
  %v1222 = vunpack.c.l.b16 %v39
  %v1223 = vunpack.c.h.b16 %v39
  %v1224 = vunpack.c.l.b16 %v40
  %v1225 = vunpack.c.h.b16 %v40
  %v1226 = vunpack.c.l.b16 %v41
  %v1227 = vunpack.c.h.b16 %v41
  %v1228 = vunpack.c.l.b16 %v42
  %v1229 = vunpack.c.h.b16 %v42
  %v1230 = vunpack.c.l.b16 %v43
  %v1231 = vunpack.c.h.b16 %v43
  %v1232 = vunpack.c.l.b16 %v44
  %v1233 = vunpack.c.h.b16 %v44
  %v1234 = vunpack.c.l.b16 %v45
  %v1235 = vunpack.c.h.b16 %v45
  %v1236 = vunpack.c.l.b16 %v46
  %v1237 = vunpack.c.h.b16 %v46
  %v1238 = vunpack.c.l.b16 %v47
  %v1239 = vunpack.c.h.b16 %v47
  %v1240 = vunpack.c.l.b16 %v48
  %v1241 = vunpack.c.h.b16 %v48
  %v1242 = vunpack.c.l.b16 %v49
  %v1243 = vunpack.c.h.b16 %v49
  %v1244 = vunpack.c.l.b16 %v50
  %v1245 = vunpack.c.h.b16 %v50
  %v1246 = vunpack.c.l.b16 %v51
  %v1247 = vunpack.c.h.b16 %v51
  %v1248 = vunpack.c.l.b16 %v52
  %v1249 = vunpack.c.h.b16 %v52
  %v1250 = vunpack.c.l.b16 %v53
  %v1251 = vunpack.c.h.b16 %v53
  %v1252 = vunpack.c.l.b16 %v54
  %v1253 = vunpack.c.h.b16 %v54
  %v1254 = vunpack.c.l.b16 %v55
  %v1255 = vunpack.c.h.b16 %v55
  %v1256 = vunpack.c.l.b16 %v56
  %v1257 = vunpack.c.h.b16 %v56
  %v1258 = vunpack.c.l.b16 %v57
  %v1259 = vunpack.c.h.b16 %v57
  %v1260 = vunpack.c.l.b16 %v58
  %v1261 = vunpack.c.h.b16 %v58
  %v1262 = vunpack.c.l.b16 %v59
  %v1263 = vunpack.c.h.b16 %v59
  %v1264 = vunpack.c.l.b16 %v60
  %v1265 = vunpack.c.h.b16 %v60
  %v1266 = vunpack.c.l.b16 %v61
  %v1267 = vunpack.c.h.b16 %v61
  %v1268 = vunpack.c.l.b16 %v62
  %v1269 = vunpack.c.h.b16 %v62
  %v1270 = vunpack.c.l.b16 %v63
  %v1271 = vunpack.c.h.b16 %v63
  %v1272 = vunpack.c.l.b16 %v64
  %v1273 = vunpack.c.h.b16 %v64
  %v1274 = vunpack.c.l.b16 %v65
  %v1275 = vunpack.c.h.b16 %v65
  %v1276 = vunpack.c.l.b16 %v66
  %v1277 = vunpack.c.h.b16 %v66
  %v1278 = vunpack.c.l.b16 %v67
  %v1279 = vunpack.c.h.b16 %v67
  %v1280 = vunpack.c.l.b16 %v68
  %v1281 = vunpack.c.h.b16 %v68
  %v1282 = vunpack.c.l.b16 %v69
  %v1283 = vunpack.c.h.b16 %v69
  %v1284 = vunpack.c.l.b16 %v70
  %v1285 = vunpack.c.h.b16 %v70
  %v1286 = vunpack.c.l.b16 %v71
  %v1287 = vunpack.c.h.b16 %v71
  %v1288 = vunpack.c.l.b16 %v72
  %v1289 = vunpack.c.h.b16 %v72
  %v1290 = vunpack.c.l.b16 %v73
  %v1291 = vunpack.c.h.b16 %v73
  %v1292 = vunpack.c.l.b16 %v74
  %v1293 = vunpack.c.h.b16 %v74
  %v1294 = vunpack.c.l.b16 %v75
  %v1295 = vunpack.c.h.b16 %v75
  %v1296 = vunpack.c.l.b16 %v76
  %v1297 = vunpack.c.h.b16 %v76
  %v1298 = vunpack.c.l.b16 %v77
  %v1299 = vunpack.c.h.b16 %v77
  %v1300 = vunpack.c.l.b16 %v78
  %v1301 = vunpack.c.h.b16 %v78
  %v1302 = vunpack.c.l.b16 %v79
  %v1303 = vunpack.c.h.b16 %v79
  %v1304 = vunpack.c.l.b16 %v80
  %v1305 = vunpack.c.h.b16 %v80
  %v1306 = vunpack.c.l.b16 %v81
  %v1307 = vunpack.c.h.b16 %v81
  %v1308 = vunpack.c.l.b16 %v82
  %v1309 = vunpack.c.h.b16 %v82
  %v1310 = vunpack.c.l.b16 %v83
  %v1311 = vunpack.c.h.b16 %v83
  %v1312 = vunpack.c.l.b16 %v84
  %v1313 = vunpack.c.h.b16 %v84
  %v1314 = vunpack.c.l.b16 %v85
  %v1315 = vunpack.c.h.b16 %v85
  %v1316 = vunpack.c.l.b16 %v86
  %v1317 = vunpack.c.h.b16 %v86
  %v1318 = vunpack.c.l.b16 %v87
  %v1319 = vunpack.c.h.b16 %v87
  %v1320 = vunpack.c.l.b16 %v88
  %v1321 = vunpack.c.h.b16 %v88
  %v1322 = vunpack.c.l.b16 %v89
  %v1323 = vunpack.c.h.b16 %v89
  %v1324 = vunpack.c.l.b16 %v90
  %v1325 = vunpack.c.h.b16 %v90
  %v1326 = vunpack.c.l.b16 %v91
  %v1327 = vunpack.c.h.b16 %v91
  %v1328 = vunpack.c.l.b16 %v92
  %v1329 = vunpack.c.h.b16 %v92
  %v1330 = vunpack.c.l.b16 %v93
  %v1331 = vunpack.c.h.b16 %v93
  %v1332 = vunpack.c.l.b16 %v94
  %v1333 = vunpack.c.h.b16 %v94
  %v1334 = vunpack.c.l.b16 %v95
  %v1335 = vunpack.c.h.b16 %v95
  %v1336 = vunpack.c.l.b16 %v96
  %v1337 = vunpack.c.h.b16 %v96
  %v1338 = vunpack.c.l.b16 %v97
  %v1339 = vunpack.c.h.b16 %v97
  %v1340 = vunpack.c.l.b16 %v98
  %v1341 = vunpack.c.h.b16 %v98
  %v1342 = vunpack.c.l.b16 %v99
  %v1343 = vunpack.c.h.b16 %v99
  %v1344 = vunpack.c.l.b16 %v100
  %v1345 = vunpack.c.h.b16 %v100
  %v1346 = vunpack.c.l.b16 %v101
  %v1347 = vunpack.c.h.b16 %v101
  %v1348 = vunpack.c.l.b16 %v102
  %v1349 = vunpack.c.h.b16 %v102
  %v1350 = vunpack.c.l.b16 %v103
  %v1351 = vunpack.c.h.b16 %v103
  %v1352 = vunpack.c.l.b16 %v104
  %v1353 = vunpack.c.h.b16 %v104
  %v1354 = vunpack.c.l.b16 %v105
  %v1355 = vunpack.c.h.b16 %v105
  %v1356 = vunpack.c.l.b16 %v106
  %v1357 = vunpack.c.h.b16 %v106
  %v1358 = vunpack.c.l.b16 %v107
  %v1359 = vunpack.c.h.b16 %v107
  %v1360 = vunpack.c.l.b16 %v108
  %v1361 = vunpack.c.h.b16 %v108
  %v1362 = vunpack.c.l.b16 %v109
  %v1363 = vunpack.c.h.b16 %v109
  %v1364 = vunpack.c.l.b16 %v110
  %v1365 = vunpack.c.h.b16 %v110
  %v1366 = vunpack.c.l.b16 %v111
  %v1367 = vunpack.c.h.b16 %v111
  %v1368 = vunpack.c.l.b16 %v112
  %v1369 = vunpack.c.h.b16 %v112
  %v1370 = vunpack.c.l.b16 %v113
  %v1371 = vunpack.c.h.b16 %v113
  %v1372 = vunpack.c.l.b16 %v114
  %v1373 = vunpack.c.h.b16 %v114
  %v1374 = vunpack.c.l.b16 %v115
  %v1375 = vunpack.c.h.b16 %v115
  %v1376 = vunpack.c.l.b16 %v116
  %v1377 = vunpack.c.h.b16 %v116
  %v1378 = vunpack.c.l.b16 %v117
  %v1379 = vunpack.c.h.b16 %v117
  %v1380 = vunpack.c.l.b16 %v118
  %v1381 = vunpack.c.h.b16 %v118
  %v1382 = vunpack.c.l.b16 %v119
  %v1383 = vunpack.c.h.b16 %v119
  %v1384 = vunpack.c.l.b16 %v120
  %v1385 = vunpack.c.h.b16 %v120
  %v1386 = vunpack.c.l.b16 %v121
  %v1387 = vunpack.c.h.b16 %v121
  %v1388 = vunpack.c.l.b16 %v122
  %v1389 = vunpack.c.h.b16 %v122
  %v1390 = vunpack.c.l.b16 %v123
  %v1391 = vunpack.c.h.b16 %v123
  %v1392 = vunpack.c.l.b16 %v124
  %v1393 = vunpack.c.h.b16 %v124
  %v1394 = vunpack.c.l.b16 %v125
  %v1395 = vunpack.c.h.b16 %v125
  %v1396 = vunpack.c.l.b16 %v126
  %v1397 = vunpack.c.h.b16 %v126
  %v1398 = vunpack.c.l.b16 %v127
  %v1399 = vunpack.c.h.b16 %v127
  %v1400 = vunpack.c.l.b16 %v128
  %v1401 = vunpack.c.h.b16 %v128
  %v1402 = vunpack.c.l.b16 %v129
  %v1403 = vunpack.c.h.b16 %v129
  %v1404 = vunpack.c.l.b16 %v130
  %v1405 = vunpack.c.h.b16 %v130
  %v1406 = vunpack.c.l.b16 %v131
  %v1407 = vunpack.c.h.b16 %v131
  %v1408 = vunpack.c.l.b16 %v132
  %v1409 = vunpack.c.h.b16 %v132
  %v1410 = vunpack.c.l.b16 %v133
  %v1411 = vunpack.c.h.b16 %v133
  %v1412 = vunpack.c.l.b16 %v134
  %v1413 = vunpack.c.h.b16 %v134
  %v1414 = vunpack.c.l.b16 %v135
  %v1415 = vunpack.c.h.b16 %v135
  %v1416 = vunpack.c.l.b16 %v136
  %v1417 = vunpack.c.h.b16 %v136
  %v1418 = vunpack.c.l.b16 %v137
  %v1419 = vunpack.c.h.b16 %v137
  %v1420 = vunpack.c.l.b16 %v138
  %v1421 = vunpack.c.h.b16 %v138
  %v1422 = vunpack.c.l.b16 %v139
  %v1423 = vunpack.c.h.b16 %v139
  %v1424 = vunpack.c.l.b16 %v140
  %v1425 = vunpack.c.h.b16 %v140
  %v1426 = vunpack.c.l.b16 %v141
  %v1427 = vunpack.c.h.b16 %v141
  %v1428 = vunpack.c.l.b16 %v142
  %v1429 = vunpack.c.h.b16 %v142
  %v1430 = vunpack.c.l.b16 %v143
  %v1431 = vunpack.c.h.b16 %v143
  %v1432 = vunpack.c.l.b16 %v144
  %v1433 = vunpack.c.h.b16 %v144
  %v1434 = vunpack.c.l.b16 %v145
  %v1435 = vunpack.c.h.b16 %v145
  %v1436 = vunpack.c.l.b16 %v146
  %v1437 = vunpack.c.h.b16 %v146
  %v1438 = vunpack.c.l.b16 %v147
  %v1439 = vunpack.c.h.b16 %v147
  %v1440 = vunpack.c.l.b16 %v148
  %v1441 = vunpack.c.h.b16 %v148
  %v1442 = vunpack.c.l.b16 %v149
  %v1443 = vunpack.c.h.b16 %v149
  %v1444 = vunpack.c.l.b16 %v150
  %v1445 = vunpack.c.h.b16 %v150
  %v1446 = vunpack.c.l.b16 %v151
  %v1447 = vunpack.c.h.b16 %v151
  %v1448 = vunpack.c.l.b16 %v152
  %v1449 = vunpack.c.h.b16 %v152
  %v1450 = vunpack.c.l.b16 %v153
  %v1451 = vunpack.c.h.b16 %v153
  %v1452 = vunpack.c.l.b16 %v154
  %v1453 = vunpack.c.h.b16 %v154
  %v1454 = vunpack.c.l.b16 %v155
  %v1455 = vunpack.c.h.b16 %v155
  %v1456 = vunpack.c.l.b16 %v156
  %v1457 = vunpack.c.h.b16 %v156
  %v1458 = vunpack.c.l.b16 %v157
  %v1459 = vunpack.c.h.b16 %v157
  %v1460 = vunpack.c.l.b16 %v158
  %v1461 = vunpack.c.h.b16 %v158
  %v1462 = vunpack.c.l.b16 %v159
  %v1463 = vunpack.c.h.b16 %v159
  %v1464 = vunpack.c.l.b16 %v160
  %v1465 = vunpack.c.h.b16 %v160
  %v1466 = vunpack.c.l.b16 %v161
  %v1467 = vunpack.c.h.b16 %v161
  %v1468 = vunpack.c.l.b16 %v162
  %v1469 = vunpack.c.h.b16 %v162
  %v1470 = vunpack.c.l.b16 %v163
  %v1471 = vunpack.c.h.b16 %v163
  %v1472 = vunpack.c.l.b16 %v164
  %v1473 = vunpack.c.h.b16 %v164
  %v1474 = vunpack.c.l.b16 %v165
  %v1475 = vunpack.c.h.b16 %v165
  %v1476 = vunpack.c.l.b16 %v166
  %v1477 = vunpack.c.h.b16 %v166
  %v1478 = vunpack.c.l.b16 %v167
  %v1479 = vunpack.c.h.b16 %v167
  %v1480 = vunpack.c.l.b16 %v168
  %v1481 = vunpack.c.h.b16 %v168
  %v1482 = vunpack.c.l.b16 %v169
  %v1483 = vunpack.c.h.b16 %v169
  %v1484 = vunpack.c.l.b16 %v170
  %v1485 = vunpack.c.h.b16 %v170
  %v1486 = vunpack.c.l.b16 %v171
  %v1487 = vunpack.c.h.b16 %v171
  %v1488 = vunpack.c.l.b16 %v172
  %v1489 = vunpack.c.h.b16 %v172
  %v1490 = vunpack.c.l.b16 %v173
  %v1491 = vunpack.c.h.b16 %v173
  %v1492 = vunpack.c.l.b16 %v174
  %v1493 = vunpack.c.h.b16 %v174
  %v1494 = vunpack.c.l.b16 %v175
  %v1495 = vunpack.c.h.b16 %v175
  %v1496 = vunpack.c.l.b16 %v176
  %v1497 = vunpack.c.h.b16 %v176
  %v1498 = vunpack.c.l.b16 %v177
  %v1499 = vunpack.c.h.b16 %v177
  %v1500 = vunpack.c.l.b16 %v178
  %v1501 = vunpack.c.h.b16 %v178
  %v1502 = vunpack.c.l.b16 %v179
  %v1503 = vunpack.c.h.b16 %v179
  %v1504 = vunpack.c.l.b16 %v180
  %v1505 = vunpack.c.h.b16 %v180
  %v1506 = vunpack.c.l.b16 %v181
  %v1507 = vunpack.c.h.b16 %v181
  %v1508 = vunpack.c.l.b16 %v182
  %v1509 = vunpack.c.h.b16 %v182
  %v1510 = vunpack.c.l.b16 %v183
  %v1511 = vunpack.c.h.b16 %v183
  %v1512 = vunpack.c.l.b16 %v184
  %v1513 = vunpack.c.h.b16 %v184
  %v1514 = vunpack.c.l.b16 %v185
  %v1515 = vunpack.c.h.b16 %v185
  %v1516 = vunpack.c.l.b16 %v186
  %v1517 = vunpack.c.h.b16 %v186
  %v1518 = vunpack.c.l.b16 %v187
  %v1519 = vunpack.c.h.b16 %v187
  %v1520 = vunpack.c.l.b16 %v188
  %v1521 = vunpack.c.h.b16 %v188
  %v1522 = vunpack.c.l.b16 %v189
  %v1523 = vunpack.c.h.b16 %v189
  %v1524 = vunpack.c.l.b16 %v190
  %v1525 = vunpack.c.h.b16 %v190
  %v1526 = vunpack.c.l.b16 %v191
  %v1527 = vunpack.c.h.b16 %v191
  %v1528 = vunpack.c.l.b16 %v192
  %v1529 = vunpack.c.h.b16 %v192
  %v1530 = vunpack.c.l.b16 %v193
  %v1531 = vunpack.c.h.b16 %v193
  %v1532 = vunpack.c.l.b16 %v194
  %v1533 = vunpack.c.h.b16 %v194
  %v1534 = vunpack.c.l.b16 %v195
  %v1535 = vunpack.c.h.b16 %v195
  %v1536 = vunpack.c.l.b16 %v196
  %v1537 = vunpack.c.h.b16 %v196
  %v1538 = vunpack.c.l.b16 %v197
  %v1539 = vunpack.c.h.b16 %v197
  %v1540 = vunpack.c.l.b16 %v198
  %v1541 = vunpack.c.h.b16 %v198
  %v1542 = vunpack.c.l.b16 %v199
  %v1543 = vunpack.c.h.b16 %v199
  %v1544 = vunpack.c.l.b16 %v200
  %v1545 = vunpack.c.h.b16 %v200
  %v1546 = vunpack.c.l.b16 %v201
  %v1547 = vunpack.c.h.b16 %v201
  %v1548 = vunpack.c.l.b16 %v202
  %v1549 = vunpack.c.h.b16 %v202
  %v1550 = vunpack.c.l.b16 %v203
  %v1551 = vunpack.c.h.b16 %v203
  %v1552 = vunpack.c.l.b16 %v204
  %v1553 = vunpack.c.h.b16 %v204
  %v1554 = vunpack.c.l.b16 %v205
  %v1555 = vunpack.c.h.b16 %v205
  %v1556 = vunpack.c.l.b16 %v206
  %v1557 = vunpack.c.h.b16 %v206
  %v1558 = vunpack.c.l.b16 %v207
  %v1559 = vunpack.c.h.b16 %v207
  %v1560 = vunpack.c.l.b16 %v208
  %v1561 = vunpack.c.h.b16 %v208
  %v1562 = vunpack.c.l.b16 %v209
  %v1563 = vunpack.c.h.b16 %v209
  %v1564 = vunpack.c.l.b16 %v210
  %v1565 = vunpack.c.h.b16 %v210
  %v1566 = vunpack.c.l.b16 %v211
  %v1567 = vunpack.c.h.b16 %v211
  %v1568 = vunpack.c.l.b16 %v212
  %v1569 = vunpack.c.h.b16 %v212
  %v1570 = vunpack.c.l.b16 %v213
  %v1571 = vunpack.c.h.b16 %v213
  %v1572 = vunpack.c.l.b16 %v214
  %v1573 = vunpack.c.h.b16 %v214
  %v1574 = vunpack.c.l.b16 %v215
  %v1575 = vunpack.c.h.b16 %v215
  %v1576 = vunpack.c.l.b16 %v216
  %v1577 = vunpack.c.h.b16 %v216
  %v1578 = vunpack.c.l.b16 %v217
  %v1579 = vunpack.c.h.b16 %v217
  %v1580 = vunpack.c.l.b16 %v218
  %v1581 = vunpack.c.h.b16 %v218
  %v1582 = vunpack.c.l.b16 %v219
  %v1583 = vunpack.c.h.b16 %v219
  %v1584 = vunpack.c.l.b16 %v220
  %v1585 = vunpack.c.h.b16 %v220
  %v1586 = vunpack.c.l.b16 %v221
  %v1587 = vunpack.c.h.b16 %v221
  %v1588 = vunpack.c.l.b16 %v222
  %v1589 = vunpack.c.h.b16 %v222
  %v1590 = vunpack.c.l.b16 %v223
  %v1591 = vunpack.c.h.b16 %v223
  %v1592 = vunpack.c.l.b16 %v224
  %v1593 = vunpack.c.h.b16 %v224
  %v1594 = vunpack.c.l.b16 %v225
  %v1595 = vunpack.c.h.b16 %v225
  %v1596 = vunpack.c.l.b16 %v226
  %v1597 = vunpack.c.h.b16 %v226
  %v1598 = vunpack.c.l.b16 %v227
  %v1599 = vunpack.c.h.b16 %v227
  %v1600 = vunpack.c.l.b16 %v228
  %v1601 = vunpack.c.h.b16 %v228
  %v1602 = vunpack.c.l.b16 %v229
  %v1603 = vunpack.c.h.b16 %v229
  %v1604 = vunpack.c.l.b16 %v230
  %v1605 = vunpack.c.h.b16 %v230
  %v1606 = vunpack.c.l.b16 %v231
  %v1607 = vunpack.c.h.b16 %v231
  %v1608 = vunpack.c.l.b16 %v232
  %v1609 = vunpack.c.h.b16 %v232
  %v1610 = vunpack.c.l.b16 %v233
  %v1611 = vunpack.c.h.b16 %v233
  %v1612 = vunpack.c.l.b16 %v234
  %v1613 = vunpack.c.h.b16 %v234
  %v1614 = vunpack.c.l.b16 %v235
  %v1615 = vunpack.c.h.b16 %v235
  %v1616 = vunpack.c.l.b16 %v236
  %v1617 = vunpack.c.h.b16 %v236
  %v1618 = vunpack.c.l.b16 %v237
  %v1619 = vunpack.c.h.b16 %v237
  %v1620 = vunpack.c.l.b16 %v238
  %v1621 = vunpack.c.h.b16 %v238
  %v1622 = vunpack.c.l.b16 %v239
  %v1623 = vunpack.c.h.b16 %v239
  %v1624 = vunpack.c.l.b16 %v240
  %v1625 = vunpack.c.h.b16 %v240
  %v1626 = vunpack.c.l.b16 %v241
  %v1627 = vunpack.c.h.b16 %v241
  %v1628 = vunpack.c.l.b16 %v242
  %v1629 = vunpack.c.h.b16 %v242
  %v1630 = vunpack.c.l.b16 %v243
  %v1631 = vunpack.c.h.b16 %v243
  %v1632 = vunpack.c.l.b16 %v244
  %v1633 = vunpack.c.h.b16 %v244
  %v1634 = vunpack.c.l.b16 %v245
  %v1635 = vunpack.c.h.b16 %v245
  %v1636 = vunpack.c.l.b16 %v246
  %v1637 = vunpack.c.h.b16 %v246
  %v1638 = vunpack.c.l.b16 %v247
  %v1639 = vunpack.c.h.b16 %v247
  %v1640 = vunpack.c.l.b16 %v248
  %v1641 = vunpack.c.h.b16 %v248
  %v1642 = vunpack.c.l.b16 %v249
  %v1643 = vunpack.c.h.b16 %v249
  %v1644 = vunpack.c.l.b16 %v250
  %v1645 = vunpack.c.h.b16 %v250
  %v1646 = vunpack.c.l.b16 %v251
  %v1647 = vunpack.c.h.b16 %v251
  %v1648 = vunpack.c.l.b16 %v252
  %v1649 = vunpack.c.h.b16 %v252
  %v1650 = vunpack.c.l.b16 %v253
  %v1651 = vunpack.c.h.b16 %v253
  %v1652 = vunpack.c.l.b16 %v254
  %v1653 = vunpack.c.h.b16 %v254
  %v1654 = vunpack.c.l.b16 %v255
  %v1655 = vunpack.c.h.b16 %v255
  %v1656 = vunpack.c.l.b16 %v256
  %v1657 = vunpack.c.h.b16 %v256
  %v1658 = vunpack.c.l.b16 %v257
  %v1659 = vunpack.c.h.b16 %v257
  %v1660 = vunpack.c.l.b16 %v258
  %v1661 = vunpack.c.h.b16 %v258
  %v1662 = vunpack.c.l.b16 %v259
  %v1663 = vunpack.c.h.b16 %v259
  %v1664 = vunpack.c.l.b16 %v260
  %v1665 = vunpack.c.h.b16 %v260
  %v1666 = vunpack.c.l.b16 %v261
  %v1667 = vunpack.c.h.b16 %v261
  %v1668 = vunpack.c.l.b16 %v262
  %v1669 = vunpack.c.h.b16 %v262
  %v1670 = vunpack.c.l.b16 %v263
  %v1671 = vunpack.c.h.b16 %v263
  %v1672 = vunpack.c.l.b16 %v264
  %v1673 = vunpack.c.h.b16 %v264
  %v1674 = vunpack.c.l.b16 %v265
  %v1675 = vunpack.c.h.b16 %v265
  %v1676 = vunpack.c.l.b16 %v266
  %v1677 = vunpack.c.h.b16 %v266
  %v1678 = vunpack.c.l.b16 %v267
  %v1679 = vunpack.c.h.b16 %v267
  %v1680 = vunpack.c.l.b16 %v268
  %v1681 = vunpack.c.h.b16 %v268
  %v1682 = vunpack.c.l.b16 %v269
  %v1683 = vunpack.c.h.b16 %v269
  %v1684 = vunpack.c.l.b16 %v270
  %v1685 = vunpack.c.h.b16 %v270
  %v1686 = vunpack.c.l.b16 %v271
  %v1687 = vunpack.c.h.b16 %v271
  %v1688 = vunpack.c.l.b16 %v272
  %v1689 = vunpack.c.h.b16 %v272
  %v1690 = vunpack.c.l.b16 %v273
  %v1691 = vunpack.c.h.b16 %v273
  %v1692 = vunpack.c.l.b16 %v274
  %v1693 = vunpack.c.h.b16 %v274
  %v1694 = vunpack.c.l.b16 %v275
  %v1695 = vunpack.c.h.b16 %v275
  %v1696 = vunpack.c.l.b16 %v276
  %v1697 = vunpack.c.h.b16 %v276
  %v1698 = vunpack.c.l.b16 %v277
  %v1699 = vunpack.c.h.b16 %v277
  %v1700 = vunpack.c.l.b16 %v278
  %v1701 = vunpack.c.h.b16 %v278
  %v1702 = vunpack.c.l.b16 %v279
  %v1703 = vunpack.c.h.b16 %v279
  %v1704 = vunpack.c.l.b16 %v280
  %v1705 = vunpack.c.h.b16 %v280
  %v1706 = vunpack.c.l.b16 %v281
  %v1707 = vunpack.c.h.b16 %v281
  %v1708 = vunpack.c.l.b16 %v282
  %v1709 = vunpack.c.h.b16 %v282
  %v1710 = vunpack.c.l.b16 %v283
  %v1711 = vunpack.c.h.b16 %v283
  %v1712 = vunpack.c.l.b16 %v284
  %v1713 = vunpack.c.h.b16 %v284
  %v1714 = vunpack.c.l.b16 %v285
  %v1715 = vunpack.c.h.b16 %v285
  %v1716 = vunpack.c.l.b16 %v286
  %v1717 = vunpack.c.h.b16 %v286
  %v1718 = vunpack.c.l.b16 %v287
  %v1719 = vunpack.c.h.b16 %v287
  %v1720 = vunpack.c.l.b16 %v288
  %v1721 = vunpack.c.h.b16 %v288
  %v1722 = vunpack.c.l.b16 %v289
  %v1723 = vunpack.c.h.b16 %v289
  %v1724 = vunpack.c.l.b16 %v290
  %v1725 = vunpack.c.h.b16 %v290
  %v1726 = vunpack.c.l.b16 %v291
  %v1727 = vunpack.c.h.b16 %v291
  %v1728 = vunpack.c.l.b16 %v292
  %v1729 = vunpack.c.h.b16 %v292
  %v1730 = vunpack.c.l.b16 %v293
  %v1731 = vunpack.c.h.b16 %v293
  %v1732 = vunpack.c.l.b16 %v294
  %v1733 = vunpack.c.h.b16 %v294
  %v1734 = vunpack.c.l.b16 %v295
  %v1735 = vunpack.c.h.b16 %v295
  %v1736 = vunpack.c.l.b16 %v296
  %v1737 = vunpack.c.h.b16 %v296
  %v1738 = vunpack.c.l.b16 %v297
  %v1739 = vunpack.c.h.b16 %v297
  %v1740 = vunpack.c.l.b16 %v298
  %v1741 = vunpack.c.h.b16 %v298
  %v1742 = vunpack.c.l.b16 %v299
  %v1743 = vunpack.c.h.b16 %v299
  %v1744 = vunpack.c.l.b16 %v300
  %v1745 = vunpack.c.h.b16 %v300
  %v1746 = vunpack.c.l.b16 %v301
  %v1747 = vunpack.c.h.b16 %v301
  %v1748 = vunpack.c.l.b16 %v302
  %v1749 = vunpack.c.h.b16 %v302
  %v1750 = vpack.c.b16 %v1210, %v1174
  %v1751 = vpack.c.b16 %v1211, %v1175
  %v1752 = vpack.c.b16 %v1212, %v1176
  %v1753 = vpack.c.b16 %v1213, %v1177
  %v1754 = vpack.c.b16 %v1214, %v1178
  %v1755 = vpack.c.b16 %v1215, %v1179
  %v1756 = vpack.c.b16 %v1216, %v1180
  %v1757 = vpack.c.b16 %v1217, %v1181
  %v1758 = vpack.c.b16 %v1218, %v1182
  %v1759 = vpack.c.b16 %v1219, %v1183
  %v1760 = vpack.c.b16 %v1220, %v1184
  %v1761 = vpack.c.b16 %v1221, %v1185
  %v1762 = vpack.c.b16 %v1222, %v1186
  %v1763 = vpack.c.b16 %v1223, %v1187
  %v1764 = vpack.c.b16 %v1224, %v1188
  %v1765 = vpack.c.b16 %v1225, %v1189
  %v1766 = vpack.c.b16 %v1226, %v1190
  %v1767 = vpack.c.b16 %v1227, %v1191
  %v1768 = vpack.c.b16 %v1228, %v1192
  %v1769 = vpack.c.b16 %v1229, %v1193
  %v1770 = vpack.c.b16 %v1230, %v1194
  %v1771 = vpack.c.b16 %v1231, %v1195
  %v1772 = vpack.c.b16 %v1232, %v1196
  %v1773 = vpack.c.b16 %v1233, %v1197
  %v1774 = vpack.c.b16 %v1234, %v1198
  %v1775 = vpack.c.b16 %v1235, %v1199
  %v1776 = vpack.c.b16 %v1236, %v1200
  %v1777 = vpack.c.b16 %v1237, %v1201
  %v1778 = vpack.c.b16 %v1238, %v1202
  %v1779 = vpack.c.b16 %v1239, %v1203
  %v1780 = vpack.c.b16 %v1240, %v1204
  %v1781 = vpack.c.b16 %v1241, %v1205
  %v1782 = vpack.c.b16 %v1242, %v1206
  %v1783 = vpack.c.b16 %v1243, %v1207
  %v1784 = vpack.c.b16 %v1244, %v1208
  %v1785 = vpack.c.b16 %v1245, %v1209
  %v1786 = vpack.c.b16 %v1282, %v1246
  %v1787 = vpack.c.b16 %v1283, %v1247
  %v1788 = vpack.c.b16 %v1284, %v1248
  %v1789 = vpack.c.b16 %v1285, %v1249
  %v1790 = vpack.c.b16 %v1286, %v1250
  %v1791 = vpack.c.b16 %v1287, %v1251
  %v1792 = vpack.c.b16 %v1288, %v1252
  %v1793 = vpack.c.b16 %v1289, %v1253
  %v1794 = vpack.c.b16 %v1290, %v1254
  %v1795 = vpack.c.b16 %v1291, %v1255
  %v1796 = vpack.c.b16 %v1292, %v1256
  %v1797 = vpack.c.b16 %v1293, %v1257
  %v1798 = vpack.c.b16 %v1294, %v1258
  %v1799 = vpack.c.b16 %v1295, %v1259
  %v1800 = vpack.c.b16 %v1296, %v1260
  %v1801 = vpack.c.b16 %v1297, %v1261
  %v1802 = vpack.c.b16 %v1298, %v1262
  %v1803 = vpack.c.b16 %v1299, %v1263
  %v1804 = vpack.c.b16 %v1300, %v1264
  %v1805 = vpack.c.b16 %v1301, %v1265
  %v1806 = vpack.c.b16 %v1302, %v1266
  %v1807 = vpack.c.b16 %v1303, %v1267
  %v1808 = vpack.c.b16 %v1304, %v1268
  %v1809 = vpack.c.b16 %v1305, %v1269
  %v1810 = vpack.c.b16 %v1306, %v1270
  %v1811 = vpack.c.b16 %v1307, %v1271
  %v1812 = vpack.c.b16 %v1308, %v1272
  %v1813 = vpack.c.b16 %v1309, %v1273
  %v1814 = vpack.c.b16 %v1310, %v1274
  %v1815 = vpack.c.b16 %v1311, %v1275
  %v1816 = vpack.c.b16 %v1312, %v1276
  %v1817 = vpack.c.b16 %v1313, %v1277
  %v1818 = vpack.c.b16 %v1314, %v1278
  %v1819 = vpack.c.b16 %v1315, %v1279
  %v1820 = vpack.c.b16 %v1316, %v1280
  %v1821 = vpack.c.b16 %v1317, %v1281
  %v1822 = vpack.c.b16 %v1354, %v1318
  %v1823 = vpack.c.b16 %v1355, %v1319
  %v1824 = vpack.c.b16 %v1356, %v1320
  %v1825 = vpack.c.b16 %v1357, %v1321
  %v1826 = vpack.c.b16 %v1358, %v1322
  %v1827 = vpack.c.b16 %v1359, %v1323
  %v1828 = vpack.c.b16 %v1360, %v1324
  %v1829 = vpack.c.b16 %v1361, %v1325
  %v1830 = vpack.c.b16 %v1362, %v1326
  %v1831 = vpack.c.b16 %v1363, %v1327
  %v1832 = vpack.c.b16 %v1364, %v1328
  %v1833 = vpack.c.b16 %v1365, %v1329
  %v1834 = vpack.c.b16 %v1366, %v1330
  %v1835 = vpack.c.b16 %v1367, %v1331
  %v1836 = vpack.c.b16 %v1368, %v1332
  %v1837 = vpack.c.b16 %v1369, %v1333
  %v1838 = vpack.c.b16 %v1370, %v1334
  %v1839 = vpack.c.b16 %v1371, %v1335
  %v1840 = vpack.c.b16 %v1372, %v1336
  %v1841 = vpack.c.b16 %v1373, %v1337
  %v1842 = vpack.c.b16 %v1374, %v1338
  %v1843 = vpack.c.b16 %v1375, %v1339
  %v1844 = vpack.c.b16 %v1376, %v1340
  %v1845 = vpack.c.b16 %v1377, %v1341
  %v1846 = vpack.c.b16 %v1378, %v1342
  %v1847 = vpack.c.b16 %v1379, %v1343
  %v1848 = vpack.c.b16 %v1380, %v1344
  %v1849 = vpack.c.b16 %v1381, %v1345
  %v1850 = vpack.c.b16 %v1382, %v1346
  %v1851 = vpack.c.b16 %v1383, %v1347
  %v1852 = vpack.c.b16 %v1384, %v1348
  %v1853 = vpack.c.b16 %v1385, %v1349
  %v1854 = vpack.c.b16 %v1386, %v1350
  %v1855 = vpack.c.b16 %v1387, %v1351
  %v1856 = vpack.c.b16 %v1388, %v1352
  %v1857 = vpack.c.b16 %v1389, %v1353
  %v1858 = vpack.c.b16 %v1426, %v1390
  %v1859 = vpack.c.b16 %v1427, %v1391
  %v1860 = vpack.c.b16 %v1428, %v1392
  %v1861 = vpack.c.b16 %v1429, %v1393
  %v1862 = vpack.c.b16 %v1430, %v1394
  %v1863 = vpack.c.b16 %v1431, %v1395
  %v1864 = vpack.c.b16 %v1432, %v1396
  %v1865 = vpack.c.b16 %v1433, %v1397
  %v1866 = vpack.c.b16 %v1434, %v1398
  %v1867 = vpack.c.b16 %v1435, %v1399
  %v1868 = vpack.c.b16 %v1436, %v1400
  %v1869 = vpack.c.b16 %v1437, %v1401
  %v1870 = vpack.c.b16 %v1438, %v1402
  %v1871 = vpack.c.b16 %v1439, %v1403
  %v1872 = vpack.c.b16 %v1440, %v1404
  %v1873 = vpack.c.b16 %v1441, %v1405
  %v1874 = vpack.c.b16 %v1442, %v1406
  %v1875 = vpack.c.b16 %v1443, %v1407
  %v1876 = vpack.c.b16 %v1444, %v1408
  %v1877 = vpack.c.b16 %v1445, %v1409
  %v1878 = vpack.c.b16 %v1446, %v1410
  %v1879 = vpack.c.b16 %v1447, %v1411
  %v1880 = vpack.c.b16 %v1448, %v1412
  %v1881 = vpack.c.b16 %v1449, %v1413
  %v1882 = vpack.c.b16 %v1450, %v1414
  %v1883 = vpack.c.b16 %v1451, %v1415
  %v1884 = vpack.c.b16 %v1452, %v1416
  %v1885 = vpack.c.b16 %v1453, %v1417
  %v1886 = vpack.c.b16 %v1454, %v1418
  %v1887 = vpack.c.b16 %v1455, %v1419
  %v1888 = vpack.c.b16 %v1456, %v1420
  %v1889 = vpack.c.b16 %v1457, %v1421
  %v1890 = vpack.c.b16 %v1458, %v1422
  %v1891 = vpack.c.b16 %v1459, %v1423
  %v1892 = vpack.c.b16 %v1460, %v1424
  %v1893 = vpack.c.b16 %v1461, %v1425
  %v1894 = vpack.c.b16 %v1498, %v1462
  %v1895 = vpack.c.b16 %v1499, %v1463
  %v1896 = vpack.c.b16 %v1500, %v1464
  %v1897 = vpack.c.b16 %v1501, %v1465
  %v1898 = vpack.c.b16 %v1502, %v1466
  %v1899 = vpack.c.b16 %v1503, %v1467
  %v1900 = vpack.c.b16 %v1504, %v1468
  %v1901 = vpack.c.b16 %v1505, %v1469
  %v1902 = vpack.c.b16 %v1506, %v1470
  %v1903 = vpack.c.b16 %v1507, %v1471
  %v1904 = vpack.c.b16 %v1508, %v1472
  %v1905 = vpack.c.b16 %v1509, %v1473
  %v1906 = vpack.c.b16 %v1510, %v1474
  %v1907 = vpack.c.b16 %v1511, %v1475
  %v1908 = vpack.c.b16 %v1512, %v1476
  %v1909 = vpack.c.b16 %v1513, %v1477
  %v1910 = vpack.c.b16 %v1514, %v1478
  %v1911 = vpack.c.b16 %v1515, %v1479
  %v1912 = vpack.c.b16 %v1516, %v1480
  %v1913 = vpack.c.b16 %v1517, %v1481
  %v1914 = vpack.c.b16 %v1518, %v1482
  %v1915 = vpack.c.b16 %v1519, %v1483
  %v1916 = vpack.c.b16 %v1520, %v1484
  %v1917 = vpack.c.b16 %v1521, %v1485
  %v1918 = vpack.c.b16 %v1522, %v1486
  %v1919 = vpack.c.b16 %v1523, %v1487
  %v1920 = vpack.c.b16 %v1524, %v1488
  %v1921 = vpack.c.b16 %v1525, %v1489
  %v1922 = vpack.c.b16 %v1526, %v1490
  %v1923 = vpack.c.b16 %v1527, %v1491
  %v1924 = vpack.c.b16 %v1528, %v1492
  %v1925 = vpack.c.b16 %v1529, %v1493
  %v1926 = vpack.c.b16 %v1530, %v1494
  %v1927 = vpack.c.b16 %v1531, %v1495
  %v1928 = vpack.c.b16 %v1532, %v1496
  %v1929 = vpack.c.b16 %v1533, %v1497
  %v1930 = vpack.c.b16 %v1570, %v1534
  %v1931 = vpack.c.b16 %v1571, %v1535
  %v1932 = vpack.c.b16 %v1572, %v1536
  %v1933 = vpack.c.b16 %v1573, %v1537
  %v1934 = vpack.c.b16 %v1574, %v1538
  %v1935 = vpack.c.b16 %v1575, %v1539
  %v1936 = vpack.c.b16 %v1576, %v1540
  %v1937 = vpack.c.b16 %v1577, %v1541
  %v1938 = vpack.c.b16 %v1578, %v1542
  %v1939 = vpack.c.b16 %v1579, %v1543
  %v1940 = vpack.c.b16 %v1580, %v1544
  %v1941 = vpack.c.b16 %v1581, %v1545
  %v1942 = vpack.c.b16 %v1582, %v1546
  %v1943 = vpack.c.b16 %v1583, %v1547
  %v1944 = vpack.c.b16 %v1584, %v1548
  %v1945 = vpack.c.b16 %v1585, %v1549
  %v1946 = vpack.c.b16 %v1586, %v1550
  %v1947 = vpack.c.b16 %v1587, %v1551
  %v1948 = vpack.c.b16 %v1588, %v1552
  %v1949 = vpack.c.b16 %v1589, %v1553
  %v1950 = vpack.c.b16 %v1590, %v1554
  %v1951 = vpack.c.b16 %v1591, %v1555
  %v1952 = vpack.c.b16 %v1592, %v1556
  %v1953 = vpack.c.b16 %v1593, %v1557
  %v1954 = vpack.c.b16 %v1594, %v1558
  %v1955 = vpack.c.b16 %v1595, %v1559
  %v1956 = vpack.c.b16 %v1596, %v1560
  %v1957 = vpack.c.b16 %v1597, %v1561
  %v1958 = vpack.c.b16 %v1598, %v1562
  %v1959 = vpack.c.b16 %v1599, %v1563
  %v1960 = vpack.c.b16 %v1600, %v1564
  %v1961 = vpack.c.b16 %v1601, %v1565
  %v1962 = vpack.c.b16 %v1602, %v1566
  %v1963 = vpack.c.b16 %v1603, %v1567
  %v1964 = vpack.c.b16 %v1604, %v1568
  %v1965 = vpack.c.b16 %v1605, %v1569
  %v1966 = vpack.c.b16 %v1642, %v1606
  %v1967 = vpack.c.b16 %v1643, %v1607
  %v1968 = vpack.c.b16 %v1644, %v1608
  %v1969 = vpack.c.b16 %v1645, %v1609
  %v1970 = vpack.c.b16 %v1646, %v1610
  %v1971 = vpack.c.b16 %v1647, %v1611
  %v1972 = vpack.c.b16 %v1648, %v1612
  %v1973 = vpack.c.b16 %v1649, %v1613
  %v1974 = vpack.c.b16 %v1650, %v1614
  %v1975 = vpack.c.b16 %v1651, %v1615
  %v1976 = vpack.c.b16 %v1652, %v1616
  %v1977 = vpack.c.b16 %v1653, %v1617
  %v1978 = vpack.c.b16 %v1654, %v1618
  %v1979 = vpack.c.b16 %v1655, %v1619
  %v1980 = vpack.c.b16 %v1656, %v1620
  %v1981 = vpack.c.b16 %v1657, %v1621
  %v1982 = vpack.c.b16 %v1658, %v1622
  %v1983 = vpack.c.b16 %v1659, %v1623
  %v1984 = vpack.c.b16 %v1660, %v1624
  %v1985 = vpack.c.b16 %v1661, %v1625
  %v1986 = vpack.c.b16 %v1662, %v1626
  %v1987 = vpack.c.b16 %v1663, %v1627
  %v1988 = vpack.c.b16 %v1664, %v1628
  %v1989 = vpack.c.b16 %v1665, %v1629
  %v1990 = vpack.c.b16 %v1666, %v1630
  %v1991 = vpack.c.b16 %v1667, %v1631
  %v1992 = vpack.c.b16 %v1668, %v1632
  %v1993 = vpack.c.b16 %v1669, %v1633
  %v1994 = vpack.c.b16 %v1670, %v1634
  %v1995 = vpack.c.b16 %v1671, %v1635
  %v1996 = vpack.c.b16 %v1672, %v1636
  %v1997 = vpack.c.b16 %v1673, %v1637
  %v1998 = vpack.c.b16 %v1674, %v1638
  %v1999 = vpack.c.b16 %v1675, %v1639
  %v2000 = vpack.c.b16 %v1676, %v1640
  %v2001 = vpack.c.b16 %v1677, %v1641
  %v2002 = vpack.c.b16 %v1714, %v1678
  %v2003 = vpack.c.b16 %v1715, %v1679
  %v2004 = vpack.c.b16 %v1716, %v1680
  %v2005 = vpack.c.b16 %v1717, %v1681
  %v2006 = vpack.c.b16 %v1718, %v1682
  %v2007 = vpack.c.b16 %v1719, %v1683
  %v2008 = vpack.c.b16 %v1720, %v1684
  %v2009 = vpack.c.b16 %v1721, %v1685
  %v2010 = vpack.c.b16 %v1722, %v1686
  %v2011 = vpack.c.b16 %v1723, %v1687
  %v2012 = vpack.c.b16 %v1724, %v1688
  %v2013 = vpack.c.b16 %v1725, %v1689
  %v2014 = vpack.c.b16 %v1726, %v1690
  %v2015 = vpack.c.b16 %v1727, %v1691
  %v2016 = vpack.c.b16 %v1728, %v1692
  %v2017 = vpack.c.b16 %v1729, %v1693
  %v2018 = vpack.c.b16 %v1730, %v1694
  %v2019 = vpack.c.b16 %v1731, %v1695
  %v2020 = vpack.c.b16 %v1732, %v1696
  %v2021 = vpack.c.b16 %v1733, %v1697
  %v2022 = vpack.c.b16 %v1734, %v1698
  %v2023 = vpack.c.b16 %v1735, %v1699
  %v2024 = vpack.c.b16 %v1736, %v1700
  %v2025 = vpack.c.b16 %v1737, %v1701
  %v2026 = vpack.c.b16 %v1738, %v1702
  %v2027 = vpack.c.b16 %v1739, %v1703
  %v2028 = vpack.c.b16 %v1740, %v1704
  %v2029 = vpack.c.b16 %v1741, %v1705
  %v2030 = vpack.c.b16 %v1742, %v1706
  %v2031 = vpack.c.b16 %v1743, %v1707
  %v2032 = vpack.c.b16 %v1744, %v1708
  %v2033 = vpack.c.b16 %v1745, %v1709
  %v2034 = vpack.c.b16 %v1746, %v1710
  %v2035 = vpack.c.b16 %v1747, %v1711
  %v2036 = vpack.c.b16 %v1748, %v1712
  %v2037 = vpack.c.b16 %v1749, %v1713
  %v2902 = vunpack.c.l.b16 %v303
  %v2903 = vunpack.c.l.b16 %v304
  %v2904 = vunpack.c.l.b16 %v305
  %v2905 = vunpack.c.l.b16 %v306
  %v2906 = vunpack.c.l.b16 %v307
  %v2907 = vunpack.c.l.b16 %v308
  %v2908 = vunpack.c.l.b16 %v309
  %v2909 = vunpack.c.l.b16 %v310
  %v2910 = vunpack.c.l.b16 %v311
  %v2911 = vunpack.c.l.b16 %v312
  %v2912 = vunpack.c.l.b16 %v313
  %v2913 = vunpack.c.l.b16 %v314
  %v2914 = vunpack.c.l.b16 %v315
  %v2915 = vunpack.c.l.b16 %v316
  %v2916 = vunpack.c.l.b16 %v317
  %v2917 = vunpack.c.l.b16 %v318
  %v2918 = vunpack.c.l.b16 %v319
  %v2919 = vunpack.c.l.b16 %v320
  %v2920 = vunpack.c.l.b16 %v321
  %v2921 = vunpack.c.l.b16 %v322
  %v2922 = vunpack.c.l.b16 %v323
  %v2923 = vunpack.c.l.b16 %v324
  %v2924 = vunpack.c.l.b16 %v325
  %v2925 = vunpack.c.l.b16 %v326
  %v2926 = vunpack.c.l.b16 %v327
  %v2927 = vunpack.c.l.b16 %v328
  %v2928 = vunpack.c.l.b16 %v329
  %v2929 = vunpack.c.l.b16 %v330
  %v2930 = vunpack.c.l.b16 %v331
  %v2931 = vunpack.c.l.b16 %v332
  %v2932 = vunpack.c.l.b16 %v333
  %v2933 = vunpack.c.l.b16 %v334
  %v2934 = vunpack.c.l.b16 %v335
  %v2935 = vunpack.c.l.b16 %v336
  %v2936 = vunpack.c.l.b16 %v337
  %v2937 = vunpack.c.l.b16 %v338
  %v2938 = vunpack.c.l.b16 %v339
  %v2939 = vunpack.c.l.b16 %v340
  %v2940 = vunpack.c.l.b16 %v341
  %v2941 = vunpack.c.l.b16 %v342
  %v2942 = vunpack.c.l.b16 %v343
  %v2943 = vunpack.c.l.b16 %v344
  %v2944 = vunpack.c.l.b16 %v345
  %v2945 = vunpack.c.l.b16 %v346
  %v2946 = vunpack.c.l.b16 %v347
  %v2947 = vunpack.c.l.b16 %v348
  %v2948 = vunpack.c.l.b16 %v349
  %v2949 = vunpack.c.l.b16 %v350
  %v2950 = vunpack.c.l.b16 %v351
  %v2951 = vunpack.c.l.b16 %v352
  %v2952 = vunpack.c.l.b16 %v353
  %v2953 = vunpack.c.l.b16 %v354
  %v2954 = vunpack.c.l.b16 %v355
  %v2955 = vunpack.c.l.b16 %v356
  %v2956 = vunpack.c.l.b16 %v357
  %v2957 = vunpack.c.l.b16 %v358
  %v2958 = vunpack.c.l.b16 %v359
  %v2959 = vunpack.c.l.b16 %v360
  %v2960 = vunpack.c.l.b16 %v361
  %v2961 = vunpack.c.l.b16 %v362
  %v2962 = vunpack.c.l.b16 %v363
  %v2963 = vunpack.c.l.b16 %v364
  %v2964 = vunpack.c.l.b16 %v365
  %v2965 = vunpack.c.l.b16 %v366
  %v2966 = vunpack.c.l.b16 %v367
  %v2967 = vunpack.c.l.b16 %v368
  %v2968 = vunpack.c.l.b16 %v369
  %v2969 = vunpack.c.l.b16 %v370
  %v2970 = vunpack.c.l.b16 %v371
  %v2971 = vunpack.c.l.b16 %v372
  %v2972 = vunpack.c.l.b16 %v373
  %v2973 = vunpack.c.l.b16 %v374
  %v2974 = vunpack.c.l.b16 %v375
  %v2975 = vunpack.c.l.b16 %v376
  %v2976 = vunpack.c.l.b16 %v377
  %v2977 = vunpack.c.l.b16 %v378
  %v2978 = vunpack.c.l.b16 %v379
  %v2979 = vunpack.c.l.b16 %v380
  %v2980 = vunpack.c.l.b16 %v381
  %v2981 = vunpack.c.l.b16 %v382
  %v2982 = vunpack.c.l.b16 %v383
  %v2983 = vunpack.c.l.b16 %v384
  %v2984 = vunpack.c.l.b16 %v385
  %v2985 = vunpack.c.l.b16 %v386
  %v2986 = vunpack.c.l.b16 %v387
  %v2987 = vunpack.c.l.b16 %v388
  %v2988 = vunpack.c.l.b16 %v389
  %v2989 = vunpack.c.l.b16 %v390
  %v2990 = vunpack.c.l.b16 %v391
  %v2991 = vunpack.c.l.b16 %v392
  %v2992 = vunpack.c.l.b16 %v393
  %v2993 = vunpack.c.l.b16 %v394
  %v2994 = vunpack.c.l.b16 %v395
  %v2995 = vunpack.c.l.b16 %v396
  %v2996 = vunpack.c.l.b16 %v397
  %v2997 = vunpack.c.l.b16 %v398
  %v2998 = vunpack.c.l.b16 %v399
  %v2999 = vunpack.c.l.b16 %v400
  %v3000 = vunpack.c.l.b16 %v401
  %v3001 = vunpack.c.l.b16 %v402
  %v3002 = vunpack.c.l.b16 %v403
  %v3003 = vunpack.c.l.b16 %v404
  %v3004 = vunpack.c.l.b16 %v405
  %v3005 = vunpack.c.l.b16 %v406
  %v3006 = vunpack.c.l.b16 %v407
  %v3007 = vunpack.c.l.b16 %v408
  %v3008 = vunpack.c.l.b16 %v409
  %v3009 = vunpack.c.l.b16 %v410
  %v3010 = vunpack.c.l.b16 %v411
  %v3011 = vunpack.c.l.b16 %v412
  %v3012 = vunpack.c.l.b16 %v413
  %v3013 = vunpack.c.l.b16 %v414
  %v3014 = vunpack.c.l.b16 %v415
  %v3015 = vunpack.c.l.b16 %v416
  %v3016 = vunpack.c.l.b16 %v417
  %v3017 = vunpack.c.l.b16 %v418
  %v3018 = vunpack.c.l.b16 %v419
  %v3019 = vunpack.c.l.b16 %v420
  %v3020 = vunpack.c.l.b16 %v421
  %v3021 = vunpack.c.l.b16 %v422
  %v3022 = vunpack.c.l.b16 %v423
  %v3023 = vunpack.c.l.b16 %v424
  %v3024 = vunpack.c.l.b16 %v425
  %v3025 = vunpack.c.l.b16 %v426
  %v3026 = vunpack.c.l.b16 %v427
  %v3027 = vunpack.c.l.b16 %v428
  %v3028 = vunpack.c.l.b16 %v429
  %v3029 = vunpack.c.l.b16 %v430
  %v3030 = vunpack.c.l.b16 %v431
  %v3031 = vunpack.c.l.b16 %v432
  %v3032 = vunpack.c.l.b16 %v433
  %v3033 = vunpack.c.l.b16 %v434
  %v3034 = vunpack.c.l.b16 %v435
  %v3035 = vunpack.c.l.b16 %v436
  %v3036 = vunpack.c.l.b16 %v437
  %v3037 = vunpack.c.l.b16 %v438
  %v3038 = vunpack.c.l.b16 %v439
  %v3039 = vunpack.c.l.b16 %v440
  %v3040 = vunpack.c.l.b16 %v441
  %v3041 = vunpack.c.l.b16 %v442
  %v3042 = vunpack.c.l.b16 %v443
  %v3043 = vunpack.c.l.b16 %v444
  %v3044 = vunpack.c.l.b16 %v445
  %v3045 = vunpack.c.l.b16 %v446
  %v3046 = vunpack.c.l.b16 %v447
  %v3047 = vunpack.c.l.b16 %v448
  %v3048 = vunpack.c.l.b16 %v449
  %v3049 = vunpack.c.l.b16 %v450
  %v3050 = vunpack.c.l.b16 %v451
  %v3051 = vunpack.c.l.b16 %v452
  %v3052 = vunpack.c.l.b16 %v453
  %v3053 = vunpack.c.l.b16 %v454
  %v3054 = vunpack.c.l.b16 %v455
  %v3055 = vunpack.c.l.b16 %v456
  %v3056 = vunpack.c.l.b16 %v457
  %v3057 = vunpack.c.l.b16 %v458
  %v3058 = vunpack.c.l.b16 %v459
  %v3059 = vunpack.c.l.b16 %v460
  %v3060 = vunpack.c.l.b16 %v461
  %v3061 = vunpack.c.l.b16 %v462
  %v3062 = vunpack.c.l.b16 %v463
  %v3063 = vunpack.c.l.b16 %v464
  %v3064 = vunpack.c.l.b16 %v465
  %v3065 = vunpack.c.l.b16 %v466
  %v3066 = vunpack.c.l.b16 %v467
  %v3067 = vunpack.c.l.b16 %v468
  %v3068 = vunpack.c.l.b16 %v469
  %v3069 = vunpack.c.l.b16 %v470
  %v3070 = vunpack.c.l.b16 %v471
  %v3071 = vunpack.c.l.b16 %v472
  %v3072 = vunpack.c.l.b16 %v473
  %v3073 = vunpack.c.l.b16 %v474
  %v3074 = vunpack.c.l.b16 %v475
  %v3075 = vunpack.c.l.b16 %v476
  %v3076 = vunpack.c.l.b16 %v477
  %v3077 = vunpack.c.l.b16 %v478
  %v3078 = vunpack.c.l.b16 %v479
  %v3079 = vunpack.c.l.b16 %v480
  %v3080 = vunpack.c.l.b16 %v481
  %v3081 = vunpack.c.l.b16 %v482
  %v3082 = vunpack.c.l.b16 %v483
  %v3083 = vunpack.c.l.b16 %v484
  %v3084 = vunpack.c.l.b16 %v485
  %v3085 = vunpack.c.l.b16 %v486
  %v3086 = vunpack.c.l.b16 %v487
  %v3087 = vunpack.c.l.b16 %v488
  %v3088 = vunpack.c.l.b16 %v489
  %v3089 = vunpack.c.l.b16 %v490
  %v3090 = vunpack.c.l.b16 %v491
  %v3091 = vunpack.c.l.b16 %v492
  %v3092 = vunpack.c.l.b16 %v493
  %v3093 = vunpack.c.l.b16 %v494
  %v3094 = vunpack.c.l.b16 %v495
  %v3095 = vunpack.c.l.b16 %v496
  %v3096 = vunpack.c.l.b16 %v497
  %v3097 = vunpack.c.l.b16 %v498
  %v3098 = vunpack.c.l.b16 %v499
  %v3099 = vunpack.c.l.b16 %v500
  %v3100 = vunpack.c.l.b16 %v501
  %v3101 = vunpack.c.l.b16 %v502
  %v3102 = vunpack.c.l.b16 %v503
  %v3103 = vunpack.c.l.b16 %v504
  %v3104 = vunpack.c.l.b16 %v505
  %v3105 = vunpack.c.l.b16 %v506
  %v3106 = vunpack.c.l.b16 %v507
  %v3107 = vunpack.c.l.b16 %v508
  %v3108 = vunpack.c.l.b16 %v509
  %v3109 = vunpack.c.l.b16 %v510
  %v3110 = vunpack.c.l.b16 %v511
  %v3111 = vunpack.c.l.b16 %v512
  %v3112 = vunpack.c.l.b16 %v513
  %v3113 = vunpack.c.l.b16 %v514
  %v3114 = vunpack.c.l.b16 %v515
  %v3115 = vunpack.c.l.b16 %v516
  %v3116 = vunpack.c.l.b16 %v517
  %v3117 = vunpack.c.l.b16 %v518
  %v3118 = vunpack.c.l.b16 %v519
  %v3119 = vunpack.c.l.b16 %v520
  %v3120 = vunpack.c.l.b16 %v521
  %v3121 = vunpack.c.l.b16 %v522
  %v3122 = vunpack.c.l.b16 %v523
  %v3123 = vunpack.c.l.b16 %v524
  %v3124 = vunpack.c.l.b16 %v525
  %v3125 = vunpack.c.l.b16 %v526
  %v3126 = vunpack.c.l.b16 %v527
  %v3127 = vunpack.c.l.b16 %v528
  %v3128 = vunpack.c.l.b16 %v529
  %v3129 = vunpack.c.l.b16 %v530
  %v3130 = vunpack.c.l.b16 %v531
  %v3131 = vunpack.c.l.b16 %v532
  %v3132 = vunpack.c.l.b16 %v533
  %v3133 = vunpack.c.l.b16 %v534
  %v3134 = vunpack.c.l.b16 %v535
  %v3135 = vunpack.c.l.b16 %v536
  %v3136 = vunpack.c.l.b16 %v537
  %v3137 = vunpack.c.l.b16 %v538
  %v3138 = vunpack.c.l.b16 %v539
  %v3139 = vunpack.c.l.b16 %v540
  %v3140 = vunpack.c.l.b16 %v541
  %v3141 = vunpack.c.l.b16 %v542
  %v3142 = vunpack.c.l.b16 %v543
  %v3143 = vunpack.c.l.b16 %v544
  %v3144 = vunpack.c.l.b16 %v545
  %v3145 = vunpack.c.l.b16 %v546
  %v3146 = vunpack.c.l.b16 %v547
  %v3147 = vunpack.c.l.b16 %v548
  %v3148 = vunpack.c.l.b16 %v549
  %v3149 = vunpack.c.l.b16 %v550
  %v3150 = vunpack.c.l.b16 %v551
  %v3151 = vunpack.c.l.b16 %v552
  %v3152 = vunpack.c.l.b16 %v553
  %v3153 = vunpack.c.l.b16 %v554
  %v3154 = vunpack.c.l.b16 %v555
  %v3155 = vunpack.c.l.b16 %v556
  %v3156 = vunpack.c.l.b16 %v557
  %v3157 = vunpack.c.l.b16 %v558
  %v3158 = vunpack.c.l.b16 %v559
  %v3159 = vunpack.c.l.b16 %v560
  %v3160 = vunpack.c.l.b16 %v561
  %v3161 = vunpack.c.l.b16 %v562
  %v3162 = vunpack.c.l.b16 %v563
  %v3163 = vunpack.c.l.b16 %v564
  %v3164 = vunpack.c.l.b16 %v565
  %v3165 = vunpack.c.l.b16 %v566
  %v3166 = vunpack.c.l.b16 %v567
  %v3167 = vunpack.c.l.b16 %v568
  %v3168 = vunpack.c.l.b16 %v569
  %v3169 = vunpack.c.l.b16 %v570
  %v3170 = vunpack.c.l.b16 %v571
  %v3171 = vunpack.c.l.b16 %v572
  %v3172 = vunpack.c.l.b16 %v573
  %v3173 = vunpack.c.l.b16 %v574
  %v3174 = vunpack.c.l.b16 %v575
  %v3175 = vunpack.c.l.b16 %v576
  %v3176 = vunpack.c.l.b16 %v577
  %v3177 = vunpack.c.l.b16 %v578
  %v3178 = vunpack.c.l.b16 %v579
  %v3179 = vunpack.c.l.b16 %v580
  %v3180 = vunpack.c.l.b16 %v581
  %v3181 = vunpack.c.l.b16 %v582
  %v3182 = vunpack.c.l.b16 %v583
  %v3183 = vunpack.c.l.b16 %v584
  %v3184 = vunpack.c.l.b16 %v585
  %v3185 = vunpack.c.l.b16 %v586
  %v3186 = vunpack.c.l.b16 %v587
  %v3187 = vunpack.c.l.b16 %v588
  %v3188 = vunpack.c.l.b16 %v589
  %v3189 = vunpack.c.l.b16 %v590
  %v3190 = vunpack.c.l.b16 %v591
  %v3191 = vunpack.c.l.b16 %v592
  %v3192 = vunpack.c.l.b16 %v593
  %v3193 = vunpack.c.l.b16 %v594
  %v3194 = vunpack.c.l.b16 %v595
  %v3195 = vunpack.c.l.b16 %v596
  %v3196 = vunpack.c.l.b16 %v597
  %v3197 = vunpack.c.l.b16 %v598
  %v3198 = vunpack.c.l.b16 %v599
  %v3199 = vunpack.c.l.b16 %v600
  %v3200 = vunpack.c.l.b16 %v601
  %v3201 = vunpack.c.l.b16 %v602
  %v3202 = vunpack.c.l.b16 %v603
  %v3203 = vunpack.c.l.b16 %v604
  %v3204 = vunpack.c.l.b16 %v605
  %v3205 = vunpack.c.l.b16 %v606
  %v3206 = vunpack.c.l.b16 %v607
  %v3207 = vunpack.c.l.b16 %v608
  %v3208 = vunpack.c.l.b16 %v609
  %v3209 = vunpack.c.l.b16 %v610
  %v3210 = vunpack.c.l.b16 %v611
  %v3211 = vunpack.c.l.b16 %v612
  %v3212 = vunpack.c.l.b16 %v613
  %v3213 = vunpack.c.l.b16 %v614
  %v3214 = vunpack.c.l.b16 %v615
  %v3215 = vunpack.c.l.b16 %v616
  %v3216 = vunpack.c.l.b16 %v617
  %v3217 = vunpack.c.l.b16 %v618
  %v3218 = vunpack.c.l.b16 %v619
  %v3219 = vunpack.c.l.b16 %v620
  %v3220 = vunpack.c.l.b16 %v621
  %v3221 = vunpack.c.l.b16 %v622
  %v3222 = vunpack.c.l.b16 %v623
  %v3223 = vunpack.c.l.b16 %v624
  %v3224 = vunpack.c.l.b16 %v625
  %v3225 = vunpack.c.l.b16 %v626
  %v3226 = vunpack.c.l.b16 %v627
  %v3227 = vunpack.c.l.b16 %v628
  %v3228 = vunpack.c.l.b16 %v629
  %v3229 = vunpack.c.l.b16 %v630
  %v3230 = vunpack.c.l.b16 %v631
  %v3231 = vunpack.c.l.b16 %v632
  %v3232 = vunpack.c.l.b16 %v633
  %v3233 = vunpack.c.l.b16 %v634
  %v3234 = vunpack.c.l.b16 %v635
  %v3235 = vunpack.c.l.b16 %v636
  %v3236 = vunpack.c.l.b16 %v637
  %v3237 = vunpack.c.l.b16 %v638
  %v3238 = vunpack.c.l.b16 %v639
  %v3239 = vunpack.c.l.b16 %v640
  %v3240 = vunpack.c.l.b16 %v641
  %v3241 = vunpack.c.l.b16 %v642
  %v3242 = vunpack.c.l.b16 %v643
  %v3243 = vunpack.c.l.b16 %v644
  %v3244 = vunpack.c.l.b16 %v645
  %v3245 = vunpack.c.l.b16 %v646
  %v3246 = vunpack.c.l.b16 %v647
  %v3247 = vunpack.c.l.b16 %v648
  %v3248 = vunpack.c.l.b16 %v649
  %v3249 = vunpack.c.l.b16 %v650
  %v3250 = vunpack.c.l.b16 %v651
  %v3251 = vunpack.c.l.b16 %v652
  %v3252 = vunpack.c.l.b16 %v653
  %v3253 = vunpack.c.l.b16 %v654
  %v3254 = vunpack.c.l.b16 %v655
  %v3255 = vunpack.c.l.b16 %v656
  %v3256 = vunpack.c.l.b16 %v657
  %v3257 = vunpack.c.l.b16 %v658
  %v3258 = vunpack.c.l.b16 %v659
  %v3259 = vunpack.c.l.b16 %v660
  %v3260 = vunpack.c.l.b16 %v661
  %v3261 = vunpack.c.l.b16 %v662
  %v3262 = vunpack.c.l.b16 %v663
  %v3263 = vunpack.c.l.b16 %v664
  %v3264 = vunpack.c.l.b16 %v665
  %v3265 = vunpack.c.l.b16 %v666
  %v3266 = vunpack.c.l.b16 %v667
  %v3267 = vunpack.c.l.b16 %v668
  %v3268 = vunpack.c.l.b16 %v669
  %v3269 = vunpack.c.l.b16 %v670
  %v3270 = vunpack.c.l.b16 %v671
  %v3271 = vunpack.c.l.b16 %v672
  %v3272 = vunpack.c.l.b16 %v673
  %v3273 = vunpack.c.l.b16 %v674
  %v3274 = vunpack.c.l.b16 %v675
  %v3275 = vunpack.c.l.b16 %v676
  %v3276 = vunpack.c.l.b16 %v677
  %v3277 = vunpack.c.l.b16 %v678
  %v3278 = vunpack.c.l.b16 %v679
  %v3279 = vunpack.c.l.b16 %v680
  %v3280 = vunpack.c.l.b16 %v681
  %v3281 = vunpack.c.l.b16 %v682
  %v3282 = vunpack.c.l.b16 %v683
  %v3283 = vunpack.c.l.b16 %v684
  %v3284 = vunpack.c.l.b16 %v685
  %v3285 = vunpack.c.l.b16 %v686
  %v3286 = vunpack.c.l.b16 %v687
  %v3287 = vunpack.c.l.b16 %v688
  %v3288 = vunpack.c.l.b16 %v689
  %v3289 = vunpack.c.l.b16 %v690
  %v3290 = vunpack.c.l.b16 %v691
  %v3291 = vunpack.c.l.b16 %v692
  %v3292 = vunpack.c.l.b16 %v693
  %v3293 = vunpack.c.l.b16 %v694
  %v3294 = vunpack.c.l.b16 %v695
  %v3295 = vunpack.c.l.b16 %v696
  %v3296 = vunpack.c.l.b16 %v697
  %v3297 = vunpack.c.l.b16 %v698
  %v3298 = vunpack.c.l.b16 %v699
  %v3299 = vunpack.c.l.b16 %v700
  %v3300 = vunpack.c.l.b16 %v701
  %v3301 = vunpack.c.l.b16 %v702
  %v3302 = vunpack.c.l.b16 %v703
  %v3303 = vunpack.c.l.b16 %v704
  %v3304 = vunpack.c.l.b16 %v705
  %v3305 = vunpack.c.l.b16 %v706
  %v3306 = vunpack.c.l.b16 %v707
  %v3307 = vunpack.c.l.b16 %v708
  %v3308 = vunpack.c.l.b16 %v709
  %v3309 = vunpack.c.l.b16 %v710
  %v3310 = vunpack.c.l.b16 %v711
  %v3311 = vunpack.c.l.b16 %v712
  %v3312 = vunpack.c.l.b16 %v713
  %v3313 = vunpack.c.l.b16 %v714
  %v3314 = vunpack.c.l.b16 %v715
  %v3315 = vunpack.c.l.b16 %v716
  %v3316 = vunpack.c.l.b16 %v717
  %v3317 = vunpack.c.l.b16 %v718
  %v3318 = vunpack.c.l.b16 %v719
  %v3319 = vunpack.c.l.b16 %v720
  %v3320 = vunpack.c.l.b16 %v721
  %v3321 = vunpack.c.l.b16 %v722
  %v3322 = vunpack.c.l.b16 %v723
  %v3323 = vunpack.c.l.b16 %v724
  %v3324 = vunpack.c.l.b16 %v725
  %v3325 = vunpack.c.l.b16 %v726
  %v3326 = vunpack.c.l.b16 %v727
  %v3327 = vunpack.c.l.b16 %v728
  %v3328 = vunpack.c.l.b16 %v729
  %v3329 = vunpack.c.l.b16 %v730
  %v3330 = vunpack.c.l.b16 %v731
  %v3331 = vunpack.c.l.b16 %v732
  %v3332 = vunpack.c.l.b16 %v733
  %v3333 = vunpack.c.l.b16 %v734
  %v3334 = vunpack.c.l.b16 %v735
  %v3335 = vunpack.c.l.b16 %v736
  %v3336 = vunpack.c.l.b16 %v737
  %v3337 = vunpack.c.l.b16 %v738
  %v3338 = vunpack.c.l.b16 %v739
  %v3339 = vunpack.c.l.b16 %v740
  %v3340 = vunpack.c.l.b16 %v741
  %v3341 = vunpack.c.l.b16 %v742
  %v3342 = vunpack.c.l.b16 %v743
  %v3343 = vunpack.c.l.b16 %v744
  %v3344 = vunpack.c.l.b16 %v745
  %v3345 = vunpack.c.l.b16 %v746
  %v3346 = vunpack.c.l.b16 %v747
  %v3347 = vunpack.c.l.b16 %v748
  %v3348 = vunpack.c.l.b16 %v749
  %v3349 = vunpack.c.l.b16 %v750
  %v3350 = vunpack.c.l.b16 %v751
  %v3351 = vunpack.c.l.b16 %v752
  %v3352 = vunpack.c.l.b16 %v753
  %v3353 = vunpack.c.l.b16 %v754
  %v3354 = vunpack.c.l.b16 %v755
  %v3355 = vunpack.c.l.b16 %v756
  %v3356 = vunpack.c.l.b16 %v757
  %v3357 = vunpack.c.l.b16 %v758
  %v3358 = vunpack.c.l.b16 %v759
  %v3359 = vunpack.c.l.b16 %v760
  %v3360 = vunpack.c.l.b16 %v761
  %v3361 = vunpack.c.l.b16 %v762
  %v3362 = vunpack.c.l.b16 %v763
  %v3363 = vunpack.c.l.b16 %v764
  %v3364 = vunpack.c.l.b16 %v765
  %v3365 = vunpack.c.l.b16 %v766
  %v3366 = vunpack.c.l.b16 %v767
  %v3367 = vunpack.c.l.b16 %v768
  %v3368 = vunpack.c.l.b16 %v769
  %v3369 = vunpack.c.l.b16 %v770
  %v3370 = vunpack.c.l.b16 %v771
  %v3371 = vunpack.c.l.b16 %v772
  %v3372 = vunpack.c.l.b16 %v773
  %v3373 = vunpack.c.l.b16 %v774
  %v3374 = vunpack.c.l.b16 %v775
  %v3375 = vunpack.c.l.b16 %v776
  %v3376 = vunpack.c.l.b16 %v777
  %v3377 = vunpack.c.l.b16 %v778
  %v3378 = vunpack.c.l.b16 %v779
  %v3379 = vunpack.c.l.b16 %v780
  %v3380 = vunpack.c.l.b16 %v781
  %v3381 = vunpack.c.l.b16 %v782
  %v3382 = vunpack.c.l.b16 %v783
  %v3383 = vunpack.c.l.b16 %v784
  %v3384 = vunpack.c.l.b16 %v785
  %v3385 = vunpack.c.l.b16 %v786
  %v3386 = vunpack.c.l.b16 %v787
  %v3387 = vunpack.c.l.b16 %v788
  %v3388 = vunpack.c.l.b16 %v789
  %v3389 = vunpack.c.l.b16 %v790
  %v3390 = vunpack.c.l.b16 %v791
  %v3391 = vunpack.c.l.b16 %v792
  %v3392 = vunpack.c.l.b16 %v793
  %v3393 = vunpack.c.l.b16 %v794
  %v3394 = vunpack.c.l.b16 %v795
  %v3395 = vunpack.c.l.b16 %v796
  %v3396 = vunpack.c.l.b16 %v797
  %v3397 = vunpack.c.l.b16 %v798
  %v3398 = vunpack.c.l.b16 %v799
  %v3399 = vunpack.c.l.b16 %v800
  %v3400 = vunpack.c.l.b16 %v801
  %v3401 = vunpack.c.l.b16 %v802
  %v3402 = vunpack.c.l.b16 %v803
  %v3403 = vunpack.c.l.b16 %v804
  %v3404 = vunpack.c.l.b16 %v805
  %v3405 = vunpack.c.l.b16 %v806
  %v3406 = vunpack.c.l.b16 %v807
  %v3407 = vunpack.c.l.b16 %v808
  %v3408 = vunpack.c.l.b16 %v809
  %v3409 = vunpack.c.l.b16 %v810
  %v3410 = vunpack.c.l.b16 %v811
  %v3411 = vunpack.c.l.b16 %v812
  %v3412 = vunpack.c.l.b16 %v813
  %v3413 = vunpack.c.l.b16 %v814
  %v3414 = vunpack.c.l.b16 %v815
  %v3415 = vunpack.c.l.b16 %v816
  %v3416 = vunpack.c.l.b16 %v817
  %v3417 = vunpack.c.l.b16 %v818
  %v3418 = vunpack.c.l.b16 %v819
  %v3419 = vunpack.c.l.b16 %v820
  %v3420 = vunpack.c.l.b16 %v821
  %v3421 = vunpack.c.l.b16 %v822
  %v3422 = vunpack.c.l.b16 %v823
  %v3423 = vunpack.c.l.b16 %v824
  %v3424 = vunpack.c.l.b16 %v825
  %v3425 = vunpack.c.l.b16 %v826
  %v3426 = vunpack.c.l.b16 %v827
  %v3427 = vunpack.c.l.b16 %v828
  %v3428 = vunpack.c.l.b16 %v829
  %v3429 = vunpack.c.l.b16 %v830
  %v3430 = vunpack.c.l.b16 %v831
  %v3431 = vunpack.c.l.b16 %v832
  %v3432 = vunpack.c.l.b16 %v833
  %v3433 = vunpack.c.l.b16 %v834
  %v3434 = vunpack.c.l.b16 %v835
  %v3435 = vunpack.c.l.b16 %v836
  %v3436 = vunpack.c.l.b16 %v837
  %v3437 = vunpack.c.l.b16 %v838
  %v3438 = vunpack.c.l.b16 %v839
  %v3439 = vunpack.c.l.b16 %v840
  %v3440 = vunpack.c.l.b16 %v841
  %v3441 = vunpack.c.l.b16 %v842
  %v3442 = vunpack.c.l.b16 %v843
  %v3443 = vunpack.c.l.b16 %v844
  %v3444 = vunpack.c.l.b16 %v845
  %v3445 = vunpack.c.l.b16 %v846
  %v3446 = vunpack.c.l.b16 %v847
  %v3447 = vunpack.c.l.b16 %v848
  %v3448 = vunpack.c.l.b16 %v849
  %v3449 = vunpack.c.l.b16 %v850
  %v3450 = vunpack.c.l.b16 %v851
  %v3451 = vunpack.c.l.b16 %v852
  %v3452 = vunpack.c.l.b16 %v853
  %v3453 = vunpack.c.l.b16 %v854
  %v3454 = vunpack.c.l.b16 %v855
  %v3455 = vunpack.c.l.b16 %v856
  %v3456 = vunpack.c.l.b16 %v857
  %v3457 = vunpack.c.l.b16 %v858
  %v3458 = vunpack.c.l.b16 %v859
  %v3459 = vunpack.c.l.b16 %v860
  %v3460 = vunpack.c.l.b16 %v861
  %v3461 = vunpack.c.l.b16 %v862
  %v3462 = vunpack.c.l.b16 %v863
  %v3463 = vunpack.c.l.b16 %v864
  %v3464 = vunpack.c.l.b16 %v865
  %v3465 = vunpack.c.l.b16 %v866
  %v3466 = vunpack.c.l.b16 %v867
  %v3467 = vunpack.c.l.b16 %v868
  %v3468 = vunpack.c.l.b16 %v869
  %v3469 = vunpack.c.l.b16 %v870
  %v3470 = vunpack.c.l.b16 %v871
  %v3471 = vunpack.c.l.b16 %v872
  %v3472 = vunpack.c.l.b16 %v873
  %v3473 = vunpack.c.l.b16 %v874
  %v3474 = vunpack.c.l.b16 %v875
  %v3475 = vunpack.c.l.b16 %v876
  %v3476 = vunpack.c.l.b16 %v877
  %v3477 = vunpack.c.l.b16 %v878
  %v3478 = vpack.c.b16 %v2903, %v2902
  %v3479 = vpack.c.b16 %v2905, %v2904
  %v3480 = vpack.c.b16 %v2907, %v2906
  %v3481 = vpack.c.b16 %v2909, %v2908
  %v3482 = vpack.c.b16 %v2911, %v2910
  %v3483 = vpack.c.b16 %v2913, %v2912
  %v3484 = vpack.c.b16 %v2915, %v2914
  %v3485 = vpack.c.b16 %v2917, %v2916
  %v3486 = vpack.c.b16 %v2919, %v2918
  %v3487 = vpack.c.b16 %v2921, %v2920
  %v3488 = vpack.c.b16 %v2923, %v2922
  %v3489 = vpack.c.b16 %v2925, %v2924
  %v3490 = vpack.c.b16 %v2927, %v2926
  %v3491 = vpack.c.b16 %v2929, %v2928
  %v3492 = vpack.c.b16 %v2931, %v2930
  %v3493 = vpack.c.b16 %v2933, %v2932
  %v3494 = vpack.c.b16 %v2935, %v2934
  %v3495 = vpack.c.b16 %v2937, %v2936
  %v3496 = vpack.c.b16 %v2939, %v2938
  %v3497 = vpack.c.b16 %v2941, %v2940
  %v3498 = vpack.c.b16 %v2943, %v2942
  %v3499 = vpack.c.b16 %v2945, %v2944
  %v3500 = vpack.c.b16 %v2947, %v2946
  %v3501 = vpack.c.b16 %v2949, %v2948
  %v3502 = vpack.c.b16 %v2951, %v2950
  %v3503 = vpack.c.b16 %v2953, %v2952
  %v3504 = vpack.c.b16 %v2955, %v2954
  %v3505 = vpack.c.b16 %v2957, %v2956
  %v3506 = vpack.c.b16 %v2959, %v2958
  %v3507 = vpack.c.b16 %v2961, %v2960
  %v3508 = vpack.c.b16 %v2963, %v2962
  %v3509 = vpack.c.b16 %v2965, %v2964
  %v3510 = vpack.c.b16 %v2967, %v2966
  %v3511 = vpack.c.b16 %v2969, %v2968
  %v3512 = vpack.c.b16 %v2971, %v2970
  %v3513 = vpack.c.b16 %v2973, %v2972
  %v3514 = vpack.c.b16 %v2975, %v2974
  %v3515 = vpack.c.b16 %v2977, %v2976
  %v3516 = vpack.c.b16 %v2979, %v2978
  %v3517 = vpack.c.b16 %v2981, %v2980
  %v3518 = vpack.c.b16 %v2983, %v2982
  %v3519 = vpack.c.b16 %v2985, %v2984
  %v3520 = vpack.c.b16 %v2987, %v2986
  %v3521 = vpack.c.b16 %v2989, %v2988
  %v3522 = vpack.c.b16 %v2991, %v2990
  %v3523 = vpack.c.b16 %v2993, %v2992
  %v3524 = vpack.c.b16 %v2995, %v2994
  %v3525 = vpack.c.b16 %v2997, %v2996
  %v3526 = vpack.c.b16 %v2999, %v2998
  %v3527 = vpack.c.b16 %v3001, %v3000
  %v3528 = vpack.c.b16 %v3003, %v3002
  %v3529 = vpack.c.b16 %v3005, %v3004
  %v3530 = vpack.c.b16 %v3007, %v3006
  %v3531 = vpack.c.b16 %v3009, %v3008
  %v3532 = vpack.c.b16 %v3011, %v3010
  %v3533 = vpack.c.b16 %v3013, %v3012
  %v3534 = vpack.c.b16 %v3015, %v3014
  %v3535 = vpack.c.b16 %v3017, %v3016
  %v3536 = vpack.c.b16 %v3019, %v3018
  %v3537 = vpack.c.b16 %v3021, %v3020
  %v3538 = vpack.c.b16 %v3023, %v3022
  %v3539 = vpack.c.b16 %v3025, %v3024
  %v3540 = vpack.c.b16 %v3027, %v3026
  %v3541 = vpack.c.b16 %v3029, %v3028
  %v3542 = vpack.c.b16 %v3031, %v3030
  %v3543 = vpack.c.b16 %v3033, %v3032
  %v3544 = vpack.c.b16 %v3035, %v3034
  %v3545 = vpack.c.b16 %v3037, %v3036
  %v3546 = vpack.c.b16 %v3039, %v3038
  %v3547 = vpack.c.b16 %v3041, %v3040
  %v3548 = vpack.c.b16 %v3043, %v3042
  %v3549 = vpack.c.b16 %v3045, %v3044
  %v3550 = vpack.c.b16 %v3047, %v3046
  %v3551 = vpack.c.b16 %v3049, %v3048
  %v3552 = vpack.c.b16 %v3051, %v3050
  %v3553 = vpack.c.b16 %v3053, %v3052
  %v3554 = vpack.c.b16 %v3055, %v3054
  %v3555 = vpack.c.b16 %v3057, %v3056
  %v3556 = vpack.c.b16 %v3059, %v3058
  %v3557 = vpack.c.b16 %v3061, %v3060
  %v3558 = vpack.c.b16 %v3063, %v3062
  %v3559 = vpack.c.b16 %v3065, %v3064
  %v3560 = vpack.c.b16 %v3067, %v3066
  %v3561 = vpack.c.b16 %v3069, %v3068
  %v3562 = vpack.c.b16 %v3071, %v3070
  %v3563 = vpack.c.b16 %v3073, %v3072
  %v3564 = vpack.c.b16 %v3075, %v3074
  %v3565 = vpack.c.b16 %v3077, %v3076
  %v3566 = vpack.c.b16 %v3079, %v3078
  %v3567 = vpack.c.b16 %v3081, %v3080
  %v3568 = vpack.c.b16 %v3083, %v3082
  %v3569 = vpack.c.b16 %v3085, %v3084
  %v3570 = vpack.c.b16 %v3087, %v3086
  %v3571 = vpack.c.b16 %v3089, %v3088
  %v3572 = vpack.c.b16 %v3091, %v3090
  %v3573 = vpack.c.b16 %v3093, %v3092
  %v3574 = vpack.c.b16 %v3095, %v3094
  %v3575 = vpack.c.b16 %v3097, %v3096
  %v3576 = vpack.c.b16 %v3099, %v3098
  %v3577 = vpack.c.b16 %v3101, %v3100
  %v3578 = vpack.c.b16 %v3103, %v3102
  %v3579 = vpack.c.b16 %v3105, %v3104
  %v3580 = vpack.c.b16 %v3107, %v3106
  %v3581 = vpack.c.b16 %v3109, %v3108
  %v3582 = vpack.c.b16 %v3111, %v3110
  %v3583 = vpack.c.b16 %v3113, %v3112
  %v3584 = vpack.c.b16 %v3115, %v3114
  %v3585 = vpack.c.b16 %v3117, %v3116
  %v3586 = vpack.c.b16 %v3119, %v3118
  %v3587 = vpack.c.b16 %v3121, %v3120
  %v3588 = vpack.c.b16 %v3123, %v3122
  %v3589 = vpack.c.b16 %v3125, %v3124
  %v3590 = vpack.c.b16 %v3127, %v3126
  %v3591 = vpack.c.b16 %v3129, %v3128
  %v3592 = vpack.c.b16 %v3131, %v3130
  %v3593 = vpack.c.b16 %v3133, %v3132
  %v3594 = vpack.c.b16 %v3135, %v3134
  %v3595 = vpack.c.b16 %v3137, %v3136
  %v3596 = vpack.c.b16 %v3139, %v3138
  %v3597 = vpack.c.b16 %v3141, %v3140
  %v3598 = vpack.c.b16 %v3143, %v3142
  %v3599 = vpack.c.b16 %v3145, %v3144
  %v3600 = vpack.c.b16 %v3147, %v3146
  %v3601 = vpack.c.b16 %v3149, %v3148
  %v3602 = vpack.c.b16 %v3151, %v3150
  %v3603 = vpack.c.b16 %v3153, %v3152
  %v3604 = vpack.c.b16 %v3155, %v3154
  %v3605 = vpack.c.b16 %v3157, %v3156
  %v3606 = vpack.c.b16 %v3159, %v3158
  %v3607 = vpack.c.b16 %v3161, %v3160
  %v3608 = vpack.c.b16 %v3163, %v3162
  %v3609 = vpack.c.b16 %v3165, %v3164
  %v3610 = vpack.c.b16 %v3167, %v3166
  %v3611 = vpack.c.b16 %v3169, %v3168
  %v3612 = vpack.c.b16 %v3171, %v3170
  %v3613 = vpack.c.b16 %v3173, %v3172
  %v3614 = vpack.c.b16 %v3175, %v3174
  %v3615 = vpack.c.b16 %v3177, %v3176
  %v3616 = vpack.c.b16 %v3179, %v3178
  %v3617 = vpack.c.b16 %v3181, %v3180
  %v3618 = vpack.c.b16 %v3183, %v3182
  %v3619 = vpack.c.b16 %v3185, %v3184
  %v3620 = vpack.c.b16 %v3187, %v3186
  %v3621 = vpack.c.b16 %v3189, %v3188
  %v3622 = vpack.c.b16 %v3191, %v3190
  %v3623 = vpack.c.b16 %v3193, %v3192
  %v3624 = vpack.c.b16 %v3195, %v3194
  %v3625 = vpack.c.b16 %v3197, %v3196
  %v3626 = vpack.c.b16 %v3199, %v3198
  %v3627 = vpack.c.b16 %v3201, %v3200
  %v3628 = vpack.c.b16 %v3203, %v3202
  %v3629 = vpack.c.b16 %v3205, %v3204
  %v3630 = vpack.c.b16 %v3207, %v3206
  %v3631 = vpack.c.b16 %v3209, %v3208
  %v3632 = vpack.c.b16 %v3211, %v3210
  %v3633 = vpack.c.b16 %v3213, %v3212
  %v3634 = vpack.c.b16 %v3215, %v3214
  %v3635 = vpack.c.b16 %v3217, %v3216
  %v3636 = vpack.c.b16 %v3219, %v3218
  %v3637 = vpack.c.b16 %v3221, %v3220
  %v3638 = vpack.c.b16 %v3223, %v3222
  %v3639 = vpack.c.b16 %v3225, %v3224
  %v3640 = vpack.c.b16 %v3227, %v3226
  %v3641 = vpack.c.b16 %v3229, %v3228
  %v3642 = vpack.c.b16 %v3231, %v3230
  %v3643 = vpack.c.b16 %v3233, %v3232
  %v3644 = vpack.c.b16 %v3235, %v3234
  %v3645 = vpack.c.b16 %v3237, %v3236
  %v3646 = vpack.c.b16 %v3239, %v3238
  %v3647 = vpack.c.b16 %v3241, %v3240
  %v3648 = vpack.c.b16 %v3243, %v3242
  %v3649 = vpack.c.b16 %v3245, %v3244
  %v3650 = vpack.c.b16 %v3247, %v3246
  %v3651 = vpack.c.b16 %v3249, %v3248
  %v3652 = vpack.c.b16 %v3251, %v3250
  %v3653 = vpack.c.b16 %v3253, %v3252
  %v3654 = vpack.c.b16 %v3255, %v3254
  %v3655 = vpack.c.b16 %v3257, %v3256
  %v3656 = vpack.c.b16 %v3259, %v3258
  %v3657 = vpack.c.b16 %v3261, %v3260
  %v3658 = vpack.c.b16 %v3263, %v3262
  %v3659 = vpack.c.b16 %v3265, %v3264
  %v3660 = vpack.c.b16 %v3267, %v3266
  %v3661 = vpack.c.b16 %v3269, %v3268
  %v3662 = vpack.c.b16 %v3271, %v3270
  %v3663 = vpack.c.b16 %v3273, %v3272
  %v3664 = vpack.c.b16 %v3275, %v3274
  %v3665 = vpack.c.b16 %v3277, %v3276
  %v3666 = vpack.c.b16 %v3279, %v3278
  %v3667 = vpack.c.b16 %v3281, %v3280
  %v3668 = vpack.c.b16 %v3283, %v3282
  %v3669 = vpack.c.b16 %v3285, %v3284
  %v3670 = vpack.c.b16 %v3287, %v3286
  %v3671 = vpack.c.b16 %v3289, %v3288
  %v3672 = vpack.c.b16 %v3291, %v3290
  %v3673 = vpack.c.b16 %v3293, %v3292
  %v3674 = vpack.c.b16 %v3295, %v3294
  %v3675 = vpack.c.b16 %v3297, %v3296
  %v3676 = vpack.c.b16 %v3299, %v3298
  %v3677 = vpack.c.b16 %v3301, %v3300
  %v3678 = vpack.c.b16 %v3303, %v3302
  %v3679 = vpack.c.b16 %v3305, %v3304
  %v3680 = vpack.c.b16 %v3307, %v3306
  %v3681 = vpack.c.b16 %v3309, %v3308
  %v3682 = vpack.c.b16 %v3311, %v3310
  %v3683 = vpack.c.b16 %v3313, %v3312
  %v3684 = vpack.c.b16 %v3315, %v3314
  %v3685 = vpack.c.b16 %v3317, %v3316
  %v3686 = vpack.c.b16 %v3319, %v3318
  %v3687 = vpack.c.b16 %v3321, %v3320
  %v3688 = vpack.c.b16 %v3323, %v3322
  %v3689 = vpack.c.b16 %v3325, %v3324
  %v3690 = vpack.c.b16 %v3327, %v3326
  %v3691 = vpack.c.b16 %v3329, %v3328
  %v3692 = vpack.c.b16 %v3331, %v3330
  %v3693 = vpack.c.b16 %v3333, %v3332
  %v3694 = vpack.c.b16 %v3335, %v3334
  %v3695 = vpack.c.b16 %v3337, %v3336
  %v3696 = vpack.c.b16 %v3339, %v3338
  %v3697 = vpack.c.b16 %v3341, %v3340
  %v3698 = vpack.c.b16 %v3343, %v3342
  %v3699 = vpack.c.b16 %v3345, %v3344
  %v3700 = vpack.c.b16 %v3347, %v3346
  %v3701 = vpack.c.b16 %v3349, %v3348
  %v3702 = vpack.c.b16 %v3351, %v3350
  %v3703 = vpack.c.b16 %v3353, %v3352
  %v3704 = vpack.c.b16 %v3355, %v3354
  %v3705 = vpack.c.b16 %v3357, %v3356
  %v3706 = vpack.c.b16 %v3359, %v3358
  %v3707 = vpack.c.b16 %v3361, %v3360
  %v3708 = vpack.c.b16 %v3363, %v3362
  %v3709 = vpack.c.b16 %v3365, %v3364
  %v3710 = vpack.c.b16 %v3367, %v3366
  %v3711 = vpack.c.b16 %v3369, %v3368
  %v3712 = vpack.c.b16 %v3371, %v3370
  %v3713 = vpack.c.b16 %v3373, %v3372
  %v3714 = vpack.c.b16 %v3375, %v3374
  %v3715 = vpack.c.b16 %v3377, %v3376
  %v3716 = vpack.c.b16 %v3379, %v3378
  %v3717 = vpack.c.b16 %v3381, %v3380
  %v3718 = vpack.c.b16 %v3383, %v3382
  %v3719 = vpack.c.b16 %v3385, %v3384
  %v3720 = vpack.c.b16 %v3387, %v3386
  %v3721 = vpack.c.b16 %v3389, %v3388
  %v3722 = vpack.c.b16 %v3391, %v3390
  %v3723 = vpack.c.b16 %v3393, %v3392
  %v3724 = vpack.c.b16 %v3395, %v3394
  %v3725 = vpack.c.b16 %v3397, %v3396
  %v3726 = vpack.c.b16 %v3399, %v3398
  %v3727 = vpack.c.b16 %v3401, %v3400
  %v3728 = vpack.c.b16 %v3403, %v3402
  %v3729 = vpack.c.b16 %v3405, %v3404
  %v3730 = vpack.c.b16 %v3407, %v3406
  %v3731 = vpack.c.b16 %v3409, %v3408
  %v3732 = vpack.c.b16 %v3411, %v3410
  %v3733 = vpack.c.b16 %v3413, %v3412
  %v3734 = vpack.c.b16 %v3415, %v3414
  %v3735 = vpack.c.b16 %v3417, %v3416
  %v3736 = vpack.c.b16 %v3419, %v3418
  %v3737 = vpack.c.b16 %v3421, %v3420
  %v3738 = vpack.c.b16 %v3423, %v3422
  %v3739 = vpack.c.b16 %v3425, %v3424
  %v3740 = vpack.c.b16 %v3427, %v3426
  %v3741 = vpack.c.b16 %v3429, %v3428
  %v3742 = vpack.c.b16 %v3431, %v3430
  %v3743 = vpack.c.b16 %v3433, %v3432
  %v3744 = vpack.c.b16 %v3435, %v3434
  %v3745 = vpack.c.b16 %v3437, %v3436
  %v3746 = vpack.c.b16 %v3439, %v3438
  %v3747 = vpack.c.b16 %v3441, %v3440
  %v3748 = vpack.c.b16 %v3443, %v3442
  %v3749 = vpack.c.b16 %v3445, %v3444
  %v3750 = vpack.c.b16 %v3447, %v3446
  %v3751 = vpack.c.b16 %v3449, %v3448
  %v3752 = vpack.c.b16 %v3451, %v3450
  %v3753 = vpack.c.b16 %v3453, %v3452
  %v3754 = vpack.c.b16 %v3455, %v3454
  %v3755 = vpack.c.b16 %v3457, %v3456
  %v3756 = vpack.c.b16 %v3459, %v3458
  %v3757 = vpack.c.b16 %v3461, %v3460
  %v3758 = vpack.c.b16 %v3463, %v3462
  %v3759 = vpack.c.b16 %v3465, %v3464
  %v3760 = vpack.c.b16 %v3467, %v3466
  %v3761 = vpack.c.b16 %v3469, %v3468
  %v3762 = vpack.c.b16 %v3471, %v3470
  %v3763 = vpack.c.b16 %v3473, %v3472
  %v3764 = vpack.c.b16 %v3475, %v3474
  %v3765 = vpack.c.b16 %v3477, %v3476
  %4054 = vmatprep.subr.bf16.mxu0 0
  %4055 = vmatpush1.bf16.msra.mxu0 %v3485
  %4056 = vmatprep.subr.bf16.mxu0 0
  %4057 = vmatpush1.bf16.msra.mxu0 %v3484
  %4058 = vmatprep.subr.bf16.mxu0 0
  %4059 = vmatpush1.bf16.msra.mxu0 %v3483
  %4060 = vmatprep.subr.bf16.mxu0 0
  %4061 = vmatpush1.bf16.msra.mxu0 %v3482
  %4062 = vmatprep.subr.bf16.mxu0 0
  %4063 = vmatpush1.bf16.msra.mxu0 %v3481
  %4064 = vmatprep.subr.bf16.mxu0 0
  %4065 = vmatpush1.bf16.msra.mxu0 %v3480
  %4066 = vmatprep.subr.bf16.mxu0 0
  %4067 = vmatpush1.bf16.msra.mxu0 %v3479
  %4068 = vmatprep.subr.bf16.mxu0 0
  %4069 = vmatpush1.bf16.msra.mxu0 %v3478
  %4070 = vmatprep.subr.bf16.mxu0 0
  %4071 = vmatpush2.bf16.msra.mxu0 %v3493
  %4072 = vmatprep.subr.bf16.mxu0 0
  %4073 = vmatpush2.bf16.msra.mxu0 %v3492
  %4074 = vmatprep.subr.bf16.mxu0 0
  %4075 = vmatpush2.bf16.msra.mxu0 %v3491
  %4076 = vmatprep.subr.bf16.mxu0 0
  %4077 = vmatpush2.bf16.msra.mxu0 %v3490
  %4078 = vmatprep.subr.bf16.mxu0 0
  %4079 = vmatpush2.bf16.msra.mxu0 %v3489
  %4080 = vmatprep.subr.bf16.mxu0 0
  %4081 = vmatpush2.bf16.msra.mxu0 %v3488
  %4082 = vmatprep.subr.bf16.mxu0 0
  %4083 = vmatpush2.bf16.msra.mxu0 %v3487
  %4084 = vmatprep.subr.bf16.mxu0 0
  %4085 = vmatpush2.bf16.msra.mxu0 %v3486
  %4086 = vmatprep.mubr.bf16.mxu0 %v1751
  %4087 = vmatmul.mubr.bf16.gmra.mxu0 %v1750
  %v4088 = vpop.f32.mrf.mxu0
  %v4089 = vadd.f32 %v884, %v4088
  %v4090 = vpop.f32.mrf.mxu0
  %v4091 = vpop.f32.mrf.mxu0
  %v4092 = vadd.f32 %v884, %v4091
  %v4093 = vpop.f32.mrf.mxu0
  %4094 = vmatprep.mubr.bf16.mxu0 %v1787
  %4095 = vmatmul.mubr.bf16.gmra.mxu0 %v1786
  %v4096 = vpop.f32.mrf.mxu0
  %v4097 = vadd.f32 %v884, %v4096
  %v4098 = vpop.f32.mrf.mxu0
  %v4099 = vpop.f32.mrf.mxu0
  %v4100 = vadd.f32 %v884, %v4099
  %v4101 = vpop.f32.mrf.mxu0
  %4102 = vmatprep.mubr.bf16.mxu0 %v1823
  %4103 = vmatmul.mubr.bf16.gmra.mxu0 %v1822
  %v4104 = vpop.f32.mrf.mxu0
  %v4105 = vadd.f32 %v884, %v4104
  %v4106 = vpop.f32.mrf.mxu0
  %v4107 = vpop.f32.mrf.mxu0
  %v4108 = vadd.f32 %v884, %v4107
  %v4109 = vpop.f32.mrf.mxu0
  %4110 = vmatprep.mubr.bf16.mxu0 %v1859
  %4111 = vmatmul.mubr.bf16.gmra.mxu0 %v1858
  %v4112 = vpop.f32.mrf.mxu0
  %v4113 = vadd.f32 %v884, %v4112
  %v4114 = vpop.f32.mrf.mxu0
  %v4115 = vpop.f32.mrf.mxu0
  %v4116 = vadd.f32 %v884, %v4115
  %v4117 = vpop.f32.mrf.mxu0
  %4118 = vmatprep.mubr.bf16.mxu0 %v1895
  %4119 = vmatmul.mubr.bf16.gmra.mxu0 %v1894
  %v4120 = vpop.f32.mrf.mxu0
  %v4121 = vadd.f32 %v884, %v4120
  %v4122 = vpop.f32.mrf.mxu0
  %v4123 = vpop.f32.mrf.mxu0
  %v4124 = vadd.f32 %v884, %v4123
  %v4125 = vpop.f32.mrf.mxu0
  %4126 = vmatprep.mubr.bf16.mxu0 %v1931
  %4127 = vmatmul.mubr.bf16.gmra.mxu0 %v1930
  %v4128 = vpop.f32.mrf.mxu0
  %v4129 = vadd.f32 %v884, %v4128
  %v4130 = vpop.f32.mrf.mxu0
  %v4131 = vpop.f32.mrf.mxu0
  %v4132 = vadd.f32 %v884, %v4131
  %v4133 = vpop.f32.mrf.mxu0
  %4134 = vmatprep.mubr.bf16.mxu0 %v1967
  %4135 = vmatmul.mubr.bf16.gmra.mxu0 %v1966
  %v4136 = vpop.f32.mrf.mxu0
  %v4137 = vadd.f32 %v884, %v4136
  %v4138 = vpop.f32.mrf.mxu0
  %v4139 = vpop.f32.mrf.mxu0
  %v4140 = vadd.f32 %v884, %v4139
  %v4141 = vpop.f32.mrf.mxu0
  %4142 = vmatprep.mubr.bf16.mxu0 %v2003
  %4143 = vmatmul.mubr.bf16.gmra.mxu0 %v2002
  %v4144 = vpop.f32.mrf.mxu0
  %v4145 = vadd.f32 %v884, %v4144
  %v4146 = vpop.f32.mrf.mxu0
  %v4147 = vpop.f32.mrf.mxu0
  %v4148 = vadd.f32 %v884, %v4147
  %v4149 = vpop.f32.mrf.mxu0
  %4150 = vdwg.mxu0
  %4151 = vmatprep.subr.bf16.mxu0 0
  %4152 = vmatpush1.bf16.msra.mxu0 %v3501
  %4153 = vmatprep.subr.bf16.mxu0 0
  %4154 = vmatpush1.bf16.msra.mxu0 %v3500
  %4155 = vmatprep.subr.bf16.mxu0 0
  %4156 = vmatpush1.bf16.msra.mxu0 %v3499
  %4157 = vmatprep.subr.bf16.mxu0 0
  %4158 = vmatpush1.bf16.msra.mxu0 %v3498
  %4159 = vmatprep.subr.bf16.mxu0 0
  %4160 = vmatpush1.bf16.msra.mxu0 %v3497
  %4161 = vmatprep.subr.bf16.mxu0 0
  %4162 = vmatpush1.bf16.msra.mxu0 %v3496
  %4163 = vmatprep.subr.bf16.mxu0 0
  %4164 = vmatpush1.bf16.msra.mxu0 %v3495
  %4165 = vmatprep.subr.bf16.mxu0 0
  %4166 = vmatpush1.bf16.msra.mxu0 %v3494
  %4167 = vmatprep.subr.bf16.mxu0 0
  %4168 = vmatpush2.bf16.msra.mxu0 %v3509
  %4169 = vmatprep.subr.bf16.mxu0 0
  %4170 = vmatpush2.bf16.msra.mxu0 %v3508
  %4171 = vmatprep.subr.bf16.mxu0 0
  %4172 = vmatpush2.bf16.msra.mxu0 %v3507
  %4173 = vmatprep.subr.bf16.mxu0 0
  %4174 = vmatpush2.bf16.msra.mxu0 %v3506
  %4175 = vmatprep.subr.bf16.mxu0 0
  %4176 = vmatpush2.bf16.msra.mxu0 %v3505
  %4177 = vmatprep.subr.bf16.mxu0 0
  %4178 = vmatpush2.bf16.msra.mxu0 %v3504
  %4179 = vmatprep.subr.bf16.mxu0 0
  %4180 = vmatpush2.bf16.msra.mxu0 %v3503
  %4181 = vmatprep.subr.bf16.mxu0 0
  %4182 = vmatpush2.bf16.msra.mxu0 %v3502
  %4183 = vmatprep.mubr.bf16.mxu0 %v1753
  %4184 = vmatmul.mubr.bf16.gmra.mxu0 %v1752
  %v4185 = vpop.f32.mrf.mxu0
  %v4186 = vadd.f32 %v4089, %v4185
  %v4187 = vpop.f32.mrf.mxu0
  %v4188 = vpop.f32.mrf.mxu0
  %v4189 = vadd.f32 %v4092, %v4188
  %v4190 = vpop.f32.mrf.mxu0
  %4191 = vmatprep.mubr.bf16.mxu0 %v1789
  %4192 = vmatmul.mubr.bf16.gmra.mxu0 %v1788
  %v4193 = vpop.f32.mrf.mxu0
  %v4194 = vadd.f32 %v4097, %v4193
  %v4195 = vpop.f32.mrf.mxu0
  %v4196 = vpop.f32.mrf.mxu0
  %v4197 = vadd.f32 %v4100, %v4196
  %v4198 = vpop.f32.mrf.mxu0
  %4199 = vmatprep.mubr.bf16.mxu0 %v1825
  %4200 = vmatmul.mubr.bf16.gmra.mxu0 %v1824
  %v4201 = vpop.f32.mrf.mxu0
  %v4202 = vadd.f32 %v4105, %v4201
  %v4203 = vpop.f32.mrf.mxu0
  %v4204 = vpop.f32.mrf.mxu0
  %v4205 = vadd.f32 %v4108, %v4204
  %v4206 = vpop.f32.mrf.mxu0
  %4207 = vmatprep.mubr.bf16.mxu0 %v1861
  %4208 = vmatmul.mubr.bf16.gmra.mxu0 %v1860
  %v4209 = vpop.f32.mrf.mxu0
  %v4210 = vadd.f32 %v4113, %v4209
  %v4211 = vpop.f32.mrf.mxu0
  %v4212 = vpop.f32.mrf.mxu0
  %v4213 = vadd.f32 %v4116, %v4212
  %v4214 = vpop.f32.mrf.mxu0
  %4215 = vmatprep.mubr.bf16.mxu0 %v1897
  %4216 = vmatmul.mubr.bf16.gmra.mxu0 %v1896
  %v4217 = vpop.f32.mrf.mxu0
  %v4218 = vadd.f32 %v4121, %v4217
  %v4219 = vpop.f32.mrf.mxu0
  %v4220 = vpop.f32.mrf.mxu0
  %v4221 = vadd.f32 %v4124, %v4220
  %v4222 = vpop.f32.mrf.mxu0
  %4223 = vmatprep.mubr.bf16.mxu0 %v1933
  %4224 = vmatmul.mubr.bf16.gmra.mxu0 %v1932
  %v4225 = vpop.f32.mrf.mxu0
  %v4226 = vadd.f32 %v4129, %v4225
  %v4227 = vpop.f32.mrf.mxu0
  %v4228 = vpop.f32.mrf.mxu0
  %v4229 = vadd.f32 %v4132, %v4228
  %v4230 = vpop.f32.mrf.mxu0
  %4231 = vmatprep.mubr.bf16.mxu0 %v1969
  %4232 = vmatmul.mubr.bf16.gmra.mxu0 %v1968
  %v4233 = vpop.f32.mrf.mxu0
  %v4234 = vadd.f32 %v4137, %v4233
  %v4235 = vpop.f32.mrf.mxu0
  %v4236 = vpop.f32.mrf.mxu0
  %v4237 = vadd.f32 %v4140, %v4236
  %v4238 = vpop.f32.mrf.mxu0
  %4239 = vmatprep.mubr.bf16.mxu0 %v2005
  %4240 = vmatmul.mubr.bf16.gmra.mxu0 %v2004
  %v4241 = vpop.f32.mrf.mxu0
  %v4242 = vadd.f32 %v4145, %v4241
  %v4243 = vpop.f32.mrf.mxu0
  %v4244 = vpop.f32.mrf.mxu0
  %v4245 = vadd.f32 %v4148, %v4244
  %v4246 = vpop.f32.mrf.mxu0
  %4247 = vdwg.mxu0
  %4248 = vmatprep.subr.bf16.mxu0 0
  %4249 = vmatpush1.bf16.msra.mxu0 %v3517
  %4250 = vmatprep.subr.bf16.mxu0 0
  %4251 = vmatpush1.bf16.msra.mxu0 %v3516
  %4252 = vmatprep.subr.bf16.mxu0 0
  %4253 = vmatpush1.bf16.msra.mxu0 %v3515
  %4254 = vmatprep.subr.bf16.mxu0 0
  %4255 = vmatpush1.bf16.msra.mxu0 %v3514
  %4256 = vmatprep.subr.bf16.mxu0 0
  %4257 = vmatpush1.bf16.msra.mxu0 %v3513
  %4258 = vmatprep.subr.bf16.mxu0 0
  %4259 = vmatpush1.bf16.msra.mxu0 %v3512
  %4260 = vmatprep.subr.bf16.mxu0 0
  %4261 = vmatpush1.bf16.msra.mxu0 %v3511
  %4262 = vmatprep.subr.bf16.mxu0 0
  %4263 = vmatpush1.bf16.msra.mxu0 %v3510
  %4264 = vmatprep.subr.bf16.mxu0 0
  %4265 = vmatpush2.bf16.msra.mxu0 %v3525
  %4266 = vmatprep.subr.bf16.mxu0 0
  %4267 = vmatpush2.bf16.msra.mxu0 %v3524
  %4268 = vmatprep.subr.bf16.mxu0 0
  %4269 = vmatpush2.bf16.msra.mxu0 %v3523
  %4270 = vmatprep.subr.bf16.mxu0 0
  %4271 = vmatpush2.bf16.msra.mxu0 %v3522
  %4272 = vmatprep.subr.bf16.mxu0 0
  %4273 = vmatpush2.bf16.msra.mxu0 %v3521
  %4274 = vmatprep.subr.bf16.mxu0 0
  %4275 = vmatpush2.bf16.msra.mxu0 %v3520
  %4276 = vmatprep.subr.bf16.mxu0 0
  %4277 = vmatpush2.bf16.msra.mxu0 %v3519
  %4278 = vmatprep.subr.bf16.mxu0 0
  %4279 = vmatpush2.bf16.msra.mxu0 %v3518
  %4280 = vmatprep.mubr.bf16.mxu0 %v1755
  %4281 = vmatmul.mubr.bf16.gmra.mxu0 %v1754
  %v4282 = vpop.f32.mrf.mxu0
  %v4283 = vadd.f32 %v4186, %v4282
  %v4284 = vpop.f32.mrf.mxu0
  %v4285 = vpop.f32.mrf.mxu0
  %v4286 = vadd.f32 %v4189, %v4285
  %v4287 = vpop.f32.mrf.mxu0
  %4288 = vmatprep.mubr.bf16.mxu0 %v1791
  %4289 = vmatmul.mubr.bf16.gmra.mxu0 %v1790
  %v4290 = vpop.f32.mrf.mxu0
  %v4291 = vadd.f32 %v4194, %v4290
  %v4292 = vpop.f32.mrf.mxu0
  %v4293 = vpop.f32.mrf.mxu0
  %v4294 = vadd.f32 %v4197, %v4293
  %v4295 = vpop.f32.mrf.mxu0
  %4296 = vmatprep.mubr.bf16.mxu0 %v1827
  %4297 = vmatmul.mubr.bf16.gmra.mxu0 %v1826
  %v4298 = vpop.f32.mrf.mxu0
  %v4299 = vadd.f32 %v4202, %v4298
  %v4300 = vpop.f32.mrf.mxu0
  %v4301 = vpop.f32.mrf.mxu0
  %v4302 = vadd.f32 %v4205, %v4301
  %v4303 = vpop.f32.mrf.mxu0
  %4304 = vmatprep.mubr.bf16.mxu0 %v1863
  %4305 = vmatmul.mubr.bf16.gmra.mxu0 %v1862
  %v4306 = vpop.f32.mrf.mxu0
  %v4307 = vadd.f32 %v4210, %v4306
  %v4308 = vpop.f32.mrf.mxu0
  %v4309 = vpop.f32.mrf.mxu0
  %v4310 = vadd.f32 %v4213, %v4309
  %v4311 = vpop.f32.mrf.mxu0
  %4312 = vmatprep.mubr.bf16.mxu0 %v1899
  %4313 = vmatmul.mubr.bf16.gmra.mxu0 %v1898
  %v4314 = vpop.f32.mrf.mxu0
  %v4315 = vadd.f32 %v4218, %v4314
  %v4316 = vpop.f32.mrf.mxu0
  %v4317 = vpop.f32.mrf.mxu0
  %v4318 = vadd.f32 %v4221, %v4317
  %v4319 = vpop.f32.mrf.mxu0
  %4320 = vmatprep.mubr.bf16.mxu0 %v1935
  %4321 = vmatmul.mubr.bf16.gmra.mxu0 %v1934
  %v4322 = vpop.f32.mrf.mxu0
  %v4323 = vadd.f32 %v4226, %v4322
  %v4324 = vpop.f32.mrf.mxu0
  %v4325 = vpop.f32.mrf.mxu0
  %v4326 = vadd.f32 %v4229, %v4325
  %v4327 = vpop.f32.mrf.mxu0
  %4328 = vmatprep.mubr.bf16.mxu0 %v1971
  %4329 = vmatmul.mubr.bf16.gmra.mxu0 %v1970
  %v4330 = vpop.f32.mrf.mxu0
  %v4331 = vadd.f32 %v4234, %v4330
  %v4332 = vpop.f32.mrf.mxu0
  %v4333 = vpop.f32.mrf.mxu0
  %v4334 = vadd.f32 %v4237, %v4333
  %v4335 = vpop.f32.mrf.mxu0
  %4336 = vmatprep.mubr.bf16.mxu0 %v2007
  %4337 = vmatmul.mubr.bf16.gmra.mxu0 %v2006
  %v4338 = vpop.f32.mrf.mxu0
  %v4339 = vadd.f32 %v4242, %v4338
  %v4340 = vpop.f32.mrf.mxu0
  %v4341 = vpop.f32.mrf.mxu0
  %v4342 = vadd.f32 %v4245, %v4341
  %v4343 = vpop.f32.mrf.mxu0
  %4344 = vdwg.mxu0
  %4345 = vmatprep.subr.bf16.mxu0 0
  %4346 = vmatpush1.bf16.msra.mxu0 %v3533
  %4347 = vmatprep.subr.bf16.mxu0 0
  %4348 = vmatpush1.bf16.msra.mxu0 %v3532
  %4349 = vmatprep.subr.bf16.mxu0 0
  %4350 = vmatpush1.bf16.msra.mxu0 %v3531
  %4351 = vmatprep.subr.bf16.mxu0 0
  %4352 = vmatpush1.bf16.msra.mxu0 %v3530
  %4353 = vmatprep.subr.bf16.mxu0 0
  %4354 = vmatpush1.bf16.msra.mxu0 %v3529
  %4355 = vmatprep.subr.bf16.mxu0 0
  %4356 = vmatpush1.bf16.msra.mxu0 %v3528
  %4357 = vmatprep.subr.bf16.mxu0 0
  %4358 = vmatpush1.bf16.msra.mxu0 %v3527
  %4359 = vmatprep.subr.bf16.mxu0 0
  %4360 = vmatpush1.bf16.msra.mxu0 %v3526
  %4361 = vmatprep.subr.bf16.mxu0 0
  %4362 = vmatpush2.bf16.msra.mxu0 %v3541
  %4363 = vmatprep.subr.bf16.mxu0 0
  %4364 = vmatpush2.bf16.msra.mxu0 %v3540
  %4365 = vmatprep.subr.bf16.mxu0 0
  %4366 = vmatpush2.bf16.msra.mxu0 %v3539
  %4367 = vmatprep.subr.bf16.mxu0 0
  %4368 = vmatpush2.bf16.msra.mxu0 %v3538
  %4369 = vmatprep.subr.bf16.mxu0 0
  %4370 = vmatpush2.bf16.msra.mxu0 %v3537
  %4371 = vmatprep.subr.bf16.mxu0 0
  %4372 = vmatpush2.bf16.msra.mxu0 %v3536
  %4373 = vmatprep.subr.bf16.mxu0 0
  %4374 = vmatpush2.bf16.msra.mxu0 %v3535
  %4375 = vmatprep.subr.bf16.mxu0 0
  %4376 = vmatpush2.bf16.msra.mxu0 %v3534
  %4377 = vmatprep.mubr.bf16.mxu0 %v1757
  %4378 = vmatmul.mubr.bf16.gmra.mxu0 %v1756
  %v4379 = vpop.f32.mrf.mxu0
  %v4380 = vadd.f32 %v4283, %v4379
  %v4381 = vpop.f32.mrf.mxu0
  %v4382 = vpop.f32.mrf.mxu0
  %v4383 = vadd.f32 %v4286, %v4382
  %v4384 = vpop.f32.mrf.mxu0
  %4385 = vmatprep.mubr.bf16.mxu0 %v1793
  %4386 = vmatmul.mubr.bf16.gmra.mxu0 %v1792
  %v4387 = vpop.f32.mrf.mxu0
  %v4388 = vadd.f32 %v4291, %v4387
  %v4389 = vpop.f32.mrf.mxu0
  %v4390 = vpop.f32.mrf.mxu0
  %v4391 = vadd.f32 %v4294, %v4390
  %v4392 = vpop.f32.mrf.mxu0
  %4393 = vmatprep.mubr.bf16.mxu0 %v1829
  %4394 = vmatmul.mubr.bf16.gmra.mxu0 %v1828
  %v4395 = vpop.f32.mrf.mxu0
  %v4396 = vadd.f32 %v4299, %v4395
  %v4397 = vpop.f32.mrf.mxu0
  %v4398 = vpop.f32.mrf.mxu0
  %v4399 = vadd.f32 %v4302, %v4398
  %v4400 = vpop.f32.mrf.mxu0
  %4401 = vmatprep.mubr.bf16.mxu0 %v1865
  %4402 = vmatmul.mubr.bf16.gmra.mxu0 %v1864
  %v4403 = vpop.f32.mrf.mxu0
  %v4404 = vadd.f32 %v4307, %v4403
  %v4405 = vpop.f32.mrf.mxu0
  %v4406 = vpop.f32.mrf.mxu0
  %v4407 = vadd.f32 %v4310, %v4406
  %v4408 = vpop.f32.mrf.mxu0
  %4409 = vmatprep.mubr.bf16.mxu0 %v1901
  %4410 = vmatmul.mubr.bf16.gmra.mxu0 %v1900
  %v4411 = vpop.f32.mrf.mxu0
  %v4412 = vadd.f32 %v4315, %v4411
  %v4413 = vpop.f32.mrf.mxu0
  %v4414 = vpop.f32.mrf.mxu0
  %v4415 = vadd.f32 %v4318, %v4414
  %v4416 = vpop.f32.mrf.mxu0
  %4417 = vmatprep.mubr.bf16.mxu0 %v1937
  %4418 = vmatmul.mubr.bf16.gmra.mxu0 %v1936
  %v4419 = vpop.f32.mrf.mxu0
  %v4420 = vadd.f32 %v4323, %v4419
  %v4421 = vpop.f32.mrf.mxu0
  %v4422 = vpop.f32.mrf.mxu0
  %v4423 = vadd.f32 %v4326, %v4422
  %v4424 = vpop.f32.mrf.mxu0
  %4425 = vmatprep.mubr.bf16.mxu0 %v1973
  %4426 = vmatmul.mubr.bf16.gmra.mxu0 %v1972
  %v4427 = vpop.f32.mrf.mxu0
  %v4428 = vadd.f32 %v4331, %v4427
  %v4429 = vpop.f32.mrf.mxu0
  %v4430 = vpop.f32.mrf.mxu0
  %v4431 = vadd.f32 %v4334, %v4430
  %v4432 = vpop.f32.mrf.mxu0
  %4433 = vmatprep.mubr.bf16.mxu0 %v2009
  %4434 = vmatmul.mubr.bf16.gmra.mxu0 %v2008
  %v4435 = vpop.f32.mrf.mxu0
  %v4436 = vadd.f32 %v4339, %v4435
  %v4437 = vpop.f32.mrf.mxu0
  %v4438 = vpop.f32.mrf.mxu0
  %v4439 = vadd.f32 %v4342, %v4438
  %v4440 = vpop.f32.mrf.mxu0
  %4441 = vdwg.mxu0
  %4442 = vmatprep.subr.bf16.mxu0 0
  %4443 = vmatpush1.bf16.msra.mxu0 %v3549
  %4444 = vmatprep.subr.bf16.mxu0 0
  %4445 = vmatpush1.bf16.msra.mxu0 %v3548
  %4446 = vmatprep.subr.bf16.mxu0 0
  %4447 = vmatpush1.bf16.msra.mxu0 %v3547
  %4448 = vmatprep.subr.bf16.mxu0 0
  %4449 = vmatpush1.bf16.msra.mxu0 %v3546
  %4450 = vmatprep.subr.bf16.mxu0 0
  %4451 = vmatpush1.bf16.msra.mxu0 %v3545
  %4452 = vmatprep.subr.bf16.mxu0 0
  %4453 = vmatpush1.bf16.msra.mxu0 %v3544
  %4454 = vmatprep.subr.bf16.mxu0 0
  %4455 = vmatpush1.bf16.msra.mxu0 %v3543
  %4456 = vmatprep.subr.bf16.mxu0 0
  %4457 = vmatpush1.bf16.msra.mxu0 %v3542
  %4458 = vmatprep.subr.bf16.mxu0 0
  %4459 = vmatpush2.bf16.msra.mxu0 %v3557
  %4460 = vmatprep.subr.bf16.mxu0 0
  %4461 = vmatpush2.bf16.msra.mxu0 %v3556
  %4462 = vmatprep.subr.bf16.mxu0 0
  %4463 = vmatpush2.bf16.msra.mxu0 %v3555
  %4464 = vmatprep.subr.bf16.mxu0 0
  %4465 = vmatpush2.bf16.msra.mxu0 %v3554
  %4466 = vmatprep.subr.bf16.mxu0 0
  %4467 = vmatpush2.bf16.msra.mxu0 %v3553
  %4468 = vmatprep.subr.bf16.mxu0 0
  %4469 = vmatpush2.bf16.msra.mxu0 %v3552
  %4470 = vmatprep.subr.bf16.mxu0 0
  %4471 = vmatpush2.bf16.msra.mxu0 %v3551
  %4472 = vmatprep.subr.bf16.mxu0 0
  %4473 = vmatpush2.bf16.msra.mxu0 %v3550
  %4474 = vmatprep.mubr.bf16.mxu0 %v1759
  %4475 = vmatmul.mubr.bf16.gmra.mxu0 %v1758
  %v4476 = vpop.f32.mrf.mxu0
  %v4477 = vadd.f32 %v4380, %v4476
  %v4478 = vpop.f32.mrf.mxu0
  %v4479 = vpop.f32.mrf.mxu0
  %v4480 = vadd.f32 %v4383, %v4479
  %v4481 = vpop.f32.mrf.mxu0
  %4482 = vmatprep.mubr.bf16.mxu0 %v1795
  %4483 = vmatmul.mubr.bf16.gmra.mxu0 %v1794
  %v4484 = vpop.f32.mrf.mxu0
  %v4485 = vadd.f32 %v4388, %v4484
  %v4486 = vpop.f32.mrf.mxu0
  %v4487 = vpop.f32.mrf.mxu0
  %v4488 = vadd.f32 %v4391, %v4487
  %v4489 = vpop.f32.mrf.mxu0
  %4490 = vmatprep.mubr.bf16.mxu0 %v1831
  %4491 = vmatmul.mubr.bf16.gmra.mxu0 %v1830
  %v4492 = vpop.f32.mrf.mxu0
  %v4493 = vadd.f32 %v4396, %v4492
  %v4494 = vpop.f32.mrf.mxu0
  %v4495 = vpop.f32.mrf.mxu0
  %v4496 = vadd.f32 %v4399, %v4495
  %v4497 = vpop.f32.mrf.mxu0
  %4498 = vmatprep.mubr.bf16.mxu0 %v1867
  %4499 = vmatmul.mubr.bf16.gmra.mxu0 %v1866
  %v4500 = vpop.f32.mrf.mxu0
  %v4501 = vadd.f32 %v4404, %v4500
  %v4502 = vpop.f32.mrf.mxu0
  %v4503 = vpop.f32.mrf.mxu0
  %v4504 = vadd.f32 %v4407, %v4503
  %v4505 = vpop.f32.mrf.mxu0
  %4506 = vmatprep.mubr.bf16.mxu0 %v1903
  %4507 = vmatmul.mubr.bf16.gmra.mxu0 %v1902
  %v4508 = vpop.f32.mrf.mxu0
  %v4509 = vadd.f32 %v4412, %v4508
  %v4510 = vpop.f32.mrf.mxu0
  %v4511 = vpop.f32.mrf.mxu0
  %v4512 = vadd.f32 %v4415, %v4511
  %v4513 = vpop.f32.mrf.mxu0
  %4514 = vmatprep.mubr.bf16.mxu0 %v1939
  %4515 = vmatmul.mubr.bf16.gmra.mxu0 %v1938
  %v4516 = vpop.f32.mrf.mxu0
  %v4517 = vadd.f32 %v4420, %v4516
  %v4518 = vpop.f32.mrf.mxu0
  %v4519 = vpop.f32.mrf.mxu0
  %v4520 = vadd.f32 %v4423, %v4519
  %v4521 = vpop.f32.mrf.mxu0
  %4522 = vmatprep.mubr.bf16.mxu0 %v1975
  %4523 = vmatmul.mubr.bf16.gmra.mxu0 %v1974
  %v4524 = vpop.f32.mrf.mxu0
  %v4525 = vadd.f32 %v4428, %v4524
  %v4526 = vpop.f32.mrf.mxu0
  %v4527 = vpop.f32.mrf.mxu0
  %v4528 = vadd.f32 %v4431, %v4527
  %v4529 = vpop.f32.mrf.mxu0
  %4530 = vmatprep.mubr.bf16.mxu0 %v2011
  %4531 = vmatmul.mubr.bf16.gmra.mxu0 %v2010
  %v4532 = vpop.f32.mrf.mxu0
  %v4533 = vadd.f32 %v4436, %v4532
  %v4534 = vpop.f32.mrf.mxu0
  %v4535 = vpop.f32.mrf.mxu0
  %v4536 = vadd.f32 %v4439, %v4535
  %v4537 = vpop.f32.mrf.mxu0
  %4538 = vdwg.mxu0
  %4539 = vmatprep.subr.bf16.mxu0 0
  %4540 = vmatpush1.bf16.msra.mxu0 %v3565
  %4541 = vmatprep.subr.bf16.mxu0 0
  %4542 = vmatpush1.bf16.msra.mxu0 %v3564
  %4543 = vmatprep.subr.bf16.mxu0 0
  %4544 = vmatpush1.bf16.msra.mxu0 %v3563
  %4545 = vmatprep.subr.bf16.mxu0 0
  %4546 = vmatpush1.bf16.msra.mxu0 %v3562
  %4547 = vmatprep.subr.bf16.mxu0 0
  %4548 = vmatpush1.bf16.msra.mxu0 %v3561
  %4549 = vmatprep.subr.bf16.mxu0 0
  %4550 = vmatpush1.bf16.msra.mxu0 %v3560
  %4551 = vmatprep.subr.bf16.mxu0 0
  %4552 = vmatpush1.bf16.msra.mxu0 %v3559
  %4553 = vmatprep.subr.bf16.mxu0 0
  %4554 = vmatpush1.bf16.msra.mxu0 %v3558
  %4555 = vmatprep.subr.bf16.mxu0 0
  %4556 = vmatpush2.bf16.msra.mxu0 %v3573
  %4557 = vmatprep.subr.bf16.mxu0 0
  %4558 = vmatpush2.bf16.msra.mxu0 %v3572
  %4559 = vmatprep.subr.bf16.mxu0 0
  %4560 = vmatpush2.bf16.msra.mxu0 %v3571
  %4561 = vmatprep.subr.bf16.mxu0 0
  %4562 = vmatpush2.bf16.msra.mxu0 %v3570
  %4563 = vmatprep.subr.bf16.mxu0 0
  %4564 = vmatpush2.bf16.msra.mxu0 %v3569
  %4565 = vmatprep.subr.bf16.mxu0 0
  %4566 = vmatpush2.bf16.msra.mxu0 %v3568
  %4567 = vmatprep.subr.bf16.mxu0 0
  %4568 = vmatpush2.bf16.msra.mxu0 %v3567
  %4569 = vmatprep.subr.bf16.mxu0 0
  %4570 = vmatpush2.bf16.msra.mxu0 %v3566
  %4571 = vmatprep.mubr.bf16.mxu0 %v1761
  %4572 = vmatmul.mubr.bf16.gmra.mxu0 %v1760
  %v4573 = vpop.f32.mrf.mxu0
  %v4574 = vadd.f32 %v4477, %v4573
  %v4575 = vpop.f32.mrf.mxu0
  %v4576 = vpop.f32.mrf.mxu0
  %v4577 = vadd.f32 %v4480, %v4576
  %v4578 = vpop.f32.mrf.mxu0
  %4579 = vmatprep.mubr.bf16.mxu0 %v1797
  %4580 = vmatmul.mubr.bf16.gmra.mxu0 %v1796
  %v4581 = vpop.f32.mrf.mxu0
  %v4582 = vadd.f32 %v4485, %v4581
  %v4583 = vpop.f32.mrf.mxu0
  %v4584 = vpop.f32.mrf.mxu0
  %v4585 = vadd.f32 %v4488, %v4584
  %v4586 = vpop.f32.mrf.mxu0
  %4587 = vmatprep.mubr.bf16.mxu0 %v1833
  %4588 = vmatmul.mubr.bf16.gmra.mxu0 %v1832
  %v4589 = vpop.f32.mrf.mxu0
  %v4590 = vadd.f32 %v4493, %v4589
  %v4591 = vpop.f32.mrf.mxu0
  %v4592 = vpop.f32.mrf.mxu0
  %v4593 = vadd.f32 %v4496, %v4592
  %v4594 = vpop.f32.mrf.mxu0
  %4595 = vmatprep.mubr.bf16.mxu0 %v1869
  %4596 = vmatmul.mubr.bf16.gmra.mxu0 %v1868
  %v4597 = vpop.f32.mrf.mxu0
  %v4598 = vadd.f32 %v4501, %v4597
  %v4599 = vpop.f32.mrf.mxu0
  %v4600 = vpop.f32.mrf.mxu0
  %v4601 = vadd.f32 %v4504, %v4600
  %v4602 = vpop.f32.mrf.mxu0
  %4603 = vmatprep.mubr.bf16.mxu0 %v1905
  %4604 = vmatmul.mubr.bf16.gmra.mxu0 %v1904
  %v4605 = vpop.f32.mrf.mxu0
  %v4606 = vadd.f32 %v4509, %v4605
  %v4607 = vpop.f32.mrf.mxu0
  %v4608 = vpop.f32.mrf.mxu0
  %v4609 = vadd.f32 %v4512, %v4608
  %v4610 = vpop.f32.mrf.mxu0
  %4611 = vmatprep.mubr.bf16.mxu0 %v1941
  %4612 = vmatmul.mubr.bf16.gmra.mxu0 %v1940
  %v4613 = vpop.f32.mrf.mxu0
  %v4614 = vadd.f32 %v4517, %v4613
  %v4615 = vpop.f32.mrf.mxu0
  %v4616 = vpop.f32.mrf.mxu0
  %v4617 = vadd.f32 %v4520, %v4616
  %v4618 = vpop.f32.mrf.mxu0
  %4619 = vmatprep.mubr.bf16.mxu0 %v1977
  %4620 = vmatmul.mubr.bf16.gmra.mxu0 %v1976
  %v4621 = vpop.f32.mrf.mxu0
  %v4622 = vadd.f32 %v4525, %v4621
  %v4623 = vpop.f32.mrf.mxu0
  %v4624 = vpop.f32.mrf.mxu0
  %v4625 = vadd.f32 %v4528, %v4624
  %v4626 = vpop.f32.mrf.mxu0
  %4627 = vmatprep.mubr.bf16.mxu0 %v2013
  %4628 = vmatmul.mubr.bf16.gmra.mxu0 %v2012
  %v4629 = vpop.f32.mrf.mxu0
  %v4630 = vadd.f32 %v4533, %v4629
  %v4631 = vpop.f32.mrf.mxu0
  %v4632 = vpop.f32.mrf.mxu0
  %v4633 = vadd.f32 %v4536, %v4632
  %v4634 = vpop.f32.mrf.mxu0
  %4635 = vdwg.mxu0
  %4636 = vmatprep.subr.bf16.mxu0 0
  %4637 = vmatpush1.bf16.msra.mxu0 %v3581
  %4638 = vmatprep.subr.bf16.mxu0 0
  %4639 = vmatpush1.bf16.msra.mxu0 %v3580
  %4640 = vmatprep.subr.bf16.mxu0 0
  %4641 = vmatpush1.bf16.msra.mxu0 %v3579
  %4642 = vmatprep.subr.bf16.mxu0 0
  %4643 = vmatpush1.bf16.msra.mxu0 %v3578
  %4644 = vmatprep.subr.bf16.mxu0 0
  %4645 = vmatpush1.bf16.msra.mxu0 %v3577
  %4646 = vmatprep.subr.bf16.mxu0 0
  %4647 = vmatpush1.bf16.msra.mxu0 %v3576
  %4648 = vmatprep.subr.bf16.mxu0 0
  %4649 = vmatpush1.bf16.msra.mxu0 %v3575
  %4650 = vmatprep.subr.bf16.mxu0 0
  %4651 = vmatpush1.bf16.msra.mxu0 %v3574
  %4652 = vmatprep.subr.bf16.mxu0 0
  %4653 = vmatpush2.bf16.msra.mxu0 %v3589
  %4654 = vmatprep.subr.bf16.mxu0 0
  %4655 = vmatpush2.bf16.msra.mxu0 %v3588
  %4656 = vmatprep.subr.bf16.mxu0 0
  %4657 = vmatpush2.bf16.msra.mxu0 %v3587
  %4658 = vmatprep.subr.bf16.mxu0 0
  %4659 = vmatpush2.bf16.msra.mxu0 %v3586
  %4660 = vmatprep.subr.bf16.mxu0 0
  %4661 = vmatpush2.bf16.msra.mxu0 %v3585
  %4662 = vmatprep.subr.bf16.mxu0 0
  %4663 = vmatpush2.bf16.msra.mxu0 %v3584
  %4664 = vmatprep.subr.bf16.mxu0 0
  %4665 = vmatpush2.bf16.msra.mxu0 %v3583
  %4666 = vmatprep.subr.bf16.mxu0 0
  %4667 = vmatpush2.bf16.msra.mxu0 %v3582
  %4668 = vmatprep.mubr.bf16.mxu0 %v1763
  %4669 = vmatmul.mubr.bf16.gmra.mxu0 %v1762
  %v4670 = vpop.f32.mrf.mxu0
  %v4671 = vadd.f32 %v4574, %v4670
  %v4672 = vpop.f32.mrf.mxu0
  %v4673 = vpop.f32.mrf.mxu0
  %v4674 = vadd.f32 %v4577, %v4673
  %v4675 = vpop.f32.mrf.mxu0
  %4676 = vmatprep.mubr.bf16.mxu0 %v1799
  %4677 = vmatmul.mubr.bf16.gmra.mxu0 %v1798
  %v4678 = vpop.f32.mrf.mxu0
  %v4679 = vadd.f32 %v4582, %v4678
  %v4680 = vpop.f32.mrf.mxu0
  %v4681 = vpop.f32.mrf.mxu0
  %v4682 = vadd.f32 %v4585, %v4681
  %v4683 = vpop.f32.mrf.mxu0
  %4684 = vmatprep.mubr.bf16.mxu0 %v1835
  %4685 = vmatmul.mubr.bf16.gmra.mxu0 %v1834
  %v4686 = vpop.f32.mrf.mxu0
  %v4687 = vadd.f32 %v4590, %v4686
  %v4688 = vpop.f32.mrf.mxu0
  %v4689 = vpop.f32.mrf.mxu0
  %v4690 = vadd.f32 %v4593, %v4689
  %v4691 = vpop.f32.mrf.mxu0
  %4692 = vmatprep.mubr.bf16.mxu0 %v1871
  %4693 = vmatmul.mubr.bf16.gmra.mxu0 %v1870
  %v4694 = vpop.f32.mrf.mxu0
  %v4695 = vadd.f32 %v4598, %v4694
  %v4696 = vpop.f32.mrf.mxu0
  %v4697 = vpop.f32.mrf.mxu0
  %v4698 = vadd.f32 %v4601, %v4697
  %v4699 = vpop.f32.mrf.mxu0
  %4700 = vmatprep.mubr.bf16.mxu0 %v1907
  %4701 = vmatmul.mubr.bf16.gmra.mxu0 %v1906
  %v4702 = vpop.f32.mrf.mxu0
  %v4703 = vadd.f32 %v4606, %v4702
  %v4704 = vpop.f32.mrf.mxu0
  %v4705 = vpop.f32.mrf.mxu0
  %v4706 = vadd.f32 %v4609, %v4705
  %v4707 = vpop.f32.mrf.mxu0
  %4708 = vmatprep.mubr.bf16.mxu0 %v1943
  %4709 = vmatmul.mubr.bf16.gmra.mxu0 %v1942
  %v4710 = vpop.f32.mrf.mxu0
  %v4711 = vadd.f32 %v4614, %v4710
  %v4712 = vpop.f32.mrf.mxu0
  %v4713 = vpop.f32.mrf.mxu0
  %v4714 = vadd.f32 %v4617, %v4713
  %v4715 = vpop.f32.mrf.mxu0
  %4716 = vmatprep.mubr.bf16.mxu0 %v1979
  %4717 = vmatmul.mubr.bf16.gmra.mxu0 %v1978
  %v4718 = vpop.f32.mrf.mxu0
  %v4719 = vadd.f32 %v4622, %v4718
  %v4720 = vpop.f32.mrf.mxu0
  %v4721 = vpop.f32.mrf.mxu0
  %v4722 = vadd.f32 %v4625, %v4721
  %v4723 = vpop.f32.mrf.mxu0
  %4724 = vmatprep.mubr.bf16.mxu0 %v2015
  %4725 = vmatmul.mubr.bf16.gmra.mxu0 %v2014
  %v4726 = vpop.f32.mrf.mxu0
  %v4727 = vadd.f32 %v4630, %v4726
  %v4728 = vpop.f32.mrf.mxu0
  %v4729 = vpop.f32.mrf.mxu0
  %v4730 = vadd.f32 %v4633, %v4729
  %v4731 = vpop.f32.mrf.mxu0
  %4732 = vdwg.mxu0
  %4733 = vmatprep.subr.bf16.mxu0 0
  %4734 = vmatpush1.bf16.msra.mxu0 %v3597
  %4735 = vmatprep.subr.bf16.mxu0 0
  %4736 = vmatpush1.bf16.msra.mxu0 %v3596
  %4737 = vmatprep.subr.bf16.mxu0 0
  %4738 = vmatpush1.bf16.msra.mxu0 %v3595
  %4739 = vmatprep.subr.bf16.mxu0 0
  %4740 = vmatpush1.bf16.msra.mxu0 %v3594
  %4741 = vmatprep.subr.bf16.mxu0 0
  %4742 = vmatpush1.bf16.msra.mxu0 %v3593
  %4743 = vmatprep.subr.bf16.mxu0 0
  %4744 = vmatpush1.bf16.msra.mxu0 %v3592
  %4745 = vmatprep.subr.bf16.mxu0 0
  %4746 = vmatpush1.bf16.msra.mxu0 %v3591
  %4747 = vmatprep.subr.bf16.mxu0 0
  %4748 = vmatpush1.bf16.msra.mxu0 %v3590
  %4749 = vmatprep.subr.bf16.mxu0 0
  %4750 = vmatpush2.bf16.msra.mxu0 %v3605
  %4751 = vmatprep.subr.bf16.mxu0 0
  %4752 = vmatpush2.bf16.msra.mxu0 %v3604
  %4753 = vmatprep.subr.bf16.mxu0 0
  %4754 = vmatpush2.bf16.msra.mxu0 %v3603
  %4755 = vmatprep.subr.bf16.mxu0 0
  %4756 = vmatpush2.bf16.msra.mxu0 %v3602
  %4757 = vmatprep.subr.bf16.mxu0 0
  %4758 = vmatpush2.bf16.msra.mxu0 %v3601
  %4759 = vmatprep.subr.bf16.mxu0 0
  %4760 = vmatpush2.bf16.msra.mxu0 %v3600
  %4761 = vmatprep.subr.bf16.mxu0 0
  %4762 = vmatpush2.bf16.msra.mxu0 %v3599
  %4763 = vmatprep.subr.bf16.mxu0 0
  %4764 = vmatpush2.bf16.msra.mxu0 %v3598
  %4765 = vmatprep.mubr.bf16.mxu0 %v1765
  %4766 = vmatmul.mubr.bf16.gmra.mxu0 %v1764
  %v4767 = vpop.f32.mrf.mxu0
  %v4768 = vadd.f32 %v4671, %v4767
  %v4769 = vpop.f32.mrf.mxu0
  %v4770 = vpop.f32.mrf.mxu0
  %v4771 = vadd.f32 %v4674, %v4770
  %v4772 = vpop.f32.mrf.mxu0
  %4773 = vmatprep.mubr.bf16.mxu0 %v1801
  %4774 = vmatmul.mubr.bf16.gmra.mxu0 %v1800
  %v4775 = vpop.f32.mrf.mxu0
  %v4776 = vadd.f32 %v4679, %v4775
  %v4777 = vpop.f32.mrf.mxu0
  %v4778 = vpop.f32.mrf.mxu0
  %v4779 = vadd.f32 %v4682, %v4778
  %v4780 = vpop.f32.mrf.mxu0
  %4781 = vmatprep.mubr.bf16.mxu0 %v1837
  %4782 = vmatmul.mubr.bf16.gmra.mxu0 %v1836
  %v4783 = vpop.f32.mrf.mxu0
  %v4784 = vadd.f32 %v4687, %v4783
  %v4785 = vpop.f32.mrf.mxu0
  %v4786 = vpop.f32.mrf.mxu0
  %v4787 = vadd.f32 %v4690, %v4786
  %v4788 = vpop.f32.mrf.mxu0
  %4789 = vmatprep.mubr.bf16.mxu0 %v1873
  %4790 = vmatmul.mubr.bf16.gmra.mxu0 %v1872
  %v4791 = vpop.f32.mrf.mxu0
  %v4792 = vadd.f32 %v4695, %v4791
  %v4793 = vpop.f32.mrf.mxu0
  %v4794 = vpop.f32.mrf.mxu0
  %v4795 = vadd.f32 %v4698, %v4794
  %v4796 = vpop.f32.mrf.mxu0
  %4797 = vmatprep.mubr.bf16.mxu0 %v1909
  %4798 = vmatmul.mubr.bf16.gmra.mxu0 %v1908
  %v4799 = vpop.f32.mrf.mxu0
  %v4800 = vadd.f32 %v4703, %v4799
  %v4801 = vpop.f32.mrf.mxu0
  %v4802 = vpop.f32.mrf.mxu0
  %v4803 = vadd.f32 %v4706, %v4802
  %v4804 = vpop.f32.mrf.mxu0
  %4805 = vmatprep.mubr.bf16.mxu0 %v1945
  %4806 = vmatmul.mubr.bf16.gmra.mxu0 %v1944
  %v4807 = vpop.f32.mrf.mxu0
  %v4808 = vadd.f32 %v4711, %v4807
  %v4809 = vpop.f32.mrf.mxu0
  %v4810 = vpop.f32.mrf.mxu0
  %v4811 = vadd.f32 %v4714, %v4810
  %v4812 = vpop.f32.mrf.mxu0
  %4813 = vmatprep.mubr.bf16.mxu0 %v1981
  %4814 = vmatmul.mubr.bf16.gmra.mxu0 %v1980
  %v4815 = vpop.f32.mrf.mxu0
  %v4816 = vadd.f32 %v4719, %v4815
  %v4817 = vpop.f32.mrf.mxu0
  %v4818 = vpop.f32.mrf.mxu0
  %v4819 = vadd.f32 %v4722, %v4818
  %v4820 = vpop.f32.mrf.mxu0
  %4821 = vmatprep.mubr.bf16.mxu0 %v2017
  %4822 = vmatmul.mubr.bf16.gmra.mxu0 %v2016
  %v4823 = vpop.f32.mrf.mxu0
  %v4824 = vadd.f32 %v4727, %v4823
  %v4825 = vpop.f32.mrf.mxu0
  %v4826 = vpop.f32.mrf.mxu0
  %v4827 = vadd.f32 %v4730, %v4826
  %v4828 = vpop.f32.mrf.mxu0
  %4829 = vdwg.mxu0
  %4830 = vmatprep.subr.bf16.mxu0 0
  %4831 = vmatpush1.bf16.msra.mxu0 %v3613
  %4832 = vmatprep.subr.bf16.mxu0 0
  %4833 = vmatpush1.bf16.msra.mxu0 %v3612
  %4834 = vmatprep.subr.bf16.mxu0 0
  %4835 = vmatpush1.bf16.msra.mxu0 %v3611
  %4836 = vmatprep.subr.bf16.mxu0 0
  %4837 = vmatpush1.bf16.msra.mxu0 %v3610
  %4838 = vmatprep.subr.bf16.mxu0 0
  %4839 = vmatpush1.bf16.msra.mxu0 %v3609
  %4840 = vmatprep.subr.bf16.mxu0 0
  %4841 = vmatpush1.bf16.msra.mxu0 %v3608
  %4842 = vmatprep.subr.bf16.mxu0 0
  %4843 = vmatpush1.bf16.msra.mxu0 %v3607
  %4844 = vmatprep.subr.bf16.mxu0 0
  %4845 = vmatpush1.bf16.msra.mxu0 %v3606
  %4846 = vmatprep.subr.bf16.mxu0 0
  %4847 = vmatpush2.bf16.msra.mxu0 %v3621
  %4848 = vmatprep.subr.bf16.mxu0 0
  %4849 = vmatpush2.bf16.msra.mxu0 %v3620
  %4850 = vmatprep.subr.bf16.mxu0 0
  %4851 = vmatpush2.bf16.msra.mxu0 %v3619
  %4852 = vmatprep.subr.bf16.mxu0 0
  %4853 = vmatpush2.bf16.msra.mxu0 %v3618
  %4854 = vmatprep.subr.bf16.mxu0 0
  %4855 = vmatpush2.bf16.msra.mxu0 %v3617
  %4856 = vmatprep.subr.bf16.mxu0 0
  %4857 = vmatpush2.bf16.msra.mxu0 %v3616
  %4858 = vmatprep.subr.bf16.mxu0 0
  %4859 = vmatpush2.bf16.msra.mxu0 %v3615
  %4860 = vmatprep.subr.bf16.mxu0 0
  %4861 = vmatpush2.bf16.msra.mxu0 %v3614
  %4862 = vmatprep.mubr.bf16.mxu0 %v1767
  %4863 = vmatmul.mubr.bf16.gmra.mxu0 %v1766
  %v4864 = vpop.f32.mrf.mxu0
  %v4865 = vadd.f32 %v4768, %v4864
  %v4866 = vpop.f32.mrf.mxu0
  %v4867 = vpop.f32.mrf.mxu0
  %v4868 = vadd.f32 %v4771, %v4867
  %v4869 = vpop.f32.mrf.mxu0
  %4870 = vmatprep.mubr.bf16.mxu0 %v1803
  %4871 = vmatmul.mubr.bf16.gmra.mxu0 %v1802
  %v4872 = vpop.f32.mrf.mxu0
  %v4873 = vadd.f32 %v4776, %v4872
  %v4874 = vpop.f32.mrf.mxu0
  %v4875 = vpop.f32.mrf.mxu0
  %v4876 = vadd.f32 %v4779, %v4875
  %v4877 = vpop.f32.mrf.mxu0
  %4878 = vmatprep.mubr.bf16.mxu0 %v1839
  %4879 = vmatmul.mubr.bf16.gmra.mxu0 %v1838
  %v4880 = vpop.f32.mrf.mxu0
  %v4881 = vadd.f32 %v4784, %v4880
  %v4882 = vpop.f32.mrf.mxu0
  %v4883 = vpop.f32.mrf.mxu0
  %v4884 = vadd.f32 %v4787, %v4883
  %v4885 = vpop.f32.mrf.mxu0
  %4886 = vmatprep.mubr.bf16.mxu0 %v1875
  %4887 = vmatmul.mubr.bf16.gmra.mxu0 %v1874
  %v4888 = vpop.f32.mrf.mxu0
  %v4889 = vadd.f32 %v4792, %v4888
  %v4890 = vpop.f32.mrf.mxu0
  %v4891 = vpop.f32.mrf.mxu0
  %v4892 = vadd.f32 %v4795, %v4891
  %v4893 = vpop.f32.mrf.mxu0
  %4894 = vmatprep.mubr.bf16.mxu0 %v1911
  %4895 = vmatmul.mubr.bf16.gmra.mxu0 %v1910
  %v4896 = vpop.f32.mrf.mxu0
  %v4897 = vadd.f32 %v4800, %v4896
  %v4898 = vpop.f32.mrf.mxu0
  %v4899 = vpop.f32.mrf.mxu0
  %v4900 = vadd.f32 %v4803, %v4899
  %v4901 = vpop.f32.mrf.mxu0
  %4902 = vmatprep.mubr.bf16.mxu0 %v1947
  %4903 = vmatmul.mubr.bf16.gmra.mxu0 %v1946
  %v4904 = vpop.f32.mrf.mxu0
  %v4905 = vadd.f32 %v4808, %v4904
  %v4906 = vpop.f32.mrf.mxu0
  %v4907 = vpop.f32.mrf.mxu0
  %v4908 = vadd.f32 %v4811, %v4907
  %v4909 = vpop.f32.mrf.mxu0
  %4910 = vmatprep.mubr.bf16.mxu0 %v1983
  %4911 = vmatmul.mubr.bf16.gmra.mxu0 %v1982
  %v4912 = vpop.f32.mrf.mxu0
  %v4913 = vadd.f32 %v4816, %v4912
  %v4914 = vpop.f32.mrf.mxu0
  %v4915 = vpop.f32.mrf.mxu0
  %v4916 = vadd.f32 %v4819, %v4915
  %v4917 = vpop.f32.mrf.mxu0
  %4918 = vmatprep.mubr.bf16.mxu0 %v2019
  %4919 = vmatmul.mubr.bf16.gmra.mxu0 %v2018
  %v4920 = vpop.f32.mrf.mxu0
  %v4921 = vadd.f32 %v4824, %v4920
  %v4922 = vpop.f32.mrf.mxu0
  %v4923 = vpop.f32.mrf.mxu0
  %v4924 = vadd.f32 %v4827, %v4923
  %v4925 = vpop.f32.mrf.mxu0
  %4926 = vdwg.mxu0
  %4927 = vmatprep.subr.bf16.mxu0 0
  %4928 = vmatpush1.bf16.msra.mxu0 %v3629
  %4929 = vmatprep.subr.bf16.mxu0 0
  %4930 = vmatpush1.bf16.msra.mxu0 %v3628
  %4931 = vmatprep.subr.bf16.mxu0 0
  %4932 = vmatpush1.bf16.msra.mxu0 %v3627
  %4933 = vmatprep.subr.bf16.mxu0 0
  %4934 = vmatpush1.bf16.msra.mxu0 %v3626
  %4935 = vmatprep.subr.bf16.mxu0 0
  %4936 = vmatpush1.bf16.msra.mxu0 %v3625
  %4937 = vmatprep.subr.bf16.mxu0 0
  %4938 = vmatpush1.bf16.msra.mxu0 %v3624
  %4939 = vmatprep.subr.bf16.mxu0 0
  %4940 = vmatpush1.bf16.msra.mxu0 %v3623
  %4941 = vmatprep.subr.bf16.mxu0 0
  %4942 = vmatpush1.bf16.msra.mxu0 %v3622
  %4943 = vmatprep.subr.bf16.mxu0 0
  %4944 = vmatpush2.bf16.msra.mxu0 %v3637
  %4945 = vmatprep.subr.bf16.mxu0 0
  %4946 = vmatpush2.bf16.msra.mxu0 %v3636
  %4947 = vmatprep.subr.bf16.mxu0 0
  %4948 = vmatpush2.bf16.msra.mxu0 %v3635
  %4949 = vmatprep.subr.bf16.mxu0 0
  %4950 = vmatpush2.bf16.msra.mxu0 %v3634
  %4951 = vmatprep.subr.bf16.mxu0 0
  %4952 = vmatpush2.bf16.msra.mxu0 %v3633
  %4953 = vmatprep.subr.bf16.mxu0 0
  %4954 = vmatpush2.bf16.msra.mxu0 %v3632
  %4955 = vmatprep.subr.bf16.mxu0 0
  %4956 = vmatpush2.bf16.msra.mxu0 %v3631
  %4957 = vmatprep.subr.bf16.mxu0 0
  %4958 = vmatpush2.bf16.msra.mxu0 %v3630
  %4959 = vmatprep.mubr.bf16.mxu0 %v1769
  %4960 = vmatmul.mubr.bf16.gmra.mxu0 %v1768
  %v4961 = vpop.f32.mrf.mxu0
  %v4962 = vadd.f32 %v4865, %v4961
  %v4963 = vpop.f32.mrf.mxu0
  %v4964 = vpop.f32.mrf.mxu0
  %v4965 = vadd.f32 %v4868, %v4964
  %v4966 = vpop.f32.mrf.mxu0
  %4967 = vmatprep.mubr.bf16.mxu0 %v1805
  %4968 = vmatmul.mubr.bf16.gmra.mxu0 %v1804
  %v4969 = vpop.f32.mrf.mxu0
  %v4970 = vadd.f32 %v4873, %v4969
  %v4971 = vpop.f32.mrf.mxu0
  %v4972 = vpop.f32.mrf.mxu0
  %v4973 = vadd.f32 %v4876, %v4972
  %v4974 = vpop.f32.mrf.mxu0
  %4975 = vmatprep.mubr.bf16.mxu0 %v1841
  %4976 = vmatmul.mubr.bf16.gmra.mxu0 %v1840
  %v4977 = vpop.f32.mrf.mxu0
  %v4978 = vadd.f32 %v4881, %v4977
  %v4979 = vpop.f32.mrf.mxu0
  %v4980 = vpop.f32.mrf.mxu0
  %v4981 = vadd.f32 %v4884, %v4980
  %v4982 = vpop.f32.mrf.mxu0
  %4983 = vmatprep.mubr.bf16.mxu0 %v1877
  %4984 = vmatmul.mubr.bf16.gmra.mxu0 %v1876
  %v4985 = vpop.f32.mrf.mxu0
  %v4986 = vadd.f32 %v4889, %v4985
  %v4987 = vpop.f32.mrf.mxu0
  %v4988 = vpop.f32.mrf.mxu0
  %v4989 = vadd.f32 %v4892, %v4988
  %v4990 = vpop.f32.mrf.mxu0
  %4991 = vmatprep.mubr.bf16.mxu0 %v1913
  %4992 = vmatmul.mubr.bf16.gmra.mxu0 %v1912
  %v4993 = vpop.f32.mrf.mxu0
  %v4994 = vadd.f32 %v4897, %v4993
  %v4995 = vpop.f32.mrf.mxu0
  %v4996 = vpop.f32.mrf.mxu0
  %v4997 = vadd.f32 %v4900, %v4996
  %v4998 = vpop.f32.mrf.mxu0
  %4999 = vmatprep.mubr.bf16.mxu0 %v1949
  %5000 = vmatmul.mubr.bf16.gmra.mxu0 %v1948
  %v5001 = vpop.f32.mrf.mxu0
  %v5002 = vadd.f32 %v4905, %v5001
  %v5003 = vpop.f32.mrf.mxu0
  %v5004 = vpop.f32.mrf.mxu0
  %v5005 = vadd.f32 %v4908, %v5004
  %v5006 = vpop.f32.mrf.mxu0
  %5007 = vmatprep.mubr.bf16.mxu0 %v1985
  %5008 = vmatmul.mubr.bf16.gmra.mxu0 %v1984
  %v5009 = vpop.f32.mrf.mxu0
  %v5010 = vadd.f32 %v4913, %v5009
  %v5011 = vpop.f32.mrf.mxu0
  %v5012 = vpop.f32.mrf.mxu0
  %v5013 = vadd.f32 %v4916, %v5012
  %v5014 = vpop.f32.mrf.mxu0
  %5015 = vmatprep.mubr.bf16.mxu0 %v2021
  %5016 = vmatmul.mubr.bf16.gmra.mxu0 %v2020
  %v5017 = vpop.f32.mrf.mxu0
  %v5018 = vadd.f32 %v4921, %v5017
  %v5019 = vpop.f32.mrf.mxu0
  %v5020 = vpop.f32.mrf.mxu0
  %v5021 = vadd.f32 %v4924, %v5020
  %v5022 = vpop.f32.mrf.mxu0
  %5023 = vdwg.mxu0
  %5024 = vmatprep.subr.bf16.mxu0 0
  %5025 = vmatpush1.bf16.msra.mxu0 %v3645
  %5026 = vmatprep.subr.bf16.mxu0 0
  %5027 = vmatpush1.bf16.msra.mxu0 %v3644
  %5028 = vmatprep.subr.bf16.mxu0 0
  %5029 = vmatpush1.bf16.msra.mxu0 %v3643
  %5030 = vmatprep.subr.bf16.mxu0 0
  %5031 = vmatpush1.bf16.msra.mxu0 %v3642
  %5032 = vmatprep.subr.bf16.mxu0 0
  %5033 = vmatpush1.bf16.msra.mxu0 %v3641
  %5034 = vmatprep.subr.bf16.mxu0 0
  %5035 = vmatpush1.bf16.msra.mxu0 %v3640
  %5036 = vmatprep.subr.bf16.mxu0 0
  %5037 = vmatpush1.bf16.msra.mxu0 %v3639
  %5038 = vmatprep.subr.bf16.mxu0 0
  %5039 = vmatpush1.bf16.msra.mxu0 %v3638
  %5040 = vmatprep.subr.bf16.mxu0 0
  %5041 = vmatpush2.bf16.msra.mxu0 %v3653
  %5042 = vmatprep.subr.bf16.mxu0 0
  %5043 = vmatpush2.bf16.msra.mxu0 %v3652
  %5044 = vmatprep.subr.bf16.mxu0 0
  %5045 = vmatpush2.bf16.msra.mxu0 %v3651
  %5046 = vmatprep.subr.bf16.mxu0 0
  %5047 = vmatpush2.bf16.msra.mxu0 %v3650
  %5048 = vmatprep.subr.bf16.mxu0 0
  %5049 = vmatpush2.bf16.msra.mxu0 %v3649
  %5050 = vmatprep.subr.bf16.mxu0 0
  %5051 = vmatpush2.bf16.msra.mxu0 %v3648
  %5052 = vmatprep.subr.bf16.mxu0 0
  %5053 = vmatpush2.bf16.msra.mxu0 %v3647
  %5054 = vmatprep.subr.bf16.mxu0 0
  %5055 = vmatpush2.bf16.msra.mxu0 %v3646
  %5056 = vmatprep.mubr.bf16.mxu0 %v1771
  %5057 = vmatmul.mubr.bf16.gmra.mxu0 %v1770
  %v5058 = vpop.f32.mrf.mxu0
  %v5059 = vadd.f32 %v4962, %v5058
  %v5060 = vpop.f32.mrf.mxu0
  %v5061 = vpop.f32.mrf.mxu0
  %v5062 = vadd.f32 %v4965, %v5061
  %v5063 = vpop.f32.mrf.mxu0
  %5064 = vmatprep.mubr.bf16.mxu0 %v1807
  %5065 = vmatmul.mubr.bf16.gmra.mxu0 %v1806
  %v5066 = vpop.f32.mrf.mxu0
  %v5067 = vadd.f32 %v4970, %v5066
  %v5068 = vpop.f32.mrf.mxu0
  %v5069 = vpop.f32.mrf.mxu0
  %v5070 = vadd.f32 %v4973, %v5069
  %v5071 = vpop.f32.mrf.mxu0
  %5072 = vmatprep.mubr.bf16.mxu0 %v1843
  %5073 = vmatmul.mubr.bf16.gmra.mxu0 %v1842
  %v5074 = vpop.f32.mrf.mxu0
  %v5075 = vadd.f32 %v4978, %v5074
  %v5076 = vpop.f32.mrf.mxu0
  %v5077 = vpop.f32.mrf.mxu0
  %v5078 = vadd.f32 %v4981, %v5077
  %v5079 = vpop.f32.mrf.mxu0
  %5080 = vmatprep.mubr.bf16.mxu0 %v1879
  %5081 = vmatmul.mubr.bf16.gmra.mxu0 %v1878
  %v5082 = vpop.f32.mrf.mxu0
  %v5083 = vadd.f32 %v4986, %v5082
  %v5084 = vpop.f32.mrf.mxu0
  %v5085 = vpop.f32.mrf.mxu0
  %v5086 = vadd.f32 %v4989, %v5085
  %v5087 = vpop.f32.mrf.mxu0
  %5088 = vmatprep.mubr.bf16.mxu0 %v1915
  %5089 = vmatmul.mubr.bf16.gmra.mxu0 %v1914
  %v5090 = vpop.f32.mrf.mxu0
  %v5091 = vadd.f32 %v4994, %v5090
  %v5092 = vpop.f32.mrf.mxu0
  %v5093 = vpop.f32.mrf.mxu0
  %v5094 = vadd.f32 %v4997, %v5093
  %v5095 = vpop.f32.mrf.mxu0
  %5096 = vmatprep.mubr.bf16.mxu0 %v1951
  %5097 = vmatmul.mubr.bf16.gmra.mxu0 %v1950
  %v5098 = vpop.f32.mrf.mxu0
  %v5099 = vadd.f32 %v5002, %v5098
  %v5100 = vpop.f32.mrf.mxu0
  %v5101 = vpop.f32.mrf.mxu0
  %v5102 = vadd.f32 %v5005, %v5101
  %v5103 = vpop.f32.mrf.mxu0
  %5104 = vmatprep.mubr.bf16.mxu0 %v1987
  %5105 = vmatmul.mubr.bf16.gmra.mxu0 %v1986
  %v5106 = vpop.f32.mrf.mxu0
  %v5107 = vadd.f32 %v5010, %v5106
  %v5108 = vpop.f32.mrf.mxu0
  %v5109 = vpop.f32.mrf.mxu0
  %v5110 = vadd.f32 %v5013, %v5109
  %v5111 = vpop.f32.mrf.mxu0
  %5112 = vmatprep.mubr.bf16.mxu0 %v2023
  %5113 = vmatmul.mubr.bf16.gmra.mxu0 %v2022
  %v5114 = vpop.f32.mrf.mxu0
  %v5115 = vadd.f32 %v5018, %v5114
  %v5116 = vpop.f32.mrf.mxu0
  %v5117 = vpop.f32.mrf.mxu0
  %v5118 = vadd.f32 %v5021, %v5117
  %v5119 = vpop.f32.mrf.mxu0
  %5120 = vdwg.mxu0
  %5121 = vmatprep.subr.bf16.mxu0 0
  %5122 = vmatpush1.bf16.msra.mxu0 %v3661
  %5123 = vmatprep.subr.bf16.mxu0 0
  %5124 = vmatpush1.bf16.msra.mxu0 %v3660
  %5125 = vmatprep.subr.bf16.mxu0 0
  %5126 = vmatpush1.bf16.msra.mxu0 %v3659
  %5127 = vmatprep.subr.bf16.mxu0 0
  %5128 = vmatpush1.bf16.msra.mxu0 %v3658
  %5129 = vmatprep.subr.bf16.mxu0 0
  %5130 = vmatpush1.bf16.msra.mxu0 %v3657
  %5131 = vmatprep.subr.bf16.mxu0 0
  %5132 = vmatpush1.bf16.msra.mxu0 %v3656
  %5133 = vmatprep.subr.bf16.mxu0 0
  %5134 = vmatpush1.bf16.msra.mxu0 %v3655
  %5135 = vmatprep.subr.bf16.mxu0 0
  %5136 = vmatpush1.bf16.msra.mxu0 %v3654
  %5137 = vmatprep.subr.bf16.mxu0 0
  %5138 = vmatpush2.bf16.msra.mxu0 %v3669
  %5139 = vmatprep.subr.bf16.mxu0 0
  %5140 = vmatpush2.bf16.msra.mxu0 %v3668
  %5141 = vmatprep.subr.bf16.mxu0 0
  %5142 = vmatpush2.bf16.msra.mxu0 %v3667
  %5143 = vmatprep.subr.bf16.mxu0 0
  %5144 = vmatpush2.bf16.msra.mxu0 %v3666
  %5145 = vmatprep.subr.bf16.mxu0 0
  %5146 = vmatpush2.bf16.msra.mxu0 %v3665
  %5147 = vmatprep.subr.bf16.mxu0 0
  %5148 = vmatpush2.bf16.msra.mxu0 %v3664
  %5149 = vmatprep.subr.bf16.mxu0 0
  %5150 = vmatpush2.bf16.msra.mxu0 %v3663
  %5151 = vmatprep.subr.bf16.mxu0 0
  %5152 = vmatpush2.bf16.msra.mxu0 %v3662
  %5153 = vmatprep.mubr.bf16.mxu0 %v1773
  %5154 = vmatmul.mubr.bf16.gmra.mxu0 %v1772
  %v5155 = vpop.f32.mrf.mxu0
  %v5156 = vadd.f32 %v5059, %v5155
  %v5157 = vpop.f32.mrf.mxu0
  %v5158 = vpop.f32.mrf.mxu0
  %v5159 = vadd.f32 %v5062, %v5158
  %v5160 = vpop.f32.mrf.mxu0
  %5161 = vmatprep.mubr.bf16.mxu0 %v1809
  %5162 = vmatmul.mubr.bf16.gmra.mxu0 %v1808
  %v5163 = vpop.f32.mrf.mxu0
  %v5164 = vadd.f32 %v5067, %v5163
  %v5165 = vpop.f32.mrf.mxu0
  %v5166 = vpop.f32.mrf.mxu0
  %v5167 = vadd.f32 %v5070, %v5166
  %v5168 = vpop.f32.mrf.mxu0
  %5169 = vmatprep.mubr.bf16.mxu0 %v1845
  %5170 = vmatmul.mubr.bf16.gmra.mxu0 %v1844
  %v5171 = vpop.f32.mrf.mxu0
  %v5172 = vadd.f32 %v5075, %v5171
  %v5173 = vpop.f32.mrf.mxu0
  %v5174 = vpop.f32.mrf.mxu0
  %v5175 = vadd.f32 %v5078, %v5174
  %v5176 = vpop.f32.mrf.mxu0
  %5177 = vmatprep.mubr.bf16.mxu0 %v1881
  %5178 = vmatmul.mubr.bf16.gmra.mxu0 %v1880
  %v5179 = vpop.f32.mrf.mxu0
  %v5180 = vadd.f32 %v5083, %v5179
  %v5181 = vpop.f32.mrf.mxu0
  %v5182 = vpop.f32.mrf.mxu0
  %v5183 = vadd.f32 %v5086, %v5182
  %v5184 = vpop.f32.mrf.mxu0
  %5185 = vmatprep.mubr.bf16.mxu0 %v1917
  %5186 = vmatmul.mubr.bf16.gmra.mxu0 %v1916
  %v5187 = vpop.f32.mrf.mxu0
  %v5188 = vadd.f32 %v5091, %v5187
  %v5189 = vpop.f32.mrf.mxu0
  %v5190 = vpop.f32.mrf.mxu0
  %v5191 = vadd.f32 %v5094, %v5190
  %v5192 = vpop.f32.mrf.mxu0
  %5193 = vmatprep.mubr.bf16.mxu0 %v1953
  %5194 = vmatmul.mubr.bf16.gmra.mxu0 %v1952
  %v5195 = vpop.f32.mrf.mxu0
  %v5196 = vadd.f32 %v5099, %v5195
  %v5197 = vpop.f32.mrf.mxu0
  %v5198 = vpop.f32.mrf.mxu0
  %v5199 = vadd.f32 %v5102, %v5198
  %v5200 = vpop.f32.mrf.mxu0
  %5201 = vmatprep.mubr.bf16.mxu0 %v1989
  %5202 = vmatmul.mubr.bf16.gmra.mxu0 %v1988
  %v5203 = vpop.f32.mrf.mxu0
  %v5204 = vadd.f32 %v5107, %v5203
  %v5205 = vpop.f32.mrf.mxu0
  %v5206 = vpop.f32.mrf.mxu0
  %v5207 = vadd.f32 %v5110, %v5206
  %v5208 = vpop.f32.mrf.mxu0
  %5209 = vmatprep.mubr.bf16.mxu0 %v2025
  %5210 = vmatmul.mubr.bf16.gmra.mxu0 %v2024
  %v5211 = vpop.f32.mrf.mxu0
  %v5212 = vadd.f32 %v5115, %v5211
  %v5213 = vpop.f32.mrf.mxu0
  %v5214 = vpop.f32.mrf.mxu0
  %v5215 = vadd.f32 %v5118, %v5214
  %v5216 = vpop.f32.mrf.mxu0
  %5217 = vdwg.mxu0
  %5218 = vmatprep.subr.bf16.mxu0 0
  %5219 = vmatpush1.bf16.msra.mxu0 %v3677
  %5220 = vmatprep.subr.bf16.mxu0 0
  %5221 = vmatpush1.bf16.msra.mxu0 %v3676
  %5222 = vmatprep.subr.bf16.mxu0 0
  %5223 = vmatpush1.bf16.msra.mxu0 %v3675
  %5224 = vmatprep.subr.bf16.mxu0 0
  %5225 = vmatpush1.bf16.msra.mxu0 %v3674
  %5226 = vmatprep.subr.bf16.mxu0 0
  %5227 = vmatpush1.bf16.msra.mxu0 %v3673
  %5228 = vmatprep.subr.bf16.mxu0 0
  %5229 = vmatpush1.bf16.msra.mxu0 %v3672
  %5230 = vmatprep.subr.bf16.mxu0 0
  %5231 = vmatpush1.bf16.msra.mxu0 %v3671
  %5232 = vmatprep.subr.bf16.mxu0 0
  %5233 = vmatpush1.bf16.msra.mxu0 %v3670
  %5234 = vmatprep.subr.bf16.mxu0 0
  %5235 = vmatpush2.bf16.msra.mxu0 %v3685
  %5236 = vmatprep.subr.bf16.mxu0 0
  %5237 = vmatpush2.bf16.msra.mxu0 %v3684
  %5238 = vmatprep.subr.bf16.mxu0 0
  %5239 = vmatpush2.bf16.msra.mxu0 %v3683
  %5240 = vmatprep.subr.bf16.mxu0 0
  %5241 = vmatpush2.bf16.msra.mxu0 %v3682
  %5242 = vmatprep.subr.bf16.mxu0 0
  %5243 = vmatpush2.bf16.msra.mxu0 %v3681
  %5244 = vmatprep.subr.bf16.mxu0 0
  %5245 = vmatpush2.bf16.msra.mxu0 %v3680
  %5246 = vmatprep.subr.bf16.mxu0 0
  %5247 = vmatpush2.bf16.msra.mxu0 %v3679
  %5248 = vmatprep.subr.bf16.mxu0 0
  %5249 = vmatpush2.bf16.msra.mxu0 %v3678
  %5250 = vmatprep.mubr.bf16.mxu0 %v1775
  %5251 = vmatmul.mubr.bf16.gmra.mxu0 %v1774
  %v5252 = vpop.f32.mrf.mxu0
  %v5253 = vadd.f32 %v5156, %v5252
  %v5254 = vpop.f32.mrf.mxu0
  %v5255 = vpop.f32.mrf.mxu0
  %v5256 = vadd.f32 %v5159, %v5255
  %v5257 = vpop.f32.mrf.mxu0
  %5258 = vmatprep.mubr.bf16.mxu0 %v1811
  %5259 = vmatmul.mubr.bf16.gmra.mxu0 %v1810
  %v5260 = vpop.f32.mrf.mxu0
  %v5261 = vadd.f32 %v5164, %v5260
  %v5262 = vpop.f32.mrf.mxu0
  %v5263 = vpop.f32.mrf.mxu0
  %v5264 = vadd.f32 %v5167, %v5263
  %v5265 = vpop.f32.mrf.mxu0
  %5266 = vmatprep.mubr.bf16.mxu0 %v1847
  %5267 = vmatmul.mubr.bf16.gmra.mxu0 %v1846
  %v5268 = vpop.f32.mrf.mxu0
  %v5269 = vadd.f32 %v5172, %v5268
  %v5270 = vpop.f32.mrf.mxu0
  %v5271 = vpop.f32.mrf.mxu0
  %v5272 = vadd.f32 %v5175, %v5271
  %v5273 = vpop.f32.mrf.mxu0
  %5274 = vmatprep.mubr.bf16.mxu0 %v1883
  %5275 = vmatmul.mubr.bf16.gmra.mxu0 %v1882
  %v5276 = vpop.f32.mrf.mxu0
  %v5277 = vadd.f32 %v5180, %v5276
  %v5278 = vpop.f32.mrf.mxu0
  %v5279 = vpop.f32.mrf.mxu0
  %v5280 = vadd.f32 %v5183, %v5279
  %v5281 = vpop.f32.mrf.mxu0
  %5282 = vmatprep.mubr.bf16.mxu0 %v1919
  %5283 = vmatmul.mubr.bf16.gmra.mxu0 %v1918
  %v5284 = vpop.f32.mrf.mxu0
  %v5285 = vadd.f32 %v5188, %v5284
  %v5286 = vpop.f32.mrf.mxu0
  %v5287 = vpop.f32.mrf.mxu0
  %v5288 = vadd.f32 %v5191, %v5287
  %v5289 = vpop.f32.mrf.mxu0
  %5290 = vmatprep.mubr.bf16.mxu0 %v1955
  %5291 = vmatmul.mubr.bf16.gmra.mxu0 %v1954
  %v5292 = vpop.f32.mrf.mxu0
  %v5293 = vadd.f32 %v5196, %v5292
  %v5294 = vpop.f32.mrf.mxu0
  %v5295 = vpop.f32.mrf.mxu0
  %v5296 = vadd.f32 %v5199, %v5295
  %v5297 = vpop.f32.mrf.mxu0
  %5298 = vmatprep.mubr.bf16.mxu0 %v1991
  %5299 = vmatmul.mubr.bf16.gmra.mxu0 %v1990
  %v5300 = vpop.f32.mrf.mxu0
  %v5301 = vadd.f32 %v5204, %v5300
  %v5302 = vpop.f32.mrf.mxu0
  %v5303 = vpop.f32.mrf.mxu0
  %v5304 = vadd.f32 %v5207, %v5303
  %v5305 = vpop.f32.mrf.mxu0
  %5306 = vmatprep.mubr.bf16.mxu0 %v2027
  %5307 = vmatmul.mubr.bf16.gmra.mxu0 %v2026
  %v5308 = vpop.f32.mrf.mxu0
  %v5309 = vadd.f32 %v5212, %v5308
  %v5310 = vpop.f32.mrf.mxu0
  %v5311 = vpop.f32.mrf.mxu0
  %v5312 = vadd.f32 %v5215, %v5311
  %v5313 = vpop.f32.mrf.mxu0
  %5314 = vdwg.mxu0
  %5315 = vmatprep.subr.bf16.mxu0 0
  %5316 = vmatpush1.bf16.msra.mxu0 %v3693
  %5317 = vmatprep.subr.bf16.mxu0 0
  %5318 = vmatpush1.bf16.msra.mxu0 %v3692
  %5319 = vmatprep.subr.bf16.mxu0 0
  %5320 = vmatpush1.bf16.msra.mxu0 %v3691
  %5321 = vmatprep.subr.bf16.mxu0 0
  %5322 = vmatpush1.bf16.msra.mxu0 %v3690
  %5323 = vmatprep.subr.bf16.mxu0 0
  %5324 = vmatpush1.bf16.msra.mxu0 %v3689
  %5325 = vmatprep.subr.bf16.mxu0 0
  %5326 = vmatpush1.bf16.msra.mxu0 %v3688
  %5327 = vmatprep.subr.bf16.mxu0 0
  %5328 = vmatpush1.bf16.msra.mxu0 %v3687
  %5329 = vmatprep.subr.bf16.mxu0 0
  %5330 = vmatpush1.bf16.msra.mxu0 %v3686
  %5331 = vmatprep.subr.bf16.mxu0 0
  %5332 = vmatpush2.bf16.msra.mxu0 %v3701
  %5333 = vmatprep.subr.bf16.mxu0 0
  %5334 = vmatpush2.bf16.msra.mxu0 %v3700
  %5335 = vmatprep.subr.bf16.mxu0 0
  %5336 = vmatpush2.bf16.msra.mxu0 %v3699
  %5337 = vmatprep.subr.bf16.mxu0 0
  %5338 = vmatpush2.bf16.msra.mxu0 %v3698
  %5339 = vmatprep.subr.bf16.mxu0 0
  %5340 = vmatpush2.bf16.msra.mxu0 %v3697
  %5341 = vmatprep.subr.bf16.mxu0 0
  %5342 = vmatpush2.bf16.msra.mxu0 %v3696
  %5343 = vmatprep.subr.bf16.mxu0 0
  %5344 = vmatpush2.bf16.msra.mxu0 %v3695
  %5345 = vmatprep.subr.bf16.mxu0 0
  %5346 = vmatpush2.bf16.msra.mxu0 %v3694
  %5347 = vmatprep.mubr.bf16.mxu0 %v1777
  %5348 = vmatmul.mubr.bf16.gmra.mxu0 %v1776
  %v5349 = vpop.f32.mrf.mxu0
  %v5350 = vadd.f32 %v5253, %v5349
  %v5351 = vpop.f32.mrf.mxu0
  %v5352 = vpop.f32.mrf.mxu0
  %v5353 = vadd.f32 %v5256, %v5352
  %v5354 = vpop.f32.mrf.mxu0
  %5355 = vmatprep.mubr.bf16.mxu0 %v1813
  %5356 = vmatmul.mubr.bf16.gmra.mxu0 %v1812
  %v5357 = vpop.f32.mrf.mxu0
  %v5358 = vadd.f32 %v5261, %v5357
  %v5359 = vpop.f32.mrf.mxu0
  %v5360 = vpop.f32.mrf.mxu0
  %v5361 = vadd.f32 %v5264, %v5360
  %v5362 = vpop.f32.mrf.mxu0
  %5363 = vmatprep.mubr.bf16.mxu0 %v1849
  %5364 = vmatmul.mubr.bf16.gmra.mxu0 %v1848
  %v5365 = vpop.f32.mrf.mxu0
  %v5366 = vadd.f32 %v5269, %v5365
  %v5367 = vpop.f32.mrf.mxu0
  %v5368 = vpop.f32.mrf.mxu0
  %v5369 = vadd.f32 %v5272, %v5368
  %v5370 = vpop.f32.mrf.mxu0
  %5371 = vmatprep.mubr.bf16.mxu0 %v1885
  %5372 = vmatmul.mubr.bf16.gmra.mxu0 %v1884
  %v5373 = vpop.f32.mrf.mxu0
  %v5374 = vadd.f32 %v5277, %v5373
  %v5375 = vpop.f32.mrf.mxu0
  %v5376 = vpop.f32.mrf.mxu0
  %v5377 = vadd.f32 %v5280, %v5376
  %v5378 = vpop.f32.mrf.mxu0
  %5379 = vmatprep.mubr.bf16.mxu0 %v1921
  %5380 = vmatmul.mubr.bf16.gmra.mxu0 %v1920
  %v5381 = vpop.f32.mrf.mxu0
  %v5382 = vadd.f32 %v5285, %v5381
  %v5383 = vpop.f32.mrf.mxu0
  %v5384 = vpop.f32.mrf.mxu0
  %v5385 = vadd.f32 %v5288, %v5384
  %v5386 = vpop.f32.mrf.mxu0
  %5387 = vmatprep.mubr.bf16.mxu0 %v1957
  %5388 = vmatmul.mubr.bf16.gmra.mxu0 %v1956
  %v5389 = vpop.f32.mrf.mxu0
  %v5390 = vadd.f32 %v5293, %v5389
  %v5391 = vpop.f32.mrf.mxu0
  %v5392 = vpop.f32.mrf.mxu0
  %v5393 = vadd.f32 %v5296, %v5392
  %v5394 = vpop.f32.mrf.mxu0
  %5395 = vmatprep.mubr.bf16.mxu0 %v1993
  %5396 = vmatmul.mubr.bf16.gmra.mxu0 %v1992
  %v5397 = vpop.f32.mrf.mxu0
  %v5398 = vadd.f32 %v5301, %v5397
  %v5399 = vpop.f32.mrf.mxu0
  %v5400 = vpop.f32.mrf.mxu0
  %v5401 = vadd.f32 %v5304, %v5400
  %v5402 = vpop.f32.mrf.mxu0
  %5403 = vmatprep.mubr.bf16.mxu0 %v2029
  %5404 = vmatmul.mubr.bf16.gmra.mxu0 %v2028
  %v5405 = vpop.f32.mrf.mxu0
  %v5406 = vadd.f32 %v5309, %v5405
  %v5407 = vpop.f32.mrf.mxu0
  %v5408 = vpop.f32.mrf.mxu0
  %v5409 = vadd.f32 %v5312, %v5408
  %v5410 = vpop.f32.mrf.mxu0
  %5411 = vdwg.mxu0
  %5412 = vmatprep.subr.bf16.mxu0 0
  %5413 = vmatpush1.bf16.msra.mxu0 %v3709
  %5414 = vmatprep.subr.bf16.mxu0 0
  %5415 = vmatpush1.bf16.msra.mxu0 %v3708
  %5416 = vmatprep.subr.bf16.mxu0 0
  %5417 = vmatpush1.bf16.msra.mxu0 %v3707
  %5418 = vmatprep.subr.bf16.mxu0 0
  %5419 = vmatpush1.bf16.msra.mxu0 %v3706
  %5420 = vmatprep.subr.bf16.mxu0 0
  %5421 = vmatpush1.bf16.msra.mxu0 %v3705
  %5422 = vmatprep.subr.bf16.mxu0 0
  %5423 = vmatpush1.bf16.msra.mxu0 %v3704
  %5424 = vmatprep.subr.bf16.mxu0 0
  %5425 = vmatpush1.bf16.msra.mxu0 %v3703
  %5426 = vmatprep.subr.bf16.mxu0 0
  %5427 = vmatpush1.bf16.msra.mxu0 %v3702
  %5428 = vmatprep.subr.bf16.mxu0 0
  %5429 = vmatpush2.bf16.msra.mxu0 %v3717
  %5430 = vmatprep.subr.bf16.mxu0 0
  %5431 = vmatpush2.bf16.msra.mxu0 %v3716
  %5432 = vmatprep.subr.bf16.mxu0 0
  %5433 = vmatpush2.bf16.msra.mxu0 %v3715
  %5434 = vmatprep.subr.bf16.mxu0 0
  %5435 = vmatpush2.bf16.msra.mxu0 %v3714
  %5436 = vmatprep.subr.bf16.mxu0 0
  %5437 = vmatpush2.bf16.msra.mxu0 %v3713
  %5438 = vmatprep.subr.bf16.mxu0 0
  %5439 = vmatpush2.bf16.msra.mxu0 %v3712
  %5440 = vmatprep.subr.bf16.mxu0 0
  %5441 = vmatpush2.bf16.msra.mxu0 %v3711
  %5442 = vmatprep.subr.bf16.mxu0 0
  %5443 = vmatpush2.bf16.msra.mxu0 %v3710
  %5444 = vmatprep.mubr.bf16.mxu0 %v1779
  %5445 = vmatmul.mubr.bf16.gmra.mxu0 %v1778
  %v5446 = vpop.f32.mrf.mxu0
  %v5447 = vadd.f32 %v5350, %v5446
  %v5448 = vpop.f32.mrf.mxu0
  %v5449 = vpop.f32.mrf.mxu0
  %v5450 = vadd.f32 %v5353, %v5449
  %v5451 = vpop.f32.mrf.mxu0
  %5452 = vmatprep.mubr.bf16.mxu0 %v1815
  %5453 = vmatmul.mubr.bf16.gmra.mxu0 %v1814
  %v5454 = vpop.f32.mrf.mxu0
  %v5455 = vadd.f32 %v5358, %v5454
  %v5456 = vpop.f32.mrf.mxu0
  %v5457 = vpop.f32.mrf.mxu0
  %v5458 = vadd.f32 %v5361, %v5457
  %v5459 = vpop.f32.mrf.mxu0
  %5460 = vmatprep.mubr.bf16.mxu0 %v1851
  %5461 = vmatmul.mubr.bf16.gmra.mxu0 %v1850
  %v5462 = vpop.f32.mrf.mxu0
  %v5463 = vadd.f32 %v5366, %v5462
  %v5464 = vpop.f32.mrf.mxu0
  %v5465 = vpop.f32.mrf.mxu0
  %v5466 = vadd.f32 %v5369, %v5465
  %v5467 = vpop.f32.mrf.mxu0
  %5468 = vmatprep.mubr.bf16.mxu0 %v1887
  %5469 = vmatmul.mubr.bf16.gmra.mxu0 %v1886
  %v5470 = vpop.f32.mrf.mxu0
  %v5471 = vadd.f32 %v5374, %v5470
  %v5472 = vpop.f32.mrf.mxu0
  %v5473 = vpop.f32.mrf.mxu0
  %v5474 = vadd.f32 %v5377, %v5473
  %v5475 = vpop.f32.mrf.mxu0
  %5476 = vmatprep.mubr.bf16.mxu0 %v1923
  %5477 = vmatmul.mubr.bf16.gmra.mxu0 %v1922
  %v5478 = vpop.f32.mrf.mxu0
  %v5479 = vadd.f32 %v5382, %v5478
  %v5480 = vpop.f32.mrf.mxu0
  %v5481 = vpop.f32.mrf.mxu0
  %v5482 = vadd.f32 %v5385, %v5481
  %v5483 = vpop.f32.mrf.mxu0
  %5484 = vmatprep.mubr.bf16.mxu0 %v1959
  %5485 = vmatmul.mubr.bf16.gmra.mxu0 %v1958
  %v5486 = vpop.f32.mrf.mxu0
  %v5487 = vadd.f32 %v5390, %v5486
  %v5488 = vpop.f32.mrf.mxu0
  %v5489 = vpop.f32.mrf.mxu0
  %v5490 = vadd.f32 %v5393, %v5489
  %v5491 = vpop.f32.mrf.mxu0
  %5492 = vmatprep.mubr.bf16.mxu0 %v1995
  %5493 = vmatmul.mubr.bf16.gmra.mxu0 %v1994
  %v5494 = vpop.f32.mrf.mxu0
  %v5495 = vadd.f32 %v5398, %v5494
  %v5496 = vpop.f32.mrf.mxu0
  %v5497 = vpop.f32.mrf.mxu0
  %v5498 = vadd.f32 %v5401, %v5497
  %v5499 = vpop.f32.mrf.mxu0
  %5500 = vmatprep.mubr.bf16.mxu0 %v2031
  %5501 = vmatmul.mubr.bf16.gmra.mxu0 %v2030
  %v5502 = vpop.f32.mrf.mxu0
  %v5503 = vadd.f32 %v5406, %v5502
  %v5504 = vpop.f32.mrf.mxu0
  %v5505 = vpop.f32.mrf.mxu0
  %v5506 = vadd.f32 %v5409, %v5505
  %v5507 = vpop.f32.mrf.mxu0
  %5508 = vdwg.mxu0
  %5509 = vmatprep.subr.bf16.mxu0 0
  %5510 = vmatpush1.bf16.msra.mxu0 %v3725
  %5511 = vmatprep.subr.bf16.mxu0 0
  %5512 = vmatpush1.bf16.msra.mxu0 %v3724
  %5513 = vmatprep.subr.bf16.mxu0 0
  %5514 = vmatpush1.bf16.msra.mxu0 %v3723
  %5515 = vmatprep.subr.bf16.mxu0 0
  %5516 = vmatpush1.bf16.msra.mxu0 %v3722
  %5517 = vmatprep.subr.bf16.mxu0 0
  %5518 = vmatpush1.bf16.msra.mxu0 %v3721
  %5519 = vmatprep.subr.bf16.mxu0 0
  %5520 = vmatpush1.bf16.msra.mxu0 %v3720
  %5521 = vmatprep.subr.bf16.mxu0 0
  %5522 = vmatpush1.bf16.msra.mxu0 %v3719
  %5523 = vmatprep.subr.bf16.mxu0 0
  %5524 = vmatpush1.bf16.msra.mxu0 %v3718
  %5525 = vmatprep.subr.bf16.mxu0 0
  %5526 = vmatpush2.bf16.msra.mxu0 %v3733
  %5527 = vmatprep.subr.bf16.mxu0 0
  %5528 = vmatpush2.bf16.msra.mxu0 %v3732
  %5529 = vmatprep.subr.bf16.mxu0 0
  %5530 = vmatpush2.bf16.msra.mxu0 %v3731
  %5531 = vmatprep.subr.bf16.mxu0 0
  %5532 = vmatpush2.bf16.msra.mxu0 %v3730
  %5533 = vmatprep.subr.bf16.mxu0 0
  %5534 = vmatpush2.bf16.msra.mxu0 %v3729
  %5535 = vmatprep.subr.bf16.mxu0 0
  %5536 = vmatpush2.bf16.msra.mxu0 %v3728
  %5537 = vmatprep.subr.bf16.mxu0 0
  %5538 = vmatpush2.bf16.msra.mxu0 %v3727
  %5539 = vmatprep.subr.bf16.mxu0 0
  %5540 = vmatpush2.bf16.msra.mxu0 %v3726
  %5541 = vmatprep.mubr.bf16.mxu0 %v1781
  %5542 = vmatmul.mubr.bf16.gmra.mxu0 %v1780
  %v5543 = vpop.f32.mrf.mxu0
  %v5544 = vadd.f32 %v5447, %v5543
  %v5545 = vpop.f32.mrf.mxu0
  %v5546 = vpop.f32.mrf.mxu0
  %v5547 = vadd.f32 %v5450, %v5546
  %v5548 = vpop.f32.mrf.mxu0
  %5549 = vmatprep.mubr.bf16.mxu0 %v1817
  %5550 = vmatmul.mubr.bf16.gmra.mxu0 %v1816
  %v5551 = vpop.f32.mrf.mxu0
  %v5552 = vadd.f32 %v5455, %v5551
  %v5553 = vpop.f32.mrf.mxu0
  %v5554 = vpop.f32.mrf.mxu0
  %v5555 = vadd.f32 %v5458, %v5554
  %v5556 = vpop.f32.mrf.mxu0
  %5557 = vmatprep.mubr.bf16.mxu0 %v1853
  %5558 = vmatmul.mubr.bf16.gmra.mxu0 %v1852
  %v5559 = vpop.f32.mrf.mxu0
  %v5560 = vadd.f32 %v5463, %v5559
  %v5561 = vpop.f32.mrf.mxu0
  %v5562 = vpop.f32.mrf.mxu0
  %v5563 = vadd.f32 %v5466, %v5562
  %v5564 = vpop.f32.mrf.mxu0
  %5565 = vmatprep.mubr.bf16.mxu0 %v1889
  %5566 = vmatmul.mubr.bf16.gmra.mxu0 %v1888
  %v5567 = vpop.f32.mrf.mxu0
  %v5568 = vadd.f32 %v5471, %v5567
  %v5569 = vpop.f32.mrf.mxu0
  %v5570 = vpop.f32.mrf.mxu0
  %v5571 = vadd.f32 %v5474, %v5570
  %v5572 = vpop.f32.mrf.mxu0
  %5573 = vmatprep.mubr.bf16.mxu0 %v1925
  %5574 = vmatmul.mubr.bf16.gmra.mxu0 %v1924
  %v5575 = vpop.f32.mrf.mxu0
  %v5576 = vadd.f32 %v5479, %v5575
  %v5577 = vpop.f32.mrf.mxu0
  %v5578 = vpop.f32.mrf.mxu0
  %v5579 = vadd.f32 %v5482, %v5578
  %v5580 = vpop.f32.mrf.mxu0
  %5581 = vmatprep.mubr.bf16.mxu0 %v1961
  %5582 = vmatmul.mubr.bf16.gmra.mxu0 %v1960
  %v5583 = vpop.f32.mrf.mxu0
  %v5584 = vadd.f32 %v5487, %v5583
  %v5585 = vpop.f32.mrf.mxu0
  %v5586 = vpop.f32.mrf.mxu0
  %v5587 = vadd.f32 %v5490, %v5586
  %v5588 = vpop.f32.mrf.mxu0
  %5589 = vmatprep.mubr.bf16.mxu0 %v1997
  %5590 = vmatmul.mubr.bf16.gmra.mxu0 %v1996
  %v5591 = vpop.f32.mrf.mxu0
  %v5592 = vadd.f32 %v5495, %v5591
  %v5593 = vpop.f32.mrf.mxu0
  %v5594 = vpop.f32.mrf.mxu0
  %v5595 = vadd.f32 %v5498, %v5594
  %v5596 = vpop.f32.mrf.mxu0
  %5597 = vmatprep.mubr.bf16.mxu0 %v2033
  %5598 = vmatmul.mubr.bf16.gmra.mxu0 %v2032
  %v5599 = vpop.f32.mrf.mxu0
  %v5600 = vadd.f32 %v5503, %v5599
  %v5601 = vpop.f32.mrf.mxu0
  %v5602 = vpop.f32.mrf.mxu0
  %v5603 = vadd.f32 %v5506, %v5602
  %v5604 = vpop.f32.mrf.mxu0
  %5605 = vdwg.mxu0
  %5606 = vmatprep.subr.bf16.mxu0 0
  %5607 = vmatpush1.bf16.msra.mxu0 %v3741
  %5608 = vmatprep.subr.bf16.mxu0 0
  %5609 = vmatpush1.bf16.msra.mxu0 %v3740
  %5610 = vmatprep.subr.bf16.mxu0 0
  %5611 = vmatpush1.bf16.msra.mxu0 %v3739
  %5612 = vmatprep.subr.bf16.mxu0 0
  %5613 = vmatpush1.bf16.msra.mxu0 %v3738
  %5614 = vmatprep.subr.bf16.mxu0 0
  %5615 = vmatpush1.bf16.msra.mxu0 %v3737
  %5616 = vmatprep.subr.bf16.mxu0 0
  %5617 = vmatpush1.bf16.msra.mxu0 %v3736
  %5618 = vmatprep.subr.bf16.mxu0 0
  %5619 = vmatpush1.bf16.msra.mxu0 %v3735
  %5620 = vmatprep.subr.bf16.mxu0 0
  %5621 = vmatpush1.bf16.msra.mxu0 %v3734
  %5622 = vmatprep.subr.bf16.mxu0 0
  %5623 = vmatpush2.bf16.msra.mxu0 %v3749
  %5624 = vmatprep.subr.bf16.mxu0 0
  %5625 = vmatpush2.bf16.msra.mxu0 %v3748
  %5626 = vmatprep.subr.bf16.mxu0 0
  %5627 = vmatpush2.bf16.msra.mxu0 %v3747
  %5628 = vmatprep.subr.bf16.mxu0 0
  %5629 = vmatpush2.bf16.msra.mxu0 %v3746
  %5630 = vmatprep.subr.bf16.mxu0 0
  %5631 = vmatpush2.bf16.msra.mxu0 %v3745
  %5632 = vmatprep.subr.bf16.mxu0 0
  %5633 = vmatpush2.bf16.msra.mxu0 %v3744
  %5634 = vmatprep.subr.bf16.mxu0 0
  %5635 = vmatpush2.bf16.msra.mxu0 %v3743
  %5636 = vmatprep.subr.bf16.mxu0 0
  %5637 = vmatpush2.bf16.msra.mxu0 %v3742
  %5638 = vmatprep.mubr.bf16.mxu0 %v1783
  %5639 = vmatmul.mubr.bf16.gmra.mxu0 %v1782
  %v5640 = vpop.f32.mrf.mxu0
  %v5641 = vadd.f32 %v5544, %v5640
  %v5642 = vpop.f32.mrf.mxu0
  %v5643 = vpop.f32.mrf.mxu0
  %v5644 = vadd.f32 %v5547, %v5643
  %v5645 = vpop.f32.mrf.mxu0
  %5646 = vmatprep.mubr.bf16.mxu0 %v1819
  %5647 = vmatmul.mubr.bf16.gmra.mxu0 %v1818
  %v5648 = vpop.f32.mrf.mxu0
  %v5649 = vadd.f32 %v5552, %v5648
  %v5650 = vpop.f32.mrf.mxu0
  %v5651 = vpop.f32.mrf.mxu0
  %v5652 = vadd.f32 %v5555, %v5651
  %v5653 = vpop.f32.mrf.mxu0
  %5654 = vmatprep.mubr.bf16.mxu0 %v1855
  %5655 = vmatmul.mubr.bf16.gmra.mxu0 %v1854
  %v5656 = vpop.f32.mrf.mxu0
  %v5657 = vadd.f32 %v5560, %v5656
  %v5658 = vpop.f32.mrf.mxu0
  %v5659 = vpop.f32.mrf.mxu0
  %v5660 = vadd.f32 %v5563, %v5659
  %v5661 = vpop.f32.mrf.mxu0
  %5662 = vmatprep.mubr.bf16.mxu0 %v1891
  %5663 = vmatmul.mubr.bf16.gmra.mxu0 %v1890
  %v5664 = vpop.f32.mrf.mxu0
  %v5665 = vadd.f32 %v5568, %v5664
  %v5666 = vpop.f32.mrf.mxu0
  %v5667 = vpop.f32.mrf.mxu0
  %v5668 = vadd.f32 %v5571, %v5667
  %v5669 = vpop.f32.mrf.mxu0
  %5670 = vmatprep.mubr.bf16.mxu0 %v1927
  %5671 = vmatmul.mubr.bf16.gmra.mxu0 %v1926
  %v5672 = vpop.f32.mrf.mxu0
  %v5673 = vadd.f32 %v5576, %v5672
  %v5674 = vpop.f32.mrf.mxu0
  %v5675 = vpop.f32.mrf.mxu0
  %v5676 = vadd.f32 %v5579, %v5675
  %v5677 = vpop.f32.mrf.mxu0
  %5678 = vmatprep.mubr.bf16.mxu0 %v1963
  %5679 = vmatmul.mubr.bf16.gmra.mxu0 %v1962
  %v5680 = vpop.f32.mrf.mxu0
  %v5681 = vadd.f32 %v5584, %v5680
  %v5682 = vpop.f32.mrf.mxu0
  %v5683 = vpop.f32.mrf.mxu0
  %v5684 = vadd.f32 %v5587, %v5683
  %v5685 = vpop.f32.mrf.mxu0
  %5686 = vmatprep.mubr.bf16.mxu0 %v1999
  %5687 = vmatmul.mubr.bf16.gmra.mxu0 %v1998
  %v5688 = vpop.f32.mrf.mxu0
  %v5689 = vadd.f32 %v5592, %v5688
  %v5690 = vpop.f32.mrf.mxu0
  %v5691 = vpop.f32.mrf.mxu0
  %v5692 = vadd.f32 %v5595, %v5691
  %v5693 = vpop.f32.mrf.mxu0
  %5694 = vmatprep.mubr.bf16.mxu0 %v2035
  %5695 = vmatmul.mubr.bf16.gmra.mxu0 %v2034
  %v5696 = vpop.f32.mrf.mxu0
  %v5697 = vadd.f32 %v5600, %v5696
  %v5698 = vpop.f32.mrf.mxu0
  %v5699 = vpop.f32.mrf.mxu0
  %v5700 = vadd.f32 %v5603, %v5699
  %v5701 = vpop.f32.mrf.mxu0
  %5702 = vdwg.mxu0
  %5703 = vmatprep.subr.bf16.mxu0 0
  %5704 = vmatpush1.bf16.msra.mxu0 %v3757
  %5705 = vmatprep.subr.bf16.mxu0 0
  %5706 = vmatpush1.bf16.msra.mxu0 %v3756
  %5707 = vmatprep.subr.bf16.mxu0 0
  %5708 = vmatpush1.bf16.msra.mxu0 %v3755
  %5709 = vmatprep.subr.bf16.mxu0 0
  %5710 = vmatpush1.bf16.msra.mxu0 %v3754
  %5711 = vmatprep.subr.bf16.mxu0 0
  %5712 = vmatpush1.bf16.msra.mxu0 %v3753
  %5713 = vmatprep.subr.bf16.mxu0 0
  %5714 = vmatpush1.bf16.msra.mxu0 %v3752
  %5715 = vmatprep.subr.bf16.mxu0 0
  %5716 = vmatpush1.bf16.msra.mxu0 %v3751
  %5717 = vmatprep.subr.bf16.mxu0 0
  %5718 = vmatpush1.bf16.msra.mxu0 %v3750
  %5719 = vmatprep.subr.bf16.mxu0 0
  %5720 = vmatpush2.bf16.msra.mxu0 %v3765
  %5721 = vmatprep.subr.bf16.mxu0 0
  %5722 = vmatpush2.bf16.msra.mxu0 %v3764
  %5723 = vmatprep.subr.bf16.mxu0 0
  %5724 = vmatpush2.bf16.msra.mxu0 %v3763
  %5725 = vmatprep.subr.bf16.mxu0 0
  %5726 = vmatpush2.bf16.msra.mxu0 %v3762
  %5727 = vmatprep.subr.bf16.mxu0 0
  %5728 = vmatpush2.bf16.msra.mxu0 %v3761
  %5729 = vmatprep.subr.bf16.mxu0 0
  %5730 = vmatpush2.bf16.msra.mxu0 %v3760
  %5731 = vmatprep.subr.bf16.mxu0 0
  %5732 = vmatpush2.bf16.msra.mxu0 %v3759
  %5733 = vmatprep.subr.bf16.mxu0 0
  %5734 = vmatpush2.bf16.msra.mxu0 %v3758
  %5735 = vmatprep.mubr.bf16.mxu0 %v1785
  %5736 = vmatmul.mubr.bf16.gmra.mxu0 %v1784
  %v5737 = vpop.f32.mrf.mxu0
  %v5738 = vadd.f32 %v5641, %v5737
  %v5739 = vpop.f32.mrf.mxu0
  %v5740 = vpop.f32.mrf.mxu0
  %v5741 = vadd.f32 %v5644, %v5740
  %v5742 = vpop.f32.mrf.mxu0
  %5743 = vmatprep.mubr.bf16.mxu0 %v1821
  %5744 = vmatmul.mubr.bf16.gmra.mxu0 %v1820
  %v5745 = vpop.f32.mrf.mxu0
  %v5746 = vadd.f32 %v5649, %v5745
  %v5747 = vpop.f32.mrf.mxu0
  %v5748 = vpop.f32.mrf.mxu0
  %v5749 = vadd.f32 %v5652, %v5748
  %v5750 = vpop.f32.mrf.mxu0
  %5751 = vmatprep.mubr.bf16.mxu0 %v1857
  %5752 = vmatmul.mubr.bf16.gmra.mxu0 %v1856
  %v5753 = vpop.f32.mrf.mxu0
  %v5754 = vadd.f32 %v5657, %v5753
  %v5755 = vpop.f32.mrf.mxu0
  %v5756 = vpop.f32.mrf.mxu0
  %v5757 = vadd.f32 %v5660, %v5756
  %v5758 = vpop.f32.mrf.mxu0
  %5759 = vmatprep.mubr.bf16.mxu0 %v1893
  %5760 = vmatmul.mubr.bf16.gmra.mxu0 %v1892
  %v5761 = vpop.f32.mrf.mxu0
  %v5762 = vadd.f32 %v5665, %v5761
  %v5763 = vpop.f32.mrf.mxu0
  %v5764 = vpop.f32.mrf.mxu0
  %v5765 = vadd.f32 %v5668, %v5764
  %v5766 = vpop.f32.mrf.mxu0
  %5767 = vmatprep.mubr.bf16.mxu0 %v1929
  %5768 = vmatmul.mubr.bf16.gmra.mxu0 %v1928
  %v5769 = vpop.f32.mrf.mxu0
  %v5770 = vadd.f32 %v5673, %v5769
  %v5771 = vpop.f32.mrf.mxu0
  %v5772 = vpop.f32.mrf.mxu0
  %v5773 = vadd.f32 %v5676, %v5772
  %v5774 = vpop.f32.mrf.mxu0
  %5775 = vmatprep.mubr.bf16.mxu0 %v1965
  %5776 = vmatmul.mubr.bf16.gmra.mxu0 %v1964
  %v5777 = vpop.f32.mrf.mxu0
  %v5778 = vadd.f32 %v5681, %v5777
  %v5779 = vpop.f32.mrf.mxu0
  %v5780 = vpop.f32.mrf.mxu0
  %v5781 = vadd.f32 %v5684, %v5780
  %v5782 = vpop.f32.mrf.mxu0
  %5783 = vmatprep.mubr.bf16.mxu0 %v2001
  %5784 = vmatmul.mubr.bf16.gmra.mxu0 %v2000
  %v5785 = vpop.f32.mrf.mxu0
  %v5786 = vadd.f32 %v5689, %v5785
  %v5787 = vpop.f32.mrf.mxu0
  %v5788 = vpop.f32.mrf.mxu0
  %v5789 = vadd.f32 %v5692, %v5788
  %v5790 = vpop.f32.mrf.mxu0
  %5791 = vmatprep.mubr.bf16.mxu0 %v2037
  %5792 = vmatmul.mubr.bf16.gmra.mxu0 %v2036
  %v5793 = vpop.f32.mrf.mxu0
  %v5794 = vadd.f32 %v5697, %v5793
  %v5795 = vpop.f32.mrf.mxu0
  %v5796 = vpop.f32.mrf.mxu0
  %v5797 = vadd.f32 %v5700, %v5796
  %v5798 = vpop.f32.mrf.mxu0
  %5799 = vdwg.mxu0
  %5800 = vst [vmem:[%s3] sm:$0xff] %v5738
  %5801 = vst [vmem:[%s3 + $0x8] sm:$0xff] %v5741
  %5802 = vst [vmem:[%s3 + $0x10] sm:$0xff] %v5746
  %5803 = vst [vmem:[%s3 + $0x18] sm:$0xff] %v5749
  %5804 = vst [vmem:[%s3 + $0x20] sm:$0xff] %v5754
  %5805 = vst [vmem:[%s3 + $0x28] sm:$0xff] %v5757
  %5806 = vst [vmem:[%s3 + $0x30] sm:$0xff] %v5762
  %5807 = vst [vmem:[%s3 + $0x38] sm:$0xff] %v5765
  %5808 = vst [vmem:[%s3 + $0x40] sm:$0xff] %v5770
  %5809 = vst [vmem:[%s3 + $0x48] sm:$0xff] %v5773
  %5810 = vst [vmem:[%s3 + $0x50] sm:$0xff] %v5778
  %5811 = vst [vmem:[%s3 + $0x58] sm:$0xff] %v5781
  %5812 = vst [vmem:[%s3 + $0x60] sm:$0xff] %v5786
  %5813 = vst [vmem:[%s3 + $0x68] sm:$0xff] %v5789
  %5814 = vst [vmem:[%s3 + $0x70] sm:$0xff] %v5794
  %5815 = vst [vmem:[%s3 + $0x78] sm:$0xff] %v5797
  // Predicated region
  $region14: #{fused_head_level.1} parent=0 // pred_check
    _
  $region15: #{fused_head_level.1} parent=0 // pred_check_branch
    %5817 = sbr.rel (0) target = $region17
  $region16: #{fused_head_level.1} parent=0 // pred_region
    _
  $region17: #{fused_head_level.1} parent=0 // pred_fallthru
    _
  // Predicated region
  $region18: #{fused_head_level.1} parent=0 // pred_check
    _
  $region19: #{fused_head_level.1} parent=0 // pred_check_branch
    %5819 = sbr.rel (0) target = $region21
  $region20: #{fused_head_level.1} parent=0 // pred_region
    _
  $region21: #{fused_head_level.1} parent=0 // pred_fallthru
    _

</llo_original>
